<compile_context>
chip_gen: v6e
topology: v6e:2x2x1
jax: 0.10.0
libtpu: 0.0.40
codegen_flags: <defaults>
</compile_context>

<pallas_src>
import functools

import jax
import jax.numpy as jnp
from jax.experimental import pallas as pl
from jax.experimental.pallas import tpu as pltpu


GH, GW = 8, 9                 # zero-padded conv1 grid (input spatial is 6x7)
GRID = GH * GW                # 72 grid positions per batch element
NPAD = 128                    # lane-padded width of the final output slab
EPS = 1e-5


def _taps(kh, kw):
    """Flat row offsets (i*GW + j) of a kh x kw kernel over the 8x9 grid."""
    return [i * GW + j for i in range(kh) for j in range(kw)]


def _row_counts(batch):
    """Staged row counts: each layer computes a few extra (finite-garbage)
    rows so the next layer's shifted-tap slices stay in bounds.  No pad
    concats and no rolls are needed anywhere; garbage rows never feed valid
    output rows."""
    r = batch * GRID
    n3 = r + 24          # conv3 output rows   (fc1   taps reach +21)
    n2 = n3 + 16         # conv2 output rows   (conv3 taps reach +10)
    n1 = n2 + 24         # conv1 output rows   (conv2 taps reach +20)
    return r, n3, n2, n1


# -----------------------------------------------------------------------------
# The single fused kernel: conv1 -> conv2 -> conv3 -> fc1 -> (compact) -> fc2
# -----------------------------------------------------------------------------
def _dqn_kernel(x_ref, w1_ref, s1_ref, w2_ref, s2_ref, w3_ref, s3_ref,
                wf1_ref, bf1_ref, wf2_ref, bf2_ref, o_ref, *,
                batch, out_rows):
    R, n3, n2, n1 = _row_counts(batch)

    def stack_taps(h, rows, taps):
        # Tap-stacked activation: lane block t holds h shifted down by taps[t].
        # Slices are taken in f32 (arbitrary sublane offset), cast per piece to
        # bf16, and concatenated along lanes; every piece is 128 lanes wide so
        # the concat is tile-aligned.
        return jnp.concatenate(
            [h[o:o + rows, :].astype(jnp.bfloat16) for o in taps], axis=1)

    # ---- conv1 (+folded BN, ReLU): taps pre-stacked into x lanes by the
    # wrapper -> one (n1,16)@(16,128) f32 matmul (out channels padded 64->128,
    # extra channels are exactly 0 after the folded shift + ReLU). ----
    h = jnp.dot(x_ref[...], w1_ref[...], preferred_element_type=jnp.float32)
    h = jnp.maximum(h + s1_ref[...], 0.0)                        # (n1, 128) f32

    # ---- conv2 3x3: ONE fused K=1152 bf16 MXU matmul. ----
    a = stack_taps(h, n2, _taps(3, 3))                           # (n2, 1152) bf16
    h = jnp.dot(a, w2_ref[...], preferred_element_type=jnp.float32)
    h = jnp.maximum(h + s2_ref[...], 0.0)                        # (n2, 128) f32

    # ---- conv3 2x2: ONE fused K=512 bf16 MXU matmul. ----
    a = stack_taps(h, n3, _taps(2, 2))                           # (n3, 512) bf16
    h = jnp.dot(a, w3_ref[...], preferred_element_type=jnp.float32)
    h = jnp.maximum(h + s3_ref[...], 0.0)                        # (n3, 128) f32

    # ---- fc1 as a 3x4 "conv": ONE fused K=1536 bf16 MXU matmul (weights were
    # permuted at prep time to match PyTorch's NCHW .view(B,-1) flatten). ----
    a = stack_taps(h, R, _taps(3, 4))                            # (R, 1536) bf16
    h = jnp.dot(a, wf1_ref[...], preferred_element_type=jnp.float32)
    h = jnp.maximum(h + bf1_ref[...], 0.0)                       # (R, 256) f32
    # TODO(synk): Dropout(0.3) is identity here (eval-mode inference semantics).

    # ---- Compact the `batch` real rows (row b*GRID) with a tiny selection
    # matmul (no sublane shuffles; every row of h is finite so 0-weights are
    # safe), then fc2 and ONE aligned lane-dense (out_rows, 128) store. ----
    bi = jax.lax.broadcasted_iota(jnp.int32, (out_rows, R), 0)
    ri = jax.lax.broadcasted_iota(jnp.int32, (out_rows, R), 1)
    sel = ((ri == bi * GRID) & (bi < batch)).astype(jnp.float32)  # (out_rows, R)
    rows = jnp.dot(sel, h, preferred_element_type=jnp.float32)    # (out_rows, 256)
    q = jnp.dot(rows.astype(jnp.bfloat16), wf2_ref[...],
                preferred_element_type=jnp.float32) + bf2_ref[...]
    o_ref[...] = q


def _vmem_spec(shape):
    return pl.BlockSpec(shape, lambda *_: (0,) * len(shape),
                        memory_space=pltpu.MemorySpace.VMEM)


# -----------------------------------------------------------------------------
# Wrapper: tiny input prep + single pallas_call + output slice
# -----------------------------------------------------------------------------
def dqn_apply(prepped, x, *, num_actions):
    B, C, H, W = x.shape
    assert (C, H, W) == (1, 6, 7), "architecture requires (B, 1, 6, 7) input"
    R, n3, n2, n1 = _row_counts(B)
    out_rows = max(8, -(-B // 8) * 8)          # sublane-padded output rows

    # NCHW (B,1,6,7) -> zero-padded 8x9 grid -> flat vector with a zero tail
    # long enough for every conv1 tap read of every computed row.
    xg = jnp.pad(x[:, 0, :, :].astype(jnp.float32), ((0, 0), (1, 1), (1, 1)))
    xflat = jnp.pad(xg.reshape(R), (0, n1 + 24 - R))
    # Wrapper-side 9-tap stack (im2col of the single input channel), padded to
    # 16 lanes so conv1 is a single small MXU matmul inside the kernel.
    cols = [xflat[o:o + n1] for o in _taps(3, 3)]
    cols += [jnp.zeros((n1,), jnp.float32)] * (16 - len(cols))
    x_tap = jnp.stack(cols, axis=1)                              # (n1, 16) f32

    args = (x_tap, prepped["w1"], prepped["s1"], prepped["w2"], prepped["s2"],
            prepped["w3"], prepped["s3"], prepped["wf1"], prepped["bf1"],
            prepped["wf2"], prepped["bf2"])

    flops = 2 * (n1 * 16 * 128 + n2 * 1152 * 128 + n3 * 512 * 128
                 + R * 1536 * 256 + out_rows * R * 256 + out_rows * 256 * NPAD)
    bytes_accessed = (sum(a.size * a.dtype.itemsize for a in args)
                      + out_rows * NPAD * 4)

    out = pl.pallas_call(
        functools.partial(_dqn_kernel, batch=B, out_rows=out_rows),
        out_shape=jax.ShapeDtypeStruct((out_rows, NPAD), jnp.float32),
        in_specs=[_vmem_spec(a.shape) for a in args],
        out_specs=_vmem_spec((out_rows, NPAD)),
        cost_estimate=pl.CostEstimate(flops=int(flops), transcendentals=0,
                                      bytes_accessed=int(bytes_accessed)),
    )(*args)
    # TODO(synk): for large B, add a 1-D "parallel" grid over row blocks (with
    # halo rows) so v7x's second TensorCore is used; at B=2 one invocation
    # with all weights VMEM-resident is optimal.
    return out[:B, :num_actions]


# -----------------------------------------------------------------------------
# One-time parameter preparation (BN fold, tap-major 2-D weights, bf16 storage)
# -----------------------------------------------------------------------------
def prepare_params(p, eps=EPS):
    f32, bf16 = jnp.float32, jnp.bfloat16

    def fold(w, b, g, be, m, v):
        # Eval-mode BN fold:  (conv(x,w)+b - m)/sqrt(v+eps)*g + be
        #                  == conv(x, w*s) + shift,   s = g/sqrt(v+eps)
        s = g / jnp.sqrt(v + eps)
        shift = (be + (b - m) * s).reshape(1, -1).astype(f32)
        co, ci, kh, kw = w.shape
        wt = (w * s[:, None, None, None]).transpose(2, 3, 1, 0)   # (kh,kw,ci,co)
        return wt.reshape(kh * kw * ci, co).astype(f32), shift

    # conv1 (1->64): tap-major rows padded 9->16, out channels padded 64->128
    # so all later lane-concat pieces are full 128-lane tiles.
    w1r, s1r = fold(p["w1"], p["b1"], p["g1"], p["be1"], p["m1"], p["v1"])
    w1 = jnp.zeros((16, 128), f32).at[:9, :64].set(w1r)
    s1 = jnp.zeros((1, 128), f32).at[:, :64].set(s1r)

    # conv2 (64->128): rows re-indexed to the 128-wide (zero-padded) h1.
    w2r, s2 = fold(p["w2"], p["b2"], p["g2"], p["be2"], p["m2"], p["v2"])
    w2 = jnp.zeros((9, 128, 128), f32).at[:, :64, :].set(w2r.reshape(9, 64, 128))
    w2 = w2.reshape(9 * 128, 128).astype(bf16)                   # (1152, 128)

    # conv3 (128->128)
    w3r, s3 = fold(p["w3"], p["b3"], p["g3"], p["be3"], p["m3"], p["v3"])
    w3 = w3r.astype(bf16)                                        # (512, 128)

    # fc1: torch weight (256, 1536), input feature index = c*12 + i*4 + j.
    # Reorder to tap-major ((i*4+j)*128 + c, 256) so fc1 is a 3x4 "conv".
    wf1 = (p["fw1"].reshape(256, 128, 3, 4).transpose(2, 3, 1, 0)
           .reshape(12 * 128, 256)).astype(bf16)
    bf1 = p["fb1"].reshape(1, 256).astype(f32)

    # fc2: (num_actions, 256) -> lane-padded (256, 128).
    na = p["fw2"].shape[0]
    wf2 = jnp.zeros((256, NPAD), f32).at[:, :na].set(p["fw2"].T).astype(bf16)
    bf2 = jnp.zeros((1, NPAD), f32).at[:, :na].set(p["fb2"].reshape(1, -1))

    prepped = dict(w1=w1, s1=s1, w2=w2, s2=s2, w3=w3, s3=s3,
                   wf1=wf1, bf1=bf1, wf2=wf2, bf2=bf2)
    return prepped, na


# -----------------------------------------------------------------------------
# Deterministic parameter initialization (shapes from DQN.__init__)
# -----------------------------------------------------------------------------
def init_params(key, in_channels=1, num_actions=7):
    ks = jax.random.split(key, 16)
    p = {}

    def nrm(k, shape, s=0.05):
        return jax.random.normal(k, shape, jnp.float32) * s

    p["w1"] = nrm(ks[0], (64, in_channels, 3, 3))
    p["b1"] = nrm(ks[1], (64,))
    p["g1"] = 1.0 + nrm(ks[2], (64,))
    p["be1"] = nrm(ks[3], (64,))
    p["m1"] = nrm(ks[4], (64,))
    p["v1"] = 1.0 + jnp.abs(nrm(ks[5], (64,)))

    p["w2"] = nrm(ks[6], (128, 64, 3, 3), 0.02)
    p["b2"] = nrm(ks[7], (128,))
    p["g2"] = 1.0 + nrm(ks[8], (128,))
    p["be2"] = nrm(ks[9], (128,))
    p["m2"] = nrm(ks[10], (128,))
    p["v2"] = 1.0 + jnp.abs(nrm(ks[11], (128,)))

    kc = jax.random.split(ks[12], 6)
    p["w3"] = nrm(kc[0], (128, 128, 2, 2), 0.02)
    p["b3"] = nrm(kc[1], (128,))
    p["g3"] = 1.0 + nrm(kc[2], (128,))
    p["be3"] = nrm(kc[3], (128,))
    p["m3"] = nrm(kc[4], (128,))
    p["v3"] = 1.0 + jnp.abs(nrm(kc[5], (128,)))

    kf = jax.random.split(ks[13], 4)
    p["fw1"] = nrm(kf[0], (256, 128 * 3 * 4), 0.02)   # PyTorch (out, in)
    p["fb1"] = nrm(kf[1], (256,))
    p["fw2"] = nrm(kf[2], (num_actions, 256), 0.05)
    p["fb2"] = nrm(kf[3], (num_actions,))
    return p


# -----------------------------------------------------------------------------
# Pure-JAX reference (eval-mode PyTorch semantics) for a tolerance check
# -----------------------------------------------------------------------------
def dqn_reference(p, x, eps=EPS):
    def conv_bn_relu(x, w, b, g, be, m, v, pad):
        y = jax.lax.conv_general_dilated(
            x, w, window_strides=(1, 1), padding=((pad, pad), (pad, pad)),
            dimension_numbers=("NCHW", "OIHW", "NCHW"))
        y = y + b[None, :, None, None]
        y = ((y - m[None, :, None, None])
             / jnp.sqrt(v[None, :, None, None] + eps)
             * g[None, :, None, None] + be[None, :, None, None])
        return jnp.maximum(y, 0.0)

    x = conv_bn_relu(x, p["w1"], p["b1"], p["g1"], p["be1"], p["m1"], p["v1"], 1)
    x = conv_bn_relu(x, p["w2"], p["b2"], p["g2"], p["be2"], p["m2"], p["v2"], 0)
    x = conv_bn_relu(x, p["w3"], p["b3"], p["g3"], p["be3"], p["m3"], p["v3"], 0)
    x = x.reshape(x.shape[0], -1)                                 # NCHW flatten
    x = jnp.maximum(x @ p["fw1"].T + p["fb1"], 0.0)
    return x @ p["fw2"].T + p["fb2"]


if __name__ == "__main__":
    key = jax.random.PRNGKey(0)
    k_param, k_in = jax.random.split(key)
    params = init_params(k_param, in_channels=1, num_actions=7)

    # Input (NCHW): architecture requires 6x7 spatial so the flatten is 128*3*4.
    x = jax.random.normal(k_in, (2, 1, 6, 7), jnp.float32)

    prepped, num_actions = prepare_params(params)          # one-time prep
    fwd = jax.jit(functools.partial(dqn_apply, num_actions=num_actions))

    out = jax.block_until_ready(fwd(prepped, x))
    assert out.shape == (2, 7), out.shape
    assert bool(jnp.all(jnp.isfinite(out)))

    # Tolerance check against the pure-JAX f32 reference.  Verifies BN fold,
    # the fused tap-stacked matmul indexing and the fc1 flatten permutation;
    # the 2e-2 tolerance covers bf16 weight/activation storage on the MXU path
    # (accumulation stays f32); any structural bug produces O(0.1) errors.
    ref = dqn_reference(params, x)
    err = float(jnp.max(jnp.abs(out - ref)))
    assert jnp.allclose(out, ref, atol=2e-2, rtol=2e-2), err

    print("KERNEL_OK")
</pallas_src>

<mosaic_0001>
module attributes {stable_mosaic.version = 11 : i64} {
  func.func @_dqn_kernel(%arg0: memref<208x16xf32, #tpu.memory_space<vmem>>, %arg1: memref<16x128xf32, #tpu.memory_space<vmem>>, %arg2: memref<1x128xf32, #tpu.memory_space<vmem>>, %arg3: memref<1152x128xbf16, #tpu.memory_space<vmem>>, %arg4: memref<1x128xf32, #tpu.memory_space<vmem>>, %arg5: memref<512x128xbf16, #tpu.memory_space<vmem>>, %arg6: memref<1x128xf32, #tpu.memory_space<vmem>>, %arg7: memref<1536x256xbf16, #tpu.memory_space<vmem>>, %arg8: memref<1x256xf32, #tpu.memory_space<vmem>>, %arg9: memref<256x128xbf16, #tpu.memory_space<vmem>>, %arg10: memref<1x128xf32, #tpu.memory_space<vmem>>, %arg11: memref<8x128xf32, #tpu.memory_space<vmem>>) attributes {dimension_semantics = [], scalar_prefetch = 0 : i64, scratch_operands = 0 : i64, tpu.core_type = #tpu.core_type<tc>} {
    %c0 = arith.constant 0 : index
    %c0_0 = arith.constant 0 : index
    %0 = vector.load %arg0[%c0, %c0_0] : memref<208x16xf32, #tpu.memory_space<vmem>>, vector<208x16xf32>
    %c0_1 = arith.constant 0 : index
    %c0_2 = arith.constant 0 : index
    %1 = vector.load %arg1[%c0_1, %c0_2] : memref<16x128xf32, #tpu.memory_space<vmem>>, vector<16x128xf32>
    %cst = arith.constant dense<0.000000e+00> : vector<208x128xf32>
    %2 = tpu.matmul %0, %1, %cst {dimension_numbers = #tpu.dot_dimension_numbers<[1], [0], [0], [1], [0, 0, 1, 1], [], []>} : vector<208x16xf32>, vector<16x128xf32>, vector<208x128xf32> -> vector<208x128xf32>
    %c0_3 = arith.constant 0 : index
    %c0_4 = arith.constant 0 : index
    %3 = vector.load %arg2[%c0_3, %c0_4] : memref<1x128xf32, #tpu.memory_space<vmem>>, vector<1x128xf32>
    %4 = vector.broadcast %3 : vector<1x128xf32> to vector<208x128xf32>
    %5 = arith.addf %2, %4 : vector<208x128xf32>
    %cst_5 = arith.constant 0.000000e+00 : f32
    %6 = vector.broadcast %cst_5 : f32 to vector<208x128xf32>
    %7 = arith.maximumf %5, %6 : vector<208x128xf32>
    %8 = vector.extract_strided_slice %7 {offsets = [0, 0], sizes = [184, 128], strides = [1, 1]} : vector<208x128xf32> to vector<184x128xf32>
    %9 = arith.truncf %8 : vector<184x128xf32> to vector<184x128xbf16>
    %10 = vector.extract_strided_slice %7 {offsets = [1, 0], sizes = [184, 128], strides = [1, 1]} : vector<208x128xf32> to vector<184x128xf32>
    %11 = arith.truncf %10 : vector<184x128xf32> to vector<184x128xbf16>
    %12 = vector.extract_strided_slice %7 {offsets = [2, 0], sizes = [184, 128], strides = [1, 1]} : vector<208x128xf32> to vector<184x128xf32>
    %13 = arith.truncf %12 : vector<184x128xf32> to vector<184x128xbf16>
    %14 = vector.extract_strided_slice %7 {offsets = [9, 0], sizes = [184, 128], strides = [1, 1]} : vector<208x128xf32> to vector<184x128xf32>
    %15 = arith.truncf %14 : vector<184x128xf32> to vector<184x128xbf16>
    %16 = vector.extract_strided_slice %7 {offsets = [10, 0], sizes = [184, 128], strides = [1, 1]} : vector<208x128xf32> to vector<184x128xf32>
    %17 = arith.truncf %16 : vector<184x128xf32> to vector<184x128xbf16>
    %18 = vector.extract_strided_slice %7 {offsets = [11, 0], sizes = [184, 128], strides = [1, 1]} : vector<208x128xf32> to vector<184x128xf32>
    %19 = arith.truncf %18 : vector<184x128xf32> to vector<184x128xbf16>
    %20 = vector.extract_strided_slice %7 {offsets = [18, 0], sizes = [184, 128], strides = [1, 1]} : vector<208x128xf32> to vector<184x128xf32>
    %21 = arith.truncf %20 : vector<184x128xf32> to vector<184x128xbf16>
    %22 = vector.extract_strided_slice %7 {offsets = [19, 0], sizes = [184, 128], strides = [1, 1]} : vector<208x128xf32> to vector<184x128xf32>
    %23 = arith.truncf %22 : vector<184x128xf32> to vector<184x128xbf16>
    %24 = vector.extract_strided_slice %7 {offsets = [20, 0], sizes = [184, 128], strides = [1, 1]} : vector<208x128xf32> to vector<184x128xf32>
    %25 = arith.truncf %24 : vector<184x128xf32> to vector<184x128xbf16>
    %26 = tpu.concatenate %9, %11, %13, %15, %17, %19, %21, %23, %25 in 1 : vector<184x128xbf16>, vector<184x128xbf16>, vector<184x128xbf16>, vector<184x128xbf16>, vector<184x128xbf16>, vector<184x128xbf16>, vector<184x128xbf16>, vector<184x128xbf16>, vector<184x128xbf16> -> vector<184x1152xbf16>
    %c0_6 = arith.constant 0 : index
    %c0_7 = arith.constant 0 : index
    %27 = vector.load %arg3[%c0_6, %c0_7] : memref<1152x128xbf16, #tpu.memory_space<vmem>>, vector<1152x128xbf16>
    %cst_8 = arith.constant dense<0.000000e+00> : vector<184x128xf32>
    %28 = tpu.matmul %26, %27, %cst_8 {dimension_numbers = #tpu.dot_dimension_numbers<[1], [0], [0], [1], [0, 0, 1, 1], [], []>} : vector<184x1152xbf16>, vector<1152x128xbf16>, vector<184x128xf32> -> vector<184x128xf32>
    %c0_9 = arith.constant 0 : index
    %c0_10 = arith.constant 0 : index
    %29 = vector.load %arg4[%c0_9, %c0_10] : memref<1x128xf32, #tpu.memory_space<vmem>>, vector<1x128xf32>
    %30 = vector.broadcast %29 : vector<1x128xf32> to vector<184x128xf32>
    %31 = arith.addf %28, %30 : vector<184x128xf32>
    %cst_11 = arith.constant 0.000000e+00 : f32
    %32 = vector.broadcast %cst_11 : f32 to vector<184x128xf32>
    %33 = arith.maximumf %31, %32 : vector<184x128xf32>
    %34 = vector.extract_strided_slice %33 {offsets = [0, 0], sizes = [168, 128], strides = [1, 1]} : vector<184x128xf32> to vector<168x128xf32>
    %35 = arith.truncf %34 : vector<168x128xf32> to vector<168x128xbf16>
    %36 = vector.extract_strided_slice %33 {offsets = [1, 0], sizes = [168, 128], strides = [1, 1]} : vector<184x128xf32> to vector<168x128xf32>
    %37 = arith.truncf %36 : vector<168x128xf32> to vector<168x128xbf16>
    %38 = vector.extract_strided_slice %33 {offsets = [9, 0], sizes = [168, 128], strides = [1, 1]} : vector<184x128xf32> to vector<168x128xf32>
    %39 = arith.truncf %38 : vector<168x128xf32> to vector<168x128xbf16>
    %40 = vector.extract_strided_slice %33 {offsets = [10, 0], sizes = [168, 128], strides = [1, 1]} : vector<184x128xf32> to vector<168x128xf32>
    %41 = arith.truncf %40 : vector<168x128xf32> to vector<168x128xbf16>
    %42 = tpu.concatenate %35, %37, %39, %41 in 1 : vector<168x128xbf16>, vector<168x128xbf16>, vector<168x128xbf16>, vector<168x128xbf16> -> vector<168x512xbf16>
    %c0_12 = arith.constant 0 : index
    %c0_13 = arith.constant 0 : index
    %43 = vector.load %arg5[%c0_12, %c0_13] : memref<512x128xbf16, #tpu.memory_space<vmem>>, vector<512x128xbf16>
    %cst_14 = arith.constant dense<0.000000e+00> : vector<168x128xf32>
    %44 = tpu.matmul %42, %43, %cst_14 {dimension_numbers = #tpu.dot_dimension_numbers<[1], [0], [0], [1], [0, 0, 1, 1], [], []>} : vector<168x512xbf16>, vector<512x128xbf16>, vector<168x128xf32> -> vector<168x128xf32>
    %c0_15 = arith.constant 0 : index
    %c0_16 = arith.constant 0 : index
    %45 = vector.load %arg6[%c0_15, %c0_16] : memref<1x128xf32, #tpu.memory_space<vmem>>, vector<1x128xf32>
    %46 = vector.broadcast %45 : vector<1x128xf32> to vector<168x128xf32>
    %47 = arith.addf %44, %46 : vector<168x128xf32>
    %cst_17 = arith.constant 0.000000e+00 : f32
    %48 = vector.broadcast %cst_17 : f32 to vector<168x128xf32>
    %49 = arith.maximumf %47, %48 : vector<168x128xf32>
    %50 = vector.extract_strided_slice %49 {offsets = [0, 0], sizes = [144, 128], strides = [1, 1]} : vector<168x128xf32> to vector<144x128xf32>
    %51 = arith.truncf %50 : vector<144x128xf32> to vector<144x128xbf16>
    %52 = vector.extract_strided_slice %49 {offsets = [1, 0], sizes = [144, 128], strides = [1, 1]} : vector<168x128xf32> to vector<144x128xf32>
    %53 = arith.truncf %52 : vector<144x128xf32> to vector<144x128xbf16>
    %54 = vector.extract_strided_slice %49 {offsets = [2, 0], sizes = [144, 128], strides = [1, 1]} : vector<168x128xf32> to vector<144x128xf32>
    %55 = arith.truncf %54 : vector<144x128xf32> to vector<144x128xbf16>
    %56 = vector.extract_strided_slice %49 {offsets = [3, 0], sizes = [144, 128], strides = [1, 1]} : vector<168x128xf32> to vector<144x128xf32>
    %57 = arith.truncf %56 : vector<144x128xf32> to vector<144x128xbf16>
    %58 = vector.extract_strided_slice %49 {offsets = [9, 0], sizes = [144, 128], strides = [1, 1]} : vector<168x128xf32> to vector<144x128xf32>
    %59 = arith.truncf %58 : vector<144x128xf32> to vector<144x128xbf16>
    %60 = vector.extract_strided_slice %49 {offsets = [10, 0], sizes = [144, 128], strides = [1, 1]} : vector<168x128xf32> to vector<144x128xf32>
    %61 = arith.truncf %60 : vector<144x128xf32> to vector<144x128xbf16>
    %62 = vector.extract_strided_slice %49 {offsets = [11, 0], sizes = [144, 128], strides = [1, 1]} : vector<168x128xf32> to vector<144x128xf32>
    %63 = arith.truncf %62 : vector<144x128xf32> to vector<144x128xbf16>
    %64 = vector.extract_strided_slice %49 {offsets = [12, 0], sizes = [144, 128], strides = [1, 1]} : vector<168x128xf32> to vector<144x128xf32>
    %65 = arith.truncf %64 : vector<144x128xf32> to vector<144x128xbf16>
    %66 = vector.extract_strided_slice %49 {offsets = [18, 0], sizes = [144, 128], strides = [1, 1]} : vector<168x128xf32> to vector<144x128xf32>
    %67 = arith.truncf %66 : vector<144x128xf32> to vector<144x128xbf16>
    %68 = vector.extract_strided_slice %49 {offsets = [19, 0], sizes = [144, 128], strides = [1, 1]} : vector<168x128xf32> to vector<144x128xf32>
    %69 = arith.truncf %68 : vector<144x128xf32> to vector<144x128xbf16>
    %70 = vector.extract_strided_slice %49 {offsets = [20, 0], sizes = [144, 128], strides = [1, 1]} : vector<168x128xf32> to vector<144x128xf32>
    %71 = arith.truncf %70 : vector<144x128xf32> to vector<144x128xbf16>
    %72 = vector.extract_strided_slice %49 {offsets = [21, 0], sizes = [144, 128], strides = [1, 1]} : vector<168x128xf32> to vector<144x128xf32>
    %73 = arith.truncf %72 : vector<144x128xf32> to vector<144x128xbf16>
    %74 = tpu.concatenate %51, %53, %55, %57, %59, %61, %63, %65, %67, %69, %71, %73 in 1 : vector<144x128xbf16>, vector<144x128xbf16>, vector<144x128xbf16>, vector<144x128xbf16>, vector<144x128xbf16>, vector<144x128xbf16>, vector<144x128xbf16>, vector<144x128xbf16>, vector<144x128xbf16>, vector<144x128xbf16>, vector<144x128xbf16>, vector<144x128xbf16> -> vector<144x1536xbf16>
    %c0_18 = arith.constant 0 : index
    %c0_19 = arith.constant 0 : index
    %75 = vector.load %arg7[%c0_18, %c0_19] : memref<1536x256xbf16, #tpu.memory_space<vmem>>, vector<1536x256xbf16>
    %cst_20 = arith.constant dense<0.000000e+00> : vector<144x256xf32>
    %76 = tpu.matmul %74, %75, %cst_20 {dimension_numbers = #tpu.dot_dimension_numbers<[1], [0], [0], [1], [0, 0, 1, 1], [], []>} : vector<144x1536xbf16>, vector<1536x256xbf16>, vector<144x256xf32> -> vector<144x256xf32>
    %c0_21 = arith.constant 0 : index
    %c0_22 = arith.constant 0 : index
    %77 = vector.load %arg8[%c0_21, %c0_22] : memref<1x256xf32, #tpu.memory_space<vmem>>, vector<1x256xf32>
    %78 = vector.broadcast %77 : vector<1x256xf32> to vector<144x256xf32>
    %79 = arith.addf %76, %78 : vector<144x256xf32>
    %cst_23 = arith.constant 0.000000e+00 : f32
    %80 = vector.broadcast %cst_23 : f32 to vector<144x256xf32>
    %81 = arith.maximumf %79, %80 : vector<144x256xf32>
    %82 = tpu.iota {dimensions = array<i32: 0>} : vector<8x144xi32>
    %83 = tpu.iota {dimensions = array<i32: 1>} : vector<8x144xi32>
    %c72_i32 = arith.constant 72 : i32
    %84 = vector.broadcast %c72_i32 : i32 to vector<8x144xi32>
    %85 = arith.muli %82, %84 : vector<8x144xi32>
    %86 = arith.cmpi eq, %83, %85 : vector<8x144xi32>
    %c2_i32 = arith.constant 2 : i32
    %87 = vector.broadcast %c2_i32 : i32 to vector<8x144xi32>
    %88 = arith.cmpi slt, %82, %87 : vector<8x144xi32>
    %89 = arith.andi %86, %88 : vector<8x144xi1>
    %90 = arith.extui %89 : vector<8x144xi1> to vector<8x144xi32>
    %91 = arith.sitofp %90 : vector<8x144xi32> to vector<8x144xf32>
    %cst_24 = arith.constant dense<0.000000e+00> : vector<8x256xf32>
    %92 = tpu.matmul %91, %81, %cst_24 {dimension_numbers = #tpu.dot_dimension_numbers<[1], [0], [0], [1], [0, 0, 1, 1], [], []>} : vector<8x144xf32>, vector<144x256xf32>, vector<8x256xf32> -> vector<8x256xf32>
    %93 = arith.truncf %92 : vector<8x256xf32> to vector<8x256xbf16>
    %c0_25 = arith.constant 0 : index
    %c0_26 = arith.constant 0 : index
    %94 = vector.load %arg9[%c0_25, %c0_26] : memref<256x128xbf16, #tpu.memory_space<vmem>>, vector<256x128xbf16>
    %cst_27 = arith.constant dense<0.000000e+00> : vector<8x128xf32>
    %95 = tpu.matmul %93, %94, %cst_27 {dimension_numbers = #tpu.dot_dimension_numbers<[1], [0], [0], [1], [0, 0, 1, 1], [], []>} : vector<8x256xbf16>, vector<256x128xbf16>, vector<8x128xf32> -> vector<8x128xf32>
    %c0_28 = arith.constant 0 : index
    %c0_29 = arith.constant 0 : index
    %96 = vector.load %arg10[%c0_28, %c0_29] : memref<1x128xf32, #tpu.memory_space<vmem>>, vector<1x128xf32>
    %97 = vector.broadcast %96 : vector<1x128xf32> to vector<8x128xf32>
    %98 = arith.addf %95, %97 : vector<8x128xf32>
    %c0_30 = arith.constant 0 : index
    %c0_31 = arith.constant 0 : index
    %99 = vector.load %arg11[%c0_30, %c0_31] : memref<8x128xf32, #tpu.memory_space<vmem>>, vector<8x128xf32>
    tpu.vector_store %arg11[%c0_30, %c0_31], %98 {strides = array<i32>} : memref<8x128xf32, #tpu.memory_space<vmem>>, vector<8x128xf32>,
    return
  }
}

</mosaic_0001>

<llo_original>
// kernel: dqn_apply.1
$region0: #{dqn_apply.1}
  #allocation0 [shape = 'u32[]', space=smem, size = 0x4, offset = 0x4, fixed_abs, tag = 'smem constant byte address 0x4 - core index']
  #allocation1 [shape = 'u32[144,128]{1,0:T(1,128)}', space=vmem, size = 0x12000, scoped, tag = 'internal scratch']
  %s0 = inlined_call_operand.vmem [shape: f32[208,16], index: 0, kind: input, shape index: {}]
  %s1 = inlined_call_operand.vmem [shape: f32[16,128], index: 1, kind: input, shape index: {}]
  %s2 = inlined_call_operand.vmem [shape: f32[1,128], index: 2, kind: input, shape index: {}]
  %s3 = inlined_call_operand.hbm [shape: bf16[1152,128], index: 3, kind: input, shape index: {}]
  %s4 = inlined_call_operand.vmem [shape: f32[1,128], index: 4, kind: input, shape index: {}]
  %s5 = inlined_call_operand.vmem [shape: bf16[512,128], index: 5, kind: input, shape index: {}]
  %s6 = inlined_call_operand.vmem [shape: f32[1,128], index: 6, kind: input, shape index: {}]
  %s7 = inlined_call_operand.hbm [shape: bf16[1536,256], index: 7, kind: input, shape index: {}]
  %s8 = inlined_call_operand.vmem [shape: f32[1,256], index: 8, kind: input, shape index: {}]
  %s9 = inlined_call_operand.vmem [shape: bf16[256,128], index: 9, kind: input, shape index: {}]
  %s10 = inlined_call_operand.vmem [shape: f32[1,128], index: 10, kind: input, shape index: {}]
  %s11 = inlined_call_operand.vmem [shape: f32[8,128], index: 11, kind: output, shape index: {}]
  %s12 = sld [smem:[#allocation0]]
  $region62: #{dqn_apply.1} parent=0
    _
  %s14 = ssub.s32 1, %s12
  %s15 = scalar_select 0, %s14, %s12
  $region1: #{dqn_apply.1} parent=0
    #allocation2 [shape = 'u8[294912]{0}', space=vmem, size = 0x48000, scoped, tag = 'input window, operand 3, single buffered']
    #allocation3 [shape = 's32[1]{0}', space=sflag, size = 0x4, scoped, tag = 'scoped memory for dqn_apply.1']
    #allocation4 [shape = 'u8[786432]{0}', space=vmem, size = 0xc0000, scoped, tag = 'input window, operand 7, single buffered']
    #allocation5 [shape = 's32[1]{0}', space=sflag, size = 0x4, scoped, tag = 'scoped memory for dqn_apply.1']
    %16 = vsyncpa [#allocation3], 0
    %17 = vsyncpa [#allocation5], 0
    // Predicated region
    $region2: #{dqn_apply.1} parent=1 // pred_check
      _
    $region3: #{dqn_apply.1} parent=1 // pred_check_branch
      %19 = sbr.rel (0) target = $region5
    $region4: #{dqn_apply.1} parent=1 // pred_region
      _
    $region5: #{dqn_apply.1} parent=1 // pred_fallthru
      _
    // Predicated region
    $region6: #{dqn_apply.1} parent=1 // pred_check
      _
    $region7: #{dqn_apply.1} parent=1 // pred_check_branch
      %21 = sbr.rel (0) target = $region9
    $region8: #{dqn_apply.1} parent=1 // pred_region
      _
    $region9: #{dqn_apply.1} parent=1 // pred_fallthru
      _
    // Predicated region
    $region10: #{dqn_apply.1} parent=1 // pred_check
      _
    $region11: #{dqn_apply.1} parent=1 // pred_check_branch
      %23 = sbr.rel (0) target = $region13
    $region12: #{dqn_apply.1} parent=1 // pred_region
      _
    $region13: #{dqn_apply.1} parent=1 // pred_fallthru
      _
    // Predicated region
    $region14: #{dqn_apply.1} parent=1 // pred_check
      _
    $region15: #{dqn_apply.1} parent=1 // pred_check_branch
      %25 = sbr.rel (0) target = $region17
    $region16: #{dqn_apply.1} parent=1 // pred_region
      %s27 = ssub.s32 9216, 9216
      %28 = vsyncadd [#allocation3], %s27
      %s29 = sshll.u32 [#allocation2], 4
      %s30 = int_to_ptr.vmem [resolvable:$true] %s29
      %35 = dma.hbm_to_vmem [thread:$0]  %s3, 9216, %s30, [#allocation3], 64, 64, 4
    $region17: #{dqn_apply.1} parent=1 // pred_fallthru
      _
    // Predicated region
    $region18: #{dqn_apply.1} parent=1 // pred_check
      _
    $region19: #{dqn_apply.1} parent=1 // pred_check_branch
      %37 = sbr.rel (0) target = $region21
    $region20: #{dqn_apply.1} parent=1 // pred_region
      _
    $region21: #{dqn_apply.1} parent=1 // pred_fallthru
      _
    // Predicated region
    $region22: #{dqn_apply.1} parent=1 // pred_check
      _
    $region23: #{dqn_apply.1} parent=1 // pred_check_branch
      %39 = sbr.rel (0) target = $region25
    $region24: #{dqn_apply.1} parent=1 // pred_region
      _
    $region25: #{dqn_apply.1} parent=1 // pred_fallthru
      _
    // Predicated region
    $region26: #{dqn_apply.1} parent=1 // pred_check
      _
    $region27: #{dqn_apply.1} parent=1 // pred_check_branch
      %41 = sbr.rel (0) target = $region29
    $region28: #{dqn_apply.1} parent=1 // pred_region
      _
    $region29: #{dqn_apply.1} parent=1 // pred_fallthru
      _
    // Predicated region
    $region30: #{dqn_apply.1} parent=1 // pred_check
      _
    $region31: #{dqn_apply.1} parent=1 // pred_check_branch
      %43 = sbr.rel (0) target = $region33
    $region32: #{dqn_apply.1} parent=1 // pred_region
      %s45 = ssub.s32 24576, 24576
      %46 = vsyncadd [#allocation5], %s45
      %s47 = sshll.u32 [#allocation4], 4
      %s48 = int_to_ptr.vmem [resolvable:$true] %s47
      %53 = dma.hbm_to_vmem [thread:$0]  %s7, 24576, %s48, [#allocation5], 128, 128, 8
    $region33: #{dqn_apply.1} parent=1 // pred_fallthru
      _
    // Predicated region
    $region34: #{dqn_apply.1} parent=1 // pred_check
      _
    $region35: #{dqn_apply.1} parent=1 // pred_check_branch
      %55 = sbr.rel (0) target = $region37
    $region36: #{dqn_apply.1} parent=1 // pred_region
      _
    $region37: #{dqn_apply.1} parent=1 // pred_fallthru
      _
    // Predicated region
    $region38: #{dqn_apply.1} parent=1 // pred_check
      _
    $region39: #{dqn_apply.1} parent=1 // pred_check_branch
      %57 = sbr.rel (0) target = $region41
    $region40: #{dqn_apply.1} parent=1 // pred_region
      _
    $region41: #{dqn_apply.1} parent=1 // pred_fallthru
      _
    // Predicated region
    $region42: #{dqn_apply.1} parent=1 // pred_check
      _
    $region43: #{dqn_apply.1} parent=1 // pred_check_branch
      %59 = sbr.rel (0) target = $region45
    $region44: #{dqn_apply.1} parent=1 // pred_region
      _
    $region45: #{dqn_apply.1} parent=1 // pred_fallthru
      _
    // Predicated region
    $region46: #{dqn_apply.1} parent=1 // pred_check
      _
    $region47: #{dqn_apply.1} parent=1 // pred_check_branch
      %61 = sbr.rel (0) target = $region49
    $region48: #{dqn_apply.1} parent=1 // pred_region
      %62 = dma.done [#allocation3], 9216
    $region49: #{dqn_apply.1} parent=1 // pred_fallthru
      _
    // Predicated region
    $region50: #{dqn_apply.1} parent=1 // pred_check
      _
    $region51: #{dqn_apply.1} parent=1 // pred_check_branch
      %64 = sbr.rel (0) target = $region53
    $region52: #{dqn_apply.1} parent=1 // pred_region
      %65 = dma.done [#allocation5], 24576
    $region53: #{dqn_apply.1} parent=1 // pred_fallthru
      _
    %v67 = vld [vmem:[%s0] sm:$0xff]
    %v68 = vld [vmem:[%s0 + $0x8] sm:$0xff]
    %v69 = vld [vmem:[%s0 + $0x10] sm:$0xff]
    %v70 = vld [vmem:[%s0 + $0x18] sm:$0xff]
    %v71 = vld [vmem:[%s0 + $0x20] sm:$0xff]
    %v72 = vld [vmem:[%s0 + $0x28] sm:$0xff]
    %v73 = vld [vmem:[%s0 + $0x30] sm:$0xff]
    %v74 = vld [vmem:[%s0 + $0x38] sm:$0xff]
    %v75 = vld [vmem:[%s0 + $0x40] sm:$0xff]
    %v76 = vld [vmem:[%s0 + $0x48] sm:$0xff]
    %v77 = vld [vmem:[%s0 + $0x50] sm:$0xff]
    %v78 = vld [vmem:[%s0 + $0x58] sm:$0xff]
    %v79 = vld [vmem:[%s0 + $0x60] sm:$0xff]
    %v80 = vld [vmem:[%s0 + $0x68] sm:$0xff]
    %v81 = vld [vmem:[%s0 + $0x70] sm:$0xff]
    %v82 = vld [vmem:[%s0 + $0x78] sm:$0xff]
    %v83 = vld [vmem:[%s0 + $0x80] sm:$0xff]
    %v84 = vld [vmem:[%s0 + $0x88] sm:$0xff]
    %v85 = vld [vmem:[%s0 + $0x90] sm:$0xff]
    %v86 = vld [vmem:[%s0 + $0x98] sm:$0xff]
    %v87 = vld [vmem:[%s0 + $0xa0] sm:$0xff]
    %v88 = vld [vmem:[%s0 + $0xa8] sm:$0xff]
    %v89 = vld [vmem:[%s0 + $0xb0] sm:$0xff]
    %v90 = vld [vmem:[%s0 + $0xb8] sm:$0xff]
    %v91 = vld [vmem:[%s0 + $0xc0] sm:$0xff]
    %v92 = vld [vmem:[%s0 + $0xc8] sm:$0xff]
    %v93 = vld [vmem:[%s1] sm:$0xff]
    %v94 = vld [vmem:[%s1 + $0x8] sm:$0xff]
    %v95 = vld [vmem:[%s2] sm:$0x1]
    %v97 = vlaneseq
    %v98 = vshrl.u32 %v97, 7
    %v99 = vsub.s32 0, %v98
    %v100 = vrot.slane %v95, %v99
    %vm102 = vcmask 130048
    %v104 = vsel %vm102, %v67, 0
    %v107 = vsel %vm102, %v68, 0
    %v110 = vsel %vm102, %v69, 0
    %v113 = vsel %vm102, %v70, 0
    %v116 = vsel %vm102, %v71, 0
    %v119 = vsel %vm102, %v72, 0
    %v122 = vsel %vm102, %v73, 0
    %v125 = vsel %vm102, %v74, 0
    %v128 = vsel %vm102, %v75, 0
    %v131 = vsel %vm102, %v76, 0
    %v134 = vsel %vm102, %v77, 0
    %v137 = vsel %vm102, %v78, 0
    %v140 = vsel %vm102, %v79, 0
    %v143 = vsel %vm102, %v80, 0
    %v146 = vsel %vm102, %v81, 0
    %v149 = vsel %vm102, %v82, 0
    %v152 = vsel %vm102, %v83, 0
    %v155 = vsel %vm102, %v84, 0
    %v158 = vsel %vm102, %v85, 0
    %v161 = vsel %vm102, %v86, 0
    %v164 = vsel %vm102, %v87, 0
    %v167 = vsel %vm102, %v88, 0
    %v170 = vsel %vm102, %v89, 0
    %v173 = vsel %vm102, %v90, 0
    %v176 = vsel %vm102, %v91, 0
    %v179 = vsel %vm102, %v92, 0
    %181 = vmatprep.subr.mxu0 0.0
    %182 = vmatpush1.msra.mxu0 0.0
    %183 = vmatprep.subr.mxu0 0.0
    %184 = vmatpush1.msra.mxu0 0.0
    %185 = vmatprep.subr.mxu0 0.0
    %186 = vmatpush1.msra.mxu0 0.0
    %187 = vmatprep.subr.mxu0 0.0
    %188 = vmatpush1.msra.mxu0 0.0
    %189 = vmatprep.subr.mxu0 0.0
    %190 = vmatpush1.msra.mxu0 0.0
    %191 = vmatprep.subr.mxu0 0.0
    %192 = vmatpush1.msra.mxu0 0.0
    %193 = vmatprep.subr.mxu0 0.0
    %194 = vmatpush1.msra.mxu0 0.0
    %195 = vmatprep.subr.mxu0 0.0
    %196 = vmatpush1.msra.mxu0 0.0
    %197 = vmatprep.subr.mxu0 0.0
    %198 = vmatpush1.msra.mxu0 0.0
    %199 = vmatprep.subr.mxu0 0.0
    %200 = vmatpush1.msra.mxu0 0.0
    %201 = vmatprep.subr.mxu0 0.0
    %202 = vmatpush1.msra.mxu0 0.0
    %203 = vmatprep.subr.mxu0 0.0
    %204 = vmatpush1.msra.mxu0 0.0
    %205 = vmatprep.subr.mxu0 0.0
    %206 = vmatpush1.msra.mxu0 0.0
    %207 = vmatprep.subr.mxu0 0.0
    %208 = vmatpush1.msra.mxu0 0.0
    %209 = vmatprep.subr.mxu0 0.0
    %210 = vmatpush1.msra.mxu0 %v94
    %211 = vmatprep.subr.mxu0 0.0
    %212 = vmatpush1.msra.mxu0 %v93
    %213 = vmatprep.subr.mxu0 0.0
    %214 = vmatpush2.msra.mxu0 0.0
    %215 = vmatprep.subr.mxu0 0.0
    %216 = vmatpush2.msra.mxu0 0.0
    %217 = vmatprep.subr.mxu0 0.0
    %218 = vmatpush2.msra.mxu0 0.0
    %219 = vmatprep.subr.mxu0 0.0
    %220 = vmatpush2.msra.mxu0 0.0
    %221 = vmatprep.subr.mxu0 0.0
    %222 = vmatpush2.msra.mxu0 0.0
    %223 = vmatprep.subr.mxu0 0.0
    %224 = vmatpush2.msra.mxu0 0.0
    %225 = vmatprep.subr.mxu0 0.0
    %226 = vmatpush2.msra.mxu0 0.0
    %227 = vmatprep.subr.mxu0 0.0
    %228 = vmatpush2.msra.mxu0 0.0
    %229 = vmatprep.subr.mxu0 0.0
    %230 = vmatpush2.msra.mxu0 0.0
    %231 = vmatprep.subr.mxu0 0.0
    %232 = vmatpush2.msra.mxu0 0.0
    %233 = vmatprep.subr.mxu0 0.0
    %234 = vmatpush2.msra.mxu0 0.0
    %235 = vmatprep.subr.mxu0 0.0
    %236 = vmatpush2.msra.mxu0 0.0
    %237 = vmatprep.subr.mxu0 0.0
    %238 = vmatpush2.msra.mxu0 0.0
    %239 = vmatprep.subr.mxu0 0.0
    %240 = vmatpush2.msra.mxu0 0.0
    %241 = vmatprep.subr.mxu0 0.0
    %242 = vmatpush2.msra.mxu0 0.0
    %243 = vmatprep.subr.mxu0 0.0
    %244 = vmatpush2.msra.mxu0 0.0
    %245 = vmatprep.mubr.f32.mxu0 0.0
    %246 = vmatmul.mubr.f32.gmra.mxu0 %v104
    %v247 = vpop.f32.mrf.mxu0
    %v248 = vadd.f32 %v100, %v247
    %v249 = vpop.f32.mrf.mxu0
    %250 = vmatprep.mubr.f32.mxu0 0.0
    %251 = vmatmul.mubr.f32.gmra.mxu0 %v107
    %v252 = vpop.f32.mrf.mxu0
    %v253 = vadd.f32 %v100, %v252
    %v254 = vpop.f32.mrf.mxu0
    %255 = vmatprep.mubr.f32.mxu0 0.0
    %256 = vmatmul.mubr.f32.gmra.mxu0 %v110
    %v257 = vpop.f32.mrf.mxu0
    %v258 = vadd.f32 %v100, %v257
    %v259 = vpop.f32.mrf.mxu0
    %260 = vmatprep.mubr.f32.mxu0 0.0
    %261 = vmatmul.mubr.f32.gmra.mxu0 %v113
    %v262 = vpop.f32.mrf.mxu0
    %v263 = vadd.f32 %v100, %v262
    %v264 = vpop.f32.mrf.mxu0
    %265 = vmatprep.mubr.f32.mxu0 0.0
    %266 = vmatmul.mubr.f32.gmra.mxu0 %v116
    %v267 = vpop.f32.mrf.mxu0
    %v268 = vadd.f32 %v100, %v267
    %v269 = vpop.f32.mrf.mxu0
    %270 = vmatprep.mubr.f32.mxu0 0.0
    %271 = vmatmul.mubr.f32.gmra.mxu0 %v119
    %v272 = vpop.f32.mrf.mxu0
    %v273 = vadd.f32 %v100, %v272
    %v274 = vpop.f32.mrf.mxu0
    %275 = vmatprep.mubr.f32.mxu0 0.0
    %276 = vmatmul.mubr.f32.gmra.mxu0 %v122
    %v277 = vpop.f32.mrf.mxu0
    %v278 = vadd.f32 %v100, %v277
    %v279 = vpop.f32.mrf.mxu0
    %280 = vmatprep.mubr.f32.mxu0 0.0
    %281 = vmatmul.mubr.f32.gmra.mxu0 %v125
    %v282 = vpop.f32.mrf.mxu0
    %v283 = vadd.f32 %v100, %v282
    %v284 = vpop.f32.mrf.mxu0
    %285 = vmatprep.mubr.f32.mxu0 0.0
    %286 = vmatmul.mubr.f32.gmra.mxu0 %v128
    %v287 = vpop.f32.mrf.mxu0
    %v288 = vadd.f32 %v100, %v287
    %v289 = vpop.f32.mrf.mxu0
    %290 = vmatprep.mubr.f32.mxu0 0.0
    %291 = vmatmul.mubr.f32.gmra.mxu0 %v131
    %v292 = vpop.f32.mrf.mxu0
    %v293 = vadd.f32 %v100, %v292
    %v294 = vpop.f32.mrf.mxu0
    %295 = vmatprep.mubr.f32.mxu0 0.0
    %296 = vmatmul.mubr.f32.gmra.mxu0 %v134
    %v297 = vpop.f32.mrf.mxu0
    %v298 = vadd.f32 %v100, %v297
    %v299 = vpop.f32.mrf.mxu0
    %300 = vmatprep.mubr.f32.mxu0 0.0
    %301 = vmatmul.mubr.f32.gmra.mxu0 %v137
    %v302 = vpop.f32.mrf.mxu0
    %v303 = vadd.f32 %v100, %v302
    %v304 = vpop.f32.mrf.mxu0
    %305 = vmatprep.mubr.f32.mxu0 0.0
    %306 = vmatmul.mubr.f32.gmra.mxu0 %v140
    %v307 = vpop.f32.mrf.mxu0
    %v308 = vadd.f32 %v100, %v307
    %v309 = vpop.f32.mrf.mxu0
    %310 = vmatprep.mubr.f32.mxu0 0.0
    %311 = vmatmul.mubr.f32.gmra.mxu0 %v143
    %v312 = vpop.f32.mrf.mxu0
    %v313 = vadd.f32 %v100, %v312
    %v314 = vpop.f32.mrf.mxu0
    %315 = vmatprep.mubr.f32.mxu0 0.0
    %316 = vmatmul.mubr.f32.gmra.mxu0 %v146
    %v317 = vpop.f32.mrf.mxu0
    %v318 = vadd.f32 %v100, %v317
    %v319 = vpop.f32.mrf.mxu0
    %320 = vmatprep.mubr.f32.mxu0 0.0
    %321 = vmatmul.mubr.f32.gmra.mxu0 %v149
    %v322 = vpop.f32.mrf.mxu0
    %v323 = vadd.f32 %v100, %v322
    %v324 = vpop.f32.mrf.mxu0
    %325 = vmatprep.mubr.f32.mxu0 0.0
    %326 = vmatmul.mubr.f32.gmra.mxu0 %v152
    %v327 = vpop.f32.mrf.mxu0
    %v328 = vadd.f32 %v100, %v327
    %v329 = vpop.f32.mrf.mxu0
    %330 = vmatprep.mubr.f32.mxu0 0.0
    %331 = vmatmul.mubr.f32.gmra.mxu0 %v155
    %v332 = vpop.f32.mrf.mxu0
    %v333 = vadd.f32 %v100, %v332
    %v334 = vpop.f32.mrf.mxu0
    %335 = vmatprep.mubr.f32.mxu0 0.0
    %336 = vmatmul.mubr.f32.gmra.mxu0 %v158
    %v337 = vpop.f32.mrf.mxu0
    %v338 = vadd.f32 %v100, %v337
    %v339 = vpop.f32.mrf.mxu0
    %340 = vmatprep.mubr.f32.mxu0 0.0
    %341 = vmatmul.mubr.f32.gmra.mxu0 %v161
    %v342 = vpop.f32.mrf.mxu0
    %v343 = vadd.f32 %v100, %v342
    %v344 = vpop.f32.mrf.mxu0
    %345 = vmatprep.mubr.f32.mxu0 0.0
    %346 = vmatmul.mubr.f32.gmra.mxu0 %v164
    %v347 = vpop.f32.mrf.mxu0
    %v348 = vadd.f32 %v100, %v347
    %v349 = vpop.f32.mrf.mxu0
    %350 = vmatprep.mubr.f32.mxu0 0.0
    %351 = vmatmul.mubr.f32.gmra.mxu0 %v167
    %v352 = vpop.f32.mrf.mxu0
    %v353 = vadd.f32 %v100, %v352
    %v354 = vpop.f32.mrf.mxu0
    %355 = vmatprep.mubr.f32.mxu0 0.0
    %356 = vmatmul.mubr.f32.gmra.mxu0 %v170
    %v357 = vpop.f32.mrf.mxu0
    %v358 = vadd.f32 %v100, %v357
    %v359 = vpop.f32.mrf.mxu0
    %360 = vmatprep.mubr.f32.mxu0 0.0
    %361 = vmatmul.mubr.f32.gmra.mxu0 %v173
    %v362 = vpop.f32.mrf.mxu0
    %v363 = vadd.f32 %v100, %v362
    %v364 = vpop.f32.mrf.mxu0
    %365 = vmatprep.mubr.f32.mxu0 0.0
    %366 = vmatmul.mubr.f32.gmra.mxu0 %v176
    %v367 = vpop.f32.mrf.mxu0
    %v368 = vadd.f32 %v100, %v367
    %v369 = vpop.f32.mrf.mxu0
    %370 = vmatprep.mubr.f32.mxu0 0.0
    %371 = vmatmul.mubr.f32.gmra.mxu0 %v179
    %v372 = vpop.f32.mrf.mxu0
    %v373 = vadd.f32 %v100, %v372
    %v374 = vpop.f32.mrf.mxu0
    %375 = vdwg.mxu0
    %v376 = vmax.f32 %v248, 0.0
    %v377 = vmax.f32 %v253, 0.0
    %v378 = vmax.f32 %v258, 0.0
    %v379 = vmax.f32 %v263, 0.0
    %v380 = vmax.f32 %v268, 0.0
    %v381 = vmax.f32 %v273, 0.0
    %v382 = vmax.f32 %v278, 0.0
    %v383 = vmax.f32 %v283, 0.0
    %v384 = vmax.f32 %v288, 0.0
    %v385 = vmax.f32 %v293, 0.0
    %v386 = vmax.f32 %v298, 0.0
    %v387 = vmax.f32 %v303, 0.0
    %v388 = vmax.f32 %v308, 0.0
    %v389 = vmax.f32 %v313, 0.0
    %v390 = vmax.f32 %v318, 0.0
    %v391 = vmax.f32 %v323, 0.0
    %v392 = vmax.f32 %v328, 0.0
    %v393 = vmax.f32 %v333, 0.0
    %v394 = vmax.f32 %v338, 0.0
    %v395 = vmax.f32 %v343, 0.0
    %v396 = vmax.f32 %v348, 0.0
    %v397 = vmax.f32 %v353, 0.0
    %v398 = vmax.f32 %v358, 0.0
    %v399 = vmax.f32 %v363, 0.0
    %v400 = vmax.f32 %v368, 0.0
    %v401 = vmax.f32 %v373, 0.0
    %v402 = vpack.c.bf16 %v377, %v376
    %v403 = vpack.c.bf16 %v379, %v378
    %v404 = vpack.c.bf16 %v381, %v380
    %v405 = vpack.c.bf16 %v383, %v382
    %v406 = vpack.c.bf16 %v385, %v384
    %v407 = vpack.c.bf16 %v387, %v386
    %v408 = vpack.c.bf16 %v389, %v388
    %v409 = vpack.c.bf16 %v391, %v390
    %v410 = vpack.c.bf16 %v393, %v392
    %v411 = vpack.c.bf16 %v395, %v394
    %v412 = vpack.c.bf16 %v397, %v396
    %v413 = vpack.c.bf16 %v398, %v398
    %v414 = vpack.c.bf16 %v399, %v398
    %v415 = vpack.c.bf16 %v378, %v377
    %v416 = vpack.c.bf16 %v380, %v379
    %v417 = vpack.c.bf16 %v382, %v381
    %v418 = vpack.c.bf16 %v384, %v383
    %v419 = vpack.c.bf16 %v386, %v385
    %v420 = vpack.c.bf16 %v388, %v387
    %v421 = vpack.c.bf16 %v390, %v389
    %v422 = vpack.c.bf16 %v392, %v391
    %v423 = vpack.c.bf16 %v394, %v393
    %v424 = vpack.c.bf16 %v396, %v395
    %v425 = vpack.c.bf16 %v398, %v397
    %v426 = vpack.c.bf16 %v400, %v399
    %v427 = vpack.c.bf16 %v401, %v400
    %vm428 = vsmask.f32 7424
    %v430 = vshrl.u32 %v402, 16
    %v432 = vshll.u32 %v402, 16
    %v434 = vrot.slane %v432, 1
    %v435 = vor.u32 %v430, %v434
    %v437 = vshll.u32 %v403, 16
    %v439 = vrot.slane %v437, 1
    %v440 = vsel %vm428, %v435, %v439
    %v441 = vshrl.u32 %v403, 16
    %v443 = vor.u32 %v441, %v439
    %v445 = vshll.u32 %v404, 16
    %v447 = vrot.slane %v445, 1
    %v448 = vsel %vm428, %v443, %v447
    %v449 = vshrl.u32 %v404, 16
    %v451 = vor.u32 %v449, %v447
    %v453 = vshll.u32 %v405, 16
    %v455 = vrot.slane %v453, 1
    %v456 = vsel %vm428, %v451, %v455
    %v457 = vshrl.u32 %v405, 16
    %v459 = vor.u32 %v457, %v455
    %v461 = vshll.u32 %v406, 16
    %v463 = vrot.slane %v461, 1
    %v464 = vsel %vm428, %v459, %v463
    %v465 = vshrl.u32 %v406, 16
    %v467 = vor.u32 %v465, %v463
    %v469 = vshll.u32 %v407, 16
    %v471 = vrot.slane %v469, 1
    %v472 = vsel %vm428, %v467, %v471
    %v473 = vshrl.u32 %v407, 16
    %v475 = vor.u32 %v473, %v471
    %v477 = vshll.u32 %v408, 16
    %v479 = vrot.slane %v477, 1
    %v480 = vsel %vm428, %v475, %v479
    %v481 = vshrl.u32 %v408, 16
    %v483 = vor.u32 %v481, %v479
    %v485 = vshll.u32 %v409, 16
    %v487 = vrot.slane %v485, 1
    %v488 = vsel %vm428, %v483, %v487
    %v489 = vshrl.u32 %v409, 16
    %v491 = vor.u32 %v489, %v487
    %v493 = vshll.u32 %v410, 16
    %v495 = vrot.slane %v493, 1
    %v496 = vsel %vm428, %v491, %v495
    %v497 = vshrl.u32 %v410, 16
    %v499 = vor.u32 %v497, %v495
    %v501 = vshll.u32 %v411, 16
    %v503 = vrot.slane %v501, 1
    %v504 = vsel %vm428, %v499, %v503
    %v505 = vshrl.u32 %v411, 16
    %v507 = vor.u32 %v505, %v503
    %v509 = vshll.u32 %v412, 16
    %v511 = vrot.slane %v509, 1
    %v512 = vsel %vm428, %v507, %v511
    %v513 = vshrl.u32 %v412, 16
    %v515 = vor.u32 %v513, %v511
    %v517 = vshll.u32 %v414, 16
    %v519 = vrot.slane %v517, 1
    %v520 = vsel %vm428, %v515, %v519
    %v521 = vshrl.u32 %v414, 16
    %v523 = vor.u32 %v521, %v519
    %vm548 = vcmask 1046528
    %v549 = vrot.slane %v402, 1
    %v550 = vrot.slane %v403, 1
    %v551 = vsel %vm548, %v549, %v550
    %v552 = vrot.slane %v404, 1
    %v553 = vsel %vm548, %v550, %v552
    %v554 = vrot.slane %v405, 1
    %v555 = vsel %vm548, %v552, %v554
    %v556 = vrot.slane %v406, 1
    %v557 = vsel %vm548, %v554, %v556
    %v558 = vrot.slane %v407, 1
    %v559 = vsel %vm548, %v556, %v558
    %v560 = vrot.slane %v408, 1
    %v561 = vsel %vm548, %v558, %v560
    %v562 = vrot.slane %v409, 1
    %v563 = vsel %vm548, %v560, %v562
    %v564 = vrot.slane %v410, 1
    %v565 = vsel %vm548, %v562, %v564
    %v566 = vrot.slane %v411, 1
    %v567 = vsel %vm548, %v564, %v566
    %v568 = vrot.slane %v412, 1
    %v569 = vsel %vm548, %v566, %v568
    %v570 = vrot.slane %v414, 1
    %v571 = vsel %vm548, %v568, %v570
    %v585 = vshrl.u32 %v415, 16
    %v587 = vshll.u32 %v415, 16
    %v589 = vrot.slane %v587, 1
    %v590 = vor.u32 %v585, %v589
    %v592 = vshll.u32 %v416, 16
    %v594 = vrot.slane %v592, 1
    %v595 = vsel %vm428, %v590, %v594
    %v596 = vshrl.u32 %v416, 16
    %v598 = vor.u32 %v596, %v594
    %v600 = vshll.u32 %v417, 16
    %v602 = vrot.slane %v600, 1
    %v603 = vsel %vm428, %v598, %v602
    %v604 = vshrl.u32 %v417, 16
    %v606 = vor.u32 %v604, %v602
    %v608 = vshll.u32 %v418, 16
    %v610 = vrot.slane %v608, 1
    %v611 = vsel %vm428, %v606, %v610
    %v612 = vshrl.u32 %v418, 16
    %v614 = vor.u32 %v612, %v610
    %v616 = vshll.u32 %v419, 16
    %v618 = vrot.slane %v616, 1
    %v619 = vsel %vm428, %v614, %v618
    %v620 = vshrl.u32 %v419, 16
    %v622 = vor.u32 %v620, %v618
    %v624 = vshll.u32 %v420, 16
    %v626 = vrot.slane %v624, 1
    %v627 = vsel %vm428, %v622, %v626
    %v628 = vshrl.u32 %v420, 16
    %v630 = vor.u32 %v628, %v626
    %v632 = vshll.u32 %v421, 16
    %v634 = vrot.slane %v632, 1
    %v635 = vsel %vm428, %v630, %v634
    %v636 = vshrl.u32 %v421, 16
    %v638 = vor.u32 %v636, %v634
    %v640 = vshll.u32 %v422, 16
    %v642 = vrot.slane %v640, 1
    %v643 = vsel %vm428, %v638, %v642
    %v644 = vshrl.u32 %v422, 16
    %v646 = vor.u32 %v644, %v642
    %v648 = vshll.u32 %v423, 16
    %v650 = vrot.slane %v648, 1
    %v651 = vsel %vm428, %v646, %v650
    %v652 = vshrl.u32 %v423, 16
    %v654 = vor.u32 %v652, %v650
    %v656 = vshll.u32 %v424, 16
    %v658 = vrot.slane %v656, 1
    %v659 = vsel %vm428, %v654, %v658
    %v660 = vshrl.u32 %v424, 16
    %v662 = vor.u32 %v660, %v658
    %v664 = vshll.u32 %v425, 16
    %v666 = vrot.slane %v664, 1
    %v667 = vsel %vm428, %v662, %v666
    %v668 = vshrl.u32 %v425, 16
    %v670 = vor.u32 %v668, %v666
    %v672 = vshll.u32 %v426, 16
    %v674 = vrot.slane %v672, 1
    %v675 = vsel %vm428, %v670, %v674
    %v676 = vshrl.u32 %v426, 16
    %v678 = vor.u32 %v676, %v674
    %v703 = vrot.slane %v415, 1
    %v704 = vrot.slane %v416, 1
    %v705 = vsel %vm548, %v703, %v704
    %v706 = vrot.slane %v417, 1
    %v707 = vsel %vm548, %v704, %v706
    %v708 = vrot.slane %v418, 1
    %v709 = vsel %vm548, %v706, %v708
    %v710 = vrot.slane %v419, 1
    %v711 = vsel %vm548, %v708, %v710
    %v712 = vrot.slane %v420, 1
    %v713 = vsel %vm548, %v710, %v712
    %v714 = vrot.slane %v421, 1
    %v715 = vsel %vm548, %v712, %v714
    %v716 = vrot.slane %v422, 1
    %v717 = vsel %vm548, %v714, %v716
    %v718 = vrot.slane %v423, 1
    %v719 = vsel %vm548, %v716, %v718
    %v720 = vrot.slane %v424, 1
    %v721 = vsel %vm548, %v718, %v720
    %v722 = vrot.slane %v425, 1
    %v723 = vsel %vm548, %v720, %v722
    %v724 = vrot.slane %v426, 1
    %v725 = vsel %vm548, %v722, %v724
    %vm738 = vsmask.f32 6400
    %v739 = vrot.slane %v585, 1
    %v740 = vrot.slane %v587, 2
    %v741 = vor.u32 %v739, %v740
    %v742 = vrot.slane %v596, 1
    %v743 = vrot.slane %v592, 2
    %v744 = vor.u32 %v742, %v743
    %v745 = vsel %vm738, %v741, %v744
    %v746 = vrot.slane %v604, 1
    %v747 = vrot.slane %v600, 2
    %v748 = vor.u32 %v746, %v747
    %v749 = vsel %vm738, %v744, %v748
    %v750 = vrot.slane %v612, 1
    %v751 = vrot.slane %v608, 2
    %v752 = vor.u32 %v750, %v751
    %v753 = vsel %vm738, %v748, %v752
    %v754 = vrot.slane %v620, 1
    %v755 = vrot.slane %v616, 2
    %v756 = vor.u32 %v754, %v755
    %v757 = vsel %vm738, %v752, %v756
    %v758 = vrot.slane %v628, 1
    %v759 = vrot.slane %v624, 2
    %v760 = vor.u32 %v758, %v759
    %v761 = vsel %vm738, %v756, %v760
    %v762 = vrot.slane %v636, 1
    %v763 = vrot.slane %v632, 2
    %v764 = vor.u32 %v762, %v763
    %v765 = vsel %vm738, %v760, %v764
    %v766 = vrot.slane %v644, 1
    %v767 = vrot.slane %v640, 2
    %v768 = vor.u32 %v766, %v767
    %v769 = vsel %vm738, %v764, %v768
    %v770 = vrot.slane %v652, 1
    %v771 = vrot.slane %v648, 2
    %v772 = vor.u32 %v770, %v771
    %v773 = vsel %vm738, %v768, %v772
    %v774 = vrot.slane %v660, 1
    %v775 = vrot.slane %v656, 2
    %v776 = vor.u32 %v774, %v775
    %v777 = vsel %vm738, %v772, %v776
    %v778 = vrot.slane %v668, 1
    %v779 = vrot.slane %v664, 2
    %v780 = vor.u32 %v778, %v779
    %v781 = vsel %vm738, %v776, %v780
    %v782 = vrot.slane %v676, 1
    %v783 = vrot.slane %v672, 2
    %v784 = vor.u32 %v782, %v783
    %v785 = vsel %vm738, %v780, %v784
    %v799 = vrot.slane %v427, 1
    %v800 = vsel %vm548, %v570, %v799
    %v803 = vrot.slane %v441, 1
    %v804 = vrot.slane %v437, 2
    %v805 = vor.u32 %v803, %v804
    %v806 = vrot.slane %v449, 1
    %v807 = vrot.slane %v445, 2
    %v808 = vor.u32 %v806, %v807
    %v809 = vsel %vm738, %v805, %v808
    %v810 = vrot.slane %v457, 1
    %v811 = vrot.slane %v453, 2
    %v812 = vor.u32 %v810, %v811
    %v813 = vsel %vm738, %v808, %v812
    %v814 = vrot.slane %v465, 1
    %v815 = vrot.slane %v461, 2
    %v816 = vor.u32 %v814, %v815
    %v817 = vsel %vm738, %v812, %v816
    %v818 = vrot.slane %v473, 1
    %v819 = vrot.slane %v469, 2
    %v820 = vor.u32 %v818, %v819
    %v821 = vsel %vm738, %v816, %v820
    %v822 = vrot.slane %v481, 1
    %v823 = vrot.slane %v477, 2
    %v824 = vor.u32 %v822, %v823
    %v825 = vsel %vm738, %v820, %v824
    %v826 = vrot.slane %v489, 1
    %v827 = vrot.slane %v485, 2
    %v828 = vor.u32 %v826, %v827
    %v829 = vsel %vm738, %v824, %v828
    %v830 = vrot.slane %v497, 1
    %v831 = vrot.slane %v493, 2
    %v832 = vor.u32 %v830, %v831
    %v833 = vsel %vm738, %v828, %v832
    %v834 = vrot.slane %v505, 1
    %v835 = vrot.slane %v501, 2
    %v836 = vor.u32 %v834, %v835
    %v837 = vsel %vm738, %v832, %v836
    %v838 = vrot.slane %v513, 1
    %v839 = vrot.slane %v509, 2
    %v840 = vor.u32 %v838, %v839
    %v841 = vsel %vm738, %v836, %v840
    %v842 = vrot.slane %v521, 1
    %v843 = vrot.slane %v517, 2
    %v844 = vor.u32 %v842, %v843
    %v845 = vsel %vm738, %v840, %v844
    %v847 = vshrl.u32 %v427, 16
    %v849 = vrot.slane %v847, 1
    %v850 = vshll.u32 %v427, 16
    %v852 = vrot.slane %v850, 2
    %v853 = vor.u32 %v849, %v852
    %v854 = vsel %vm738, %v844, %v853
    %vm867 = vcmask 1045504
    %v868 = vrot.slane %v403, 2
    %v869 = vrot.slane %v404, 2
    %v870 = vsel %vm867, %v868, %v869
    %v871 = vrot.slane %v405, 2
    %v872 = vsel %vm867, %v869, %v871
    %v873 = vrot.slane %v406, 2
    %v874 = vsel %vm867, %v871, %v873
    %v875 = vrot.slane %v407, 2
    %v876 = vsel %vm867, %v873, %v875
    %v877 = vrot.slane %v408, 2
    %v878 = vsel %vm867, %v875, %v877
    %v879 = vrot.slane %v409, 2
    %v880 = vsel %vm867, %v877, %v879
    %v881 = vrot.slane %v410, 2
    %v882 = vsel %vm867, %v879, %v881
    %v883 = vrot.slane %v411, 2
    %v884 = vsel %vm867, %v881, %v883
    %v885 = vrot.slane %v412, 2
    %v886 = vsel %vm867, %v883, %v885
    %v887 = vrot.slane %v414, 2
    %v888 = vsel %vm867, %v885, %v887
    %v889 = vrot.slane %v427, 2
    %v890 = vsel %vm867, %v887, %v889
    %v903 = vld [vmem:[#allocation2] sm:$0xf]
    %v904 = vld [vmem:[#allocation2 + $0x4] sm:$0xf]
    %v905 = vld [vmem:[#allocation2 + $0x8] sm:$0xf]
    %v906 = vld [vmem:[#allocation2 + $0xc] sm:$0xf]
    %v907 = vld [vmem:[#allocation2 + $0x10] sm:$0xf]
    %v908 = vld [vmem:[#allocation2 + $0x14] sm:$0xf]
    %v909 = vld [vmem:[#allocation2 + $0x18] sm:$0xf]
    %v910 = vld [vmem:[#allocation2 + $0x1c] sm:$0xf]
    %v911 = vld [vmem:[#allocation2 + $0x20] sm:$0xf]
    %v912 = vld [vmem:[#allocation2 + $0x24] sm:$0xf]
    %v913 = vld [vmem:[#allocation2 + $0x28] sm:$0xf]
    %v914 = vld [vmem:[#allocation2 + $0x2c] sm:$0xf]
    %v915 = vld [vmem:[#allocation2 + $0x30] sm:$0xf]
    %v916 = vld [vmem:[#allocation2 + $0x34] sm:$0xf]
    %v917 = vld [vmem:[#allocation2 + $0x38] sm:$0xf]
    %v918 = vld [vmem:[#allocation2 + $0x3c] sm:$0xf]
    %v919 = vld [vmem:[#allocation2 + $0x40] sm:$0xf]
    %v920 = vld [vmem:[#allocation2 + $0x44] sm:$0xf]
    %v921 = vld [vmem:[#allocation2 + $0x48] sm:$0xf]
    %v922 = vld [vmem:[#allocation2 + $0x4c] sm:$0xf]
    %v923 = vld [vmem:[#allocation2 + $0x50] sm:$0xf]
    %v924 = vld [vmem:[#allocation2 + $0x54] sm:$0xf]
    %v925 = vld [vmem:[#allocation2 + $0x58] sm:$0xf]
    %v926 = vld [vmem:[#allocation2 + $0x5c] sm:$0xf]
    %v927 = vld [vmem:[#allocation2 + $0x60] sm:$0xf]
    %v928 = vld [vmem:[#allocation2 + $0x64] sm:$0xf]
    %v929 = vld [vmem:[#allocation2 + $0x68] sm:$0xf]
    %v930 = vld [vmem:[#allocation2 + $0x6c] sm:$0xf]
    %v931 = vld [vmem:[#allocation2 + $0x70] sm:$0xf]
    %v932 = vld [vmem:[#allocation2 + $0x74] sm:$0xf]
    %v933 = vld [vmem:[#allocation2 + $0x78] sm:$0xf]
    %v934 = vld [vmem:[#allocation2 + $0x7c] sm:$0xf]
    %v935 = vld [vmem:[#allocation2 + $0x80] sm:$0xf]
    %v936 = vld [vmem:[#allocation2 + $0x84] sm:$0xf]
    %v937 = vld [vmem:[#allocation2 + $0x88] sm:$0xf]
    %v938 = vld [vmem:[#allocation2 + $0x8c] sm:$0xf]
    %v939 = vld [vmem:[#allocation2 + $0x90] sm:$0xf]
    %v940 = vld [vmem:[#allocation2 + $0x94] sm:$0xf]
    %v941 = vld [vmem:[#allocation2 + $0x98] sm:$0xf]
    %v942 = vld [vmem:[#allocation2 + $0x9c] sm:$0xf]
    %v943 = vld [vmem:[#allocation2 + $0xa0] sm:$0xf]
    %v944 = vld [vmem:[#allocation2 + $0xa4] sm:$0xf]
    %v945 = vld [vmem:[#allocation2 + $0xa8] sm:$0xf]
    %v946 = vld [vmem:[#allocation2 + $0xac] sm:$0xf]
    %v947 = vld [vmem:[#allocation2 + $0xb0] sm:$0xf]
    %v948 = vld [vmem:[#allocation2 + $0xb4] sm:$0xf]
    %v949 = vld [vmem:[#allocation2 + $0xb8] sm:$0xf]
    %v950 = vld [vmem:[#allocation2 + $0xbc] sm:$0xf]
    %v951 = vld [vmem:[#allocation2 + $0xc0] sm:$0xf]
    %v952 = vld [vmem:[#allocation2 + $0xc4] sm:$0xf]
    %v953 = vld [vmem:[#allocation2 + $0xc8] sm:$0xf]
    %v954 = vld [vmem:[#allocation2 + $0xcc] sm:$0xf]
    %v955 = vld [vmem:[#allocation2 + $0xd0] sm:$0xf]
    %v956 = vld [vmem:[#allocation2 + $0xd4] sm:$0xf]
    %v957 = vld [vmem:[#allocation2 + $0xd8] sm:$0xf]
    %v958 = vld [vmem:[#allocation2 + $0xdc] sm:$0xf]
    %v959 = vld [vmem:[#allocation2 + $0xe0] sm:$0xf]
    %v960 = vld [vmem:[#allocation2 + $0xe4] sm:$0xf]
    %v961 = vld [vmem:[#allocation2 + $0xe8] sm:$0xf]
    %v962 = vld [vmem:[#allocation2 + $0xec] sm:$0xf]
    %v963 = vld [vmem:[#allocation2 + $0xf0] sm:$0xf]
    %v964 = vld [vmem:[#allocation2 + $0xf4] sm:$0xf]
    %v965 = vld [vmem:[#allocation2 + $0xf8] sm:$0xf]
    %v966 = vld [vmem:[#allocation2 + $0xfc] sm:$0xf]
    %v967 = vld [vmem:[#allocation2 + $0x100] sm:$0xf]
    %v968 = vld [vmem:[#allocation2 + $0x104] sm:$0xf]
    %v969 = vld [vmem:[#allocation2 + $0x108] sm:$0xf]
    %v970 = vld [vmem:[#allocation2 + $0x10c] sm:$0xf]
    %v971 = vld [vmem:[#allocation2 + $0x110] sm:$0xf]
    %v972 = vld [vmem:[#allocation2 + $0x114] sm:$0xf]
    %v973 = vld [vmem:[#allocation2 + $0x118] sm:$0xf]
    %v974 = vld [vmem:[#allocation2 + $0x11c] sm:$0xf]
    %v975 = vld [vmem:[#allocation2 + $0x120] sm:$0xf]
    %v976 = vld [vmem:[#allocation2 + $0x124] sm:$0xf]
    %v977 = vld [vmem:[#allocation2 + $0x128] sm:$0xf]
    %v978 = vld [vmem:[#allocation2 + $0x12c] sm:$0xf]
    %v979 = vld [vmem:[#allocation2 + $0x130] sm:$0xf]
    %v980 = vld [vmem:[#allocation2 + $0x134] sm:$0xf]
    %v981 = vld [vmem:[#allocation2 + $0x138] sm:$0xf]
    %v982 = vld [vmem:[#allocation2 + $0x13c] sm:$0xf]
    %v983 = vld [vmem:[#allocation2 + $0x140] sm:$0xf]
    %v984 = vld [vmem:[#allocation2 + $0x144] sm:$0xf]
    %v985 = vld [vmem:[#allocation2 + $0x148] sm:$0xf]
    %v986 = vld [vmem:[#allocation2 + $0x14c] sm:$0xf]
    %v987 = vld [vmem:[#allocation2 + $0x150] sm:$0xf]
    %v988 = vld [vmem:[#allocation2 + $0x154] sm:$0xf]
    %v989 = vld [vmem:[#allocation2 + $0x158] sm:$0xf]
    %v990 = vld [vmem:[#allocation2 + $0x15c] sm:$0xf]
    %v991 = vld [vmem:[#allocation2 + $0x160] sm:$0xf]
    %v992 = vld [vmem:[#allocation2 + $0x164] sm:$0xf]
    %v993 = vld [vmem:[#allocation2 + $0x168] sm:$0xf]
    %v994 = vld [vmem:[#allocation2 + $0x16c] sm:$0xf]
    %v995 = vld [vmem:[#allocation2 + $0x170] sm:$0xf]
    %v996 = vld [vmem:[#allocation2 + $0x174] sm:$0xf]
    %v997 = vld [vmem:[#allocation2 + $0x178] sm:$0xf]
    %v998 = vld [vmem:[#allocation2 + $0x17c] sm:$0xf]
    %v999 = vld [vmem:[#allocation2 + $0x180] sm:$0xf]
    %v1000 = vld [vmem:[#allocation2 + $0x184] sm:$0xf]
    %v1001 = vld [vmem:[#allocation2 + $0x188] sm:$0xf]
    %v1002 = vld [vmem:[#allocation2 + $0x18c] sm:$0xf]
    %v1003 = vld [vmem:[#allocation2 + $0x190] sm:$0xf]
    %v1004 = vld [vmem:[#allocation2 + $0x194] sm:$0xf]
    %v1005 = vld [vmem:[#allocation2 + $0x198] sm:$0xf]
    %v1006 = vld [vmem:[#allocation2 + $0x19c] sm:$0xf]
    %v1007 = vld [vmem:[#allocation2 + $0x1a0] sm:$0xf]
    %v1008 = vld [vmem:[#allocation2 + $0x1a4] sm:$0xf]
    %v1009 = vld [vmem:[#allocation2 + $0x1a8] sm:$0xf]
    %v1010 = vld [vmem:[#allocation2 + $0x1ac] sm:$0xf]
    %v1011 = vld [vmem:[#allocation2 + $0x1b0] sm:$0xf]
    %v1012 = vld [vmem:[#allocation2 + $0x1b4] sm:$0xf]
    %v1013 = vld [vmem:[#allocation2 + $0x1b8] sm:$0xf]
    %v1014 = vld [vmem:[#allocation2 + $0x1bc] sm:$0xf]
    %v1015 = vld [vmem:[#allocation2 + $0x1c0] sm:$0xf]
    %v1016 = vld [vmem:[#allocation2 + $0x1c4] sm:$0xf]
    %v1017 = vld [vmem:[#allocation2 + $0x1c8] sm:$0xf]
    %v1018 = vld [vmem:[#allocation2 + $0x1cc] sm:$0xf]
    %v1019 = vld [vmem:[#allocation2 + $0x1d0] sm:$0xf]
    %v1020 = vld [vmem:[#allocation2 + $0x1d4] sm:$0xf]
    %v1021 = vld [vmem:[#allocation2 + $0x1d8] sm:$0xf]
    %v1022 = vld [vmem:[#allocation2 + $0x1dc] sm:$0xf]
    %v1023 = vld [vmem:[#allocation2 + $0x1e0] sm:$0xf]
    %v1024 = vld [vmem:[#allocation2 + $0x1e4] sm:$0xf]
    %v1025 = vld [vmem:[#allocation2 + $0x1e8] sm:$0xf]
    %v1026 = vld [vmem:[#allocation2 + $0x1ec] sm:$0xf]
    %v1027 = vld [vmem:[#allocation2 + $0x1f0] sm:$0xf]
    %v1028 = vld [vmem:[#allocation2 + $0x1f4] sm:$0xf]
    %v1029 = vld [vmem:[#allocation2 + $0x1f8] sm:$0xf]
    %v1030 = vld [vmem:[#allocation2 + $0x1fc] sm:$0xf]
    %v1031 = vld [vmem:[#allocation2 + $0x200] sm:$0xf]
    %v1032 = vld [vmem:[#allocation2 + $0x204] sm:$0xf]
    %v1033 = vld [vmem:[#allocation2 + $0x208] sm:$0xf]
    %v1034 = vld [vmem:[#allocation2 + $0x20c] sm:$0xf]
    %v1035 = vld [vmem:[#allocation2 + $0x210] sm:$0xf]
    %v1036 = vld [vmem:[#allocation2 + $0x214] sm:$0xf]
    %v1037 = vld [vmem:[#allocation2 + $0x218] sm:$0xf]
    %v1038 = vld [vmem:[#allocation2 + $0x21c] sm:$0xf]
    %v1039 = vld [vmem:[#allocation2 + $0x220] sm:$0xf]
    %v1040 = vld [vmem:[#allocation2 + $0x224] sm:$0xf]
    %v1041 = vld [vmem:[#allocation2 + $0x228] sm:$0xf]
    %v1042 = vld [vmem:[#allocation2 + $0x22c] sm:$0xf]
    %v1043 = vld [vmem:[#allocation2 + $0x230] sm:$0xf]
    %v1044 = vld [vmem:[#allocation2 + $0x234] sm:$0xf]
    %v1045 = vld [vmem:[#allocation2 + $0x238] sm:$0xf]
    %v1046 = vld [vmem:[#allocation2 + $0x23c] sm:$0xf]
    %v1047 = vld [vmem:[%s4] sm:$0x1]
    %v1049 = vlaneseq
    %v1050 = vshrl.u32 %v1049, 7
    %v1051 = vsub.s32 0, %v1050
    %v1052 = vrot.slane %v1047, %v1051
    %v1198 = vunpack.c.l.b16 %v903
    %v1199 = vunpack.c.l.b16 %v904
    %v1200 = vunpack.c.l.b16 %v905
    %v1201 = vunpack.c.l.b16 %v906
    %v1202 = vunpack.c.l.b16 %v907
    %v1203 = vunpack.c.l.b16 %v908
    %v1204 = vunpack.c.l.b16 %v909
    %v1205 = vunpack.c.l.b16 %v910
    %v1206 = vunpack.c.l.b16 %v911
    %v1207 = vunpack.c.l.b16 %v912
    %v1208 = vunpack.c.l.b16 %v913
    %v1209 = vunpack.c.l.b16 %v914
    %v1210 = vunpack.c.l.b16 %v915
    %v1211 = vunpack.c.l.b16 %v916
    %v1212 = vunpack.c.l.b16 %v917
    %v1213 = vunpack.c.l.b16 %v918
    %v1214 = vunpack.c.l.b16 %v919
    %v1215 = vunpack.c.l.b16 %v920
    %v1216 = vunpack.c.l.b16 %v921
    %v1217 = vunpack.c.l.b16 %v922
    %v1218 = vunpack.c.l.b16 %v923
    %v1219 = vunpack.c.l.b16 %v924
    %v1220 = vunpack.c.l.b16 %v925
    %v1221 = vunpack.c.l.b16 %v926
    %v1222 = vunpack.c.l.b16 %v927
    %v1223 = vunpack.c.l.b16 %v928
    %v1224 = vunpack.c.l.b16 %v929
    %v1225 = vunpack.c.l.b16 %v930
    %v1226 = vunpack.c.l.b16 %v931
    %v1227 = vunpack.c.l.b16 %v932
    %v1228 = vunpack.c.l.b16 %v933
    %v1229 = vunpack.c.l.b16 %v934
    %v1230 = vunpack.c.l.b16 %v935
    %v1231 = vunpack.c.l.b16 %v936
    %v1232 = vunpack.c.l.b16 %v937
    %v1233 = vunpack.c.l.b16 %v938
    %v1234 = vunpack.c.l.b16 %v939
    %v1235 = vunpack.c.l.b16 %v940
    %v1236 = vunpack.c.l.b16 %v941
    %v1237 = vunpack.c.l.b16 %v942
    %v1238 = vunpack.c.l.b16 %v943
    %v1239 = vunpack.c.l.b16 %v944
    %v1240 = vunpack.c.l.b16 %v945
    %v1241 = vunpack.c.l.b16 %v946
    %v1242 = vunpack.c.l.b16 %v947
    %v1243 = vunpack.c.l.b16 %v948
    %v1244 = vunpack.c.l.b16 %v949
    %v1245 = vunpack.c.l.b16 %v950
    %v1246 = vunpack.c.l.b16 %v951
    %v1247 = vunpack.c.l.b16 %v952
    %v1248 = vunpack.c.l.b16 %v953
    %v1249 = vunpack.c.l.b16 %v954
    %v1250 = vunpack.c.l.b16 %v955
    %v1251 = vunpack.c.l.b16 %v956
    %v1252 = vunpack.c.l.b16 %v957
    %v1253 = vunpack.c.l.b16 %v958
    %v1254 = vunpack.c.l.b16 %v959
    %v1255 = vunpack.c.l.b16 %v960
    %v1256 = vunpack.c.l.b16 %v961
    %v1257 = vunpack.c.l.b16 %v962
    %v1258 = vunpack.c.l.b16 %v963
    %v1259 = vunpack.c.l.b16 %v964
    %v1260 = vunpack.c.l.b16 %v965
    %v1261 = vunpack.c.l.b16 %v966
    %v1262 = vunpack.c.l.b16 %v967
    %v1263 = vunpack.c.l.b16 %v968
    %v1264 = vunpack.c.l.b16 %v969
    %v1265 = vunpack.c.l.b16 %v970
    %v1266 = vunpack.c.l.b16 %v971
    %v1267 = vunpack.c.l.b16 %v972
    %v1268 = vunpack.c.l.b16 %v973
    %v1269 = vunpack.c.l.b16 %v974
    %v1270 = vunpack.c.l.b16 %v975
    %v1271 = vunpack.c.l.b16 %v976
    %v1272 = vunpack.c.l.b16 %v977
    %v1273 = vunpack.c.l.b16 %v978
    %v1274 = vunpack.c.l.b16 %v979
    %v1275 = vunpack.c.l.b16 %v980
    %v1276 = vunpack.c.l.b16 %v981
    %v1277 = vunpack.c.l.b16 %v982
    %v1278 = vunpack.c.l.b16 %v983
    %v1279 = vunpack.c.l.b16 %v984
    %v1280 = vunpack.c.l.b16 %v985
    %v1281 = vunpack.c.l.b16 %v986
    %v1282 = vunpack.c.l.b16 %v987
    %v1283 = vunpack.c.l.b16 %v988
    %v1284 = vunpack.c.l.b16 %v989
    %v1285 = vunpack.c.l.b16 %v990
    %v1286 = vunpack.c.l.b16 %v991
    %v1287 = vunpack.c.l.b16 %v992
    %v1288 = vunpack.c.l.b16 %v993
    %v1289 = vunpack.c.l.b16 %v994
    %v1290 = vunpack.c.l.b16 %v995
    %v1291 = vunpack.c.l.b16 %v996
    %v1292 = vunpack.c.l.b16 %v997
    %v1293 = vunpack.c.l.b16 %v998
    %v1294 = vunpack.c.l.b16 %v999
    %v1295 = vunpack.c.l.b16 %v1000
    %v1296 = vunpack.c.l.b16 %v1001
    %v1297 = vunpack.c.l.b16 %v1002
    %v1298 = vunpack.c.l.b16 %v1003
    %v1299 = vunpack.c.l.b16 %v1004
    %v1300 = vunpack.c.l.b16 %v1005
    %v1301 = vunpack.c.l.b16 %v1006
    %v1302 = vunpack.c.l.b16 %v1007
    %v1303 = vunpack.c.l.b16 %v1008
    %v1304 = vunpack.c.l.b16 %v1009
    %v1305 = vunpack.c.l.b16 %v1010
    %v1306 = vunpack.c.l.b16 %v1011
    %v1307 = vunpack.c.l.b16 %v1012
    %v1308 = vunpack.c.l.b16 %v1013
    %v1309 = vunpack.c.l.b16 %v1014
    %v1310 = vunpack.c.l.b16 %v1015
    %v1311 = vunpack.c.l.b16 %v1016
    %v1312 = vunpack.c.l.b16 %v1017
    %v1313 = vunpack.c.l.b16 %v1018
    %v1314 = vunpack.c.l.b16 %v1019
    %v1315 = vunpack.c.l.b16 %v1020
    %v1316 = vunpack.c.l.b16 %v1021
    %v1317 = vunpack.c.l.b16 %v1022
    %v1318 = vunpack.c.l.b16 %v1023
    %v1319 = vunpack.c.l.b16 %v1024
    %v1320 = vunpack.c.l.b16 %v1025
    %v1321 = vunpack.c.l.b16 %v1026
    %v1322 = vunpack.c.l.b16 %v1027
    %v1323 = vunpack.c.l.b16 %v1028
    %v1324 = vunpack.c.l.b16 %v1029
    %v1325 = vunpack.c.l.b16 %v1030
    %v1326 = vunpack.c.l.b16 %v1031
    %v1327 = vunpack.c.l.b16 %v1032
    %v1328 = vunpack.c.l.b16 %v1033
    %v1329 = vunpack.c.l.b16 %v1034
    %v1330 = vunpack.c.l.b16 %v1035
    %v1331 = vunpack.c.l.b16 %v1036
    %v1332 = vunpack.c.l.b16 %v1037
    %v1333 = vunpack.c.l.b16 %v1038
    %v1334 = vunpack.c.l.b16 %v1039
    %v1335 = vunpack.c.l.b16 %v1040
    %v1336 = vunpack.c.l.b16 %v1041
    %v1337 = vunpack.c.l.b16 %v1042
    %v1338 = vunpack.c.l.b16 %v1043
    %v1339 = vunpack.c.l.b16 %v1044
    %v1340 = vunpack.c.l.b16 %v1045
    %v1341 = vunpack.c.l.b16 %v1046
    %v1342 = vpack.c.b16 %v1199, %v1198
    %v1343 = vpack.c.b16 %v1201, %v1200
    %v1344 = vpack.c.b16 %v1203, %v1202
    %v1345 = vpack.c.b16 %v1205, %v1204
    %v1346 = vpack.c.b16 %v1207, %v1206
    %v1347 = vpack.c.b16 %v1209, %v1208
    %v1348 = vpack.c.b16 %v1211, %v1210
    %v1349 = vpack.c.b16 %v1213, %v1212
    %v1350 = vpack.c.b16 %v1215, %v1214
    %v1351 = vpack.c.b16 %v1217, %v1216
    %v1352 = vpack.c.b16 %v1219, %v1218
    %v1353 = vpack.c.b16 %v1221, %v1220
    %v1354 = vpack.c.b16 %v1223, %v1222
    %v1355 = vpack.c.b16 %v1225, %v1224
    %v1356 = vpack.c.b16 %v1227, %v1226
    %v1357 = vpack.c.b16 %v1229, %v1228
    %v1358 = vpack.c.b16 %v1231, %v1230
    %v1359 = vpack.c.b16 %v1233, %v1232
    %v1360 = vpack.c.b16 %v1235, %v1234
    %v1361 = vpack.c.b16 %v1237, %v1236
    %v1362 = vpack.c.b16 %v1239, %v1238
    %v1363 = vpack.c.b16 %v1241, %v1240
    %v1364 = vpack.c.b16 %v1243, %v1242
    %v1365 = vpack.c.b16 %v1245, %v1244
    %v1366 = vpack.c.b16 %v1247, %v1246
    %v1367 = vpack.c.b16 %v1249, %v1248
    %v1368 = vpack.c.b16 %v1251, %v1250
    %v1369 = vpack.c.b16 %v1253, %v1252
    %v1370 = vpack.c.b16 %v1255, %v1254
    %v1371 = vpack.c.b16 %v1257, %v1256
    %v1372 = vpack.c.b16 %v1259, %v1258
    %v1373 = vpack.c.b16 %v1261, %v1260
    %v1374 = vpack.c.b16 %v1263, %v1262
    %v1375 = vpack.c.b16 %v1265, %v1264
    %v1376 = vpack.c.b16 %v1267, %v1266
    %v1377 = vpack.c.b16 %v1269, %v1268
    %v1378 = vpack.c.b16 %v1271, %v1270
    %v1379 = vpack.c.b16 %v1273, %v1272
    %v1380 = vpack.c.b16 %v1275, %v1274
    %v1381 = vpack.c.b16 %v1277, %v1276
    %v1382 = vpack.c.b16 %v1279, %v1278
    %v1383 = vpack.c.b16 %v1281, %v1280
    %v1384 = vpack.c.b16 %v1283, %v1282
    %v1385 = vpack.c.b16 %v1285, %v1284
    %v1386 = vpack.c.b16 %v1287, %v1286
    %v1387 = vpack.c.b16 %v1289, %v1288
    %v1388 = vpack.c.b16 %v1291, %v1290
    %v1389 = vpack.c.b16 %v1293, %v1292
    %v1390 = vpack.c.b16 %v1295, %v1294
    %v1391 = vpack.c.b16 %v1297, %v1296
    %v1392 = vpack.c.b16 %v1299, %v1298
    %v1393 = vpack.c.b16 %v1301, %v1300
    %v1394 = vpack.c.b16 %v1303, %v1302
    %v1395 = vpack.c.b16 %v1305, %v1304
    %v1396 = vpack.c.b16 %v1307, %v1306
    %v1397 = vpack.c.b16 %v1309, %v1308
    %v1398 = vpack.c.b16 %v1311, %v1310
    %v1399 = vpack.c.b16 %v1313, %v1312
    %v1400 = vpack.c.b16 %v1315, %v1314
    %v1401 = vpack.c.b16 %v1317, %v1316
    %v1402 = vpack.c.b16 %v1319, %v1318
    %v1403 = vpack.c.b16 %v1321, %v1320
    %v1404 = vpack.c.b16 %v1323, %v1322
    %v1405 = vpack.c.b16 %v1325, %v1324
    %v1406 = vpack.c.b16 %v1327, %v1326
    %v1407 = vpack.c.b16 %v1329, %v1328
    %v1408 = vpack.c.b16 %v1331, %v1330
    %v1409 = vpack.c.b16 %v1333, %v1332
    %v1410 = vpack.c.b16 %v1335, %v1334
    %v1411 = vpack.c.b16 %v1337, %v1336
    %v1412 = vpack.c.b16 %v1339, %v1338
    %v1413 = vpack.c.b16 %v1341, %v1340
    %1486 = vmatprep.subr.bf16.mxu0 0
    %1487 = vmatpush1.bf16.msra.mxu0 %v1349
    %1488 = vmatprep.subr.bf16.mxu0 0
    %1489 = vmatpush1.bf16.msra.mxu0 %v1348
    %1490 = vmatprep.subr.bf16.mxu0 0
    %1491 = vmatpush1.bf16.msra.mxu0 %v1347
    %1492 = vmatprep.subr.bf16.mxu0 0
    %1493 = vmatpush1.bf16.msra.mxu0 %v1346
    %1494 = vmatprep.subr.bf16.mxu0 0
    %1495 = vmatpush1.bf16.msra.mxu0 %v1345
    %1496 = vmatprep.subr.bf16.mxu0 0
    %1497 = vmatpush1.bf16.msra.mxu0 %v1344
    %1498 = vmatprep.subr.bf16.mxu0 0
    %1499 = vmatpush1.bf16.msra.mxu0 %v1343
    %1500 = vmatprep.subr.bf16.mxu0 0
    %1501 = vmatpush1.bf16.msra.mxu0 %v1342
    %1502 = vmatprep.subr.bf16.mxu0 0
    %1503 = vmatpush2.bf16.msra.mxu0 %v1357
    %1504 = vmatprep.subr.bf16.mxu0 0
    %1505 = vmatpush2.bf16.msra.mxu0 %v1356
    %1506 = vmatprep.subr.bf16.mxu0 0
    %1507 = vmatpush2.bf16.msra.mxu0 %v1355
    %1508 = vmatprep.subr.bf16.mxu0 0
    %1509 = vmatpush2.bf16.msra.mxu0 %v1354
    %1510 = vmatprep.subr.bf16.mxu0 0
    %1511 = vmatpush2.bf16.msra.mxu0 %v1353
    %1512 = vmatprep.subr.bf16.mxu0 0
    %1513 = vmatpush2.bf16.msra.mxu0 %v1352
    %1514 = vmatprep.subr.bf16.mxu0 0
    %1515 = vmatpush2.bf16.msra.mxu0 %v1351
    %1516 = vmatprep.subr.bf16.mxu0 0
    %1517 = vmatpush2.bf16.msra.mxu0 %v1350
    %1518 = vmatprep.mubr.bf16.mxu0 %v440
    %1519 = vmatmul.mubr.bf16.gmra.mxu0 %v402
    %v1520 = vpop.f32.mrf.mxu0
    %v1521 = vadd.f32 %v1052, %v1520
    %v1522 = vpop.f32.mrf.mxu0
    %v1523 = vpop.f32.mrf.mxu0
    %v1524 = vadd.f32 %v1052, %v1523
    %v1525 = vpop.f32.mrf.mxu0
    %1526 = vmatprep.mubr.bf16.mxu0 %v448
    %1527 = vmatmul.mubr.bf16.gmra.mxu0 %v403
    %v1528 = vpop.f32.mrf.mxu0
    %v1529 = vadd.f32 %v1052, %v1528
    %v1530 = vpop.f32.mrf.mxu0
    %v1531 = vpop.f32.mrf.mxu0
    %v1532 = vadd.f32 %v1052, %v1531
    %v1533 = vpop.f32.mrf.mxu0
    %1534 = vmatprep.mubr.bf16.mxu0 %v456
    %1535 = vmatmul.mubr.bf16.gmra.mxu0 %v404
    %v1536 = vpop.f32.mrf.mxu0
    %v1537 = vadd.f32 %v1052, %v1536
    %v1538 = vpop.f32.mrf.mxu0
    %v1539 = vpop.f32.mrf.mxu0
    %v1540 = vadd.f32 %v1052, %v1539
    %v1541 = vpop.f32.mrf.mxu0
    %1542 = vmatprep.mubr.bf16.mxu0 %v464
    %1543 = vmatmul.mubr.bf16.gmra.mxu0 %v405
    %v1544 = vpop.f32.mrf.mxu0
    %v1545 = vadd.f32 %v1052, %v1544
    %v1546 = vpop.f32.mrf.mxu0
    %v1547 = vpop.f32.mrf.mxu0
    %v1548 = vadd.f32 %v1052, %v1547
    %v1549 = vpop.f32.mrf.mxu0
    %1550 = vmatprep.mubr.bf16.mxu0 %v472
    %1551 = vmatmul.mubr.bf16.gmra.mxu0 %v406
    %v1552 = vpop.f32.mrf.mxu0
    %v1553 = vadd.f32 %v1052, %v1552
    %v1554 = vpop.f32.mrf.mxu0
    %v1555 = vpop.f32.mrf.mxu0
    %v1556 = vadd.f32 %v1052, %v1555
    %v1557 = vpop.f32.mrf.mxu0
    %1558 = vmatprep.mubr.bf16.mxu0 %v480
    %1559 = vmatmul.mubr.bf16.gmra.mxu0 %v407
    %v1560 = vpop.f32.mrf.mxu0
    %v1561 = vadd.f32 %v1052, %v1560
    %v1562 = vpop.f32.mrf.mxu0
    %v1563 = vpop.f32.mrf.mxu0
    %v1564 = vadd.f32 %v1052, %v1563
    %v1565 = vpop.f32.mrf.mxu0
    %1566 = vmatprep.mubr.bf16.mxu0 %v488
    %1567 = vmatmul.mubr.bf16.gmra.mxu0 %v408
    %v1568 = vpop.f32.mrf.mxu0
    %v1569 = vadd.f32 %v1052, %v1568
    %v1570 = vpop.f32.mrf.mxu0
    %v1571 = vpop.f32.mrf.mxu0
    %v1572 = vadd.f32 %v1052, %v1571
    %v1573 = vpop.f32.mrf.mxu0
    %1574 = vmatprep.mubr.bf16.mxu0 %v496
    %1575 = vmatmul.mubr.bf16.gmra.mxu0 %v409
    %v1576 = vpop.f32.mrf.mxu0
    %v1577 = vadd.f32 %v1052, %v1576
    %v1578 = vpop.f32.mrf.mxu0
    %v1579 = vpop.f32.mrf.mxu0
    %v1580 = vadd.f32 %v1052, %v1579
    %v1581 = vpop.f32.mrf.mxu0
    %1582 = vmatprep.mubr.bf16.mxu0 %v504
    %1583 = vmatmul.mubr.bf16.gmra.mxu0 %v410
    %v1584 = vpop.f32.mrf.mxu0
    %v1585 = vadd.f32 %v1052, %v1584
    %v1586 = vpop.f32.mrf.mxu0
    %v1587 = vpop.f32.mrf.mxu0
    %v1588 = vadd.f32 %v1052, %v1587
    %v1589 = vpop.f32.mrf.mxu0
    %1590 = vmatprep.mubr.bf16.mxu0 %v512
    %1591 = vmatmul.mubr.bf16.gmra.mxu0 %v411
    %v1592 = vpop.f32.mrf.mxu0
    %v1593 = vadd.f32 %v1052, %v1592
    %v1594 = vpop.f32.mrf.mxu0
    %v1595 = vpop.f32.mrf.mxu0
    %v1596 = vadd.f32 %v1052, %v1595
    %v1597 = vpop.f32.mrf.mxu0
    %1598 = vmatprep.mubr.bf16.mxu0 %v520
    %1599 = vmatmul.mubr.bf16.gmra.mxu0 %v412
    %v1600 = vpop.f32.mrf.mxu0
    %v1601 = vadd.f32 %v1052, %v1600
    %v1602 = vpop.f32.mrf.mxu0
    %v1603 = vpop.f32.mrf.mxu0
    %v1604 = vadd.f32 %v1052, %v1603
    %v1605 = vpop.f32.mrf.mxu0
    %1606 = vmatprep.mubr.bf16.mxu0 %v523
    %1607 = vmatmul.mubr.bf16.gmra.mxu0 %v413
    %v1608 = vpop.f32.mrf.mxu0
    %v1609 = vadd.f32 %v1052, %v1608
    %v1610 = vpop.f32.mrf.mxu0
    %v1611 = vpop.f32.mrf.mxu0
    %v1612 = vpop.f32.mrf.mxu0
    %1613 = vdwg.mxu0
    %1614 = vmatprep.subr.bf16.mxu0 0
    %1615 = vmatpush1.bf16.msra.mxu0 %v1365
    %1616 = vmatprep.subr.bf16.mxu0 0
    %1617 = vmatpush1.bf16.msra.mxu0 %v1364
    %1618 = vmatprep.subr.bf16.mxu0 0
    %1619 = vmatpush1.bf16.msra.mxu0 %v1363
    %1620 = vmatprep.subr.bf16.mxu0 0
    %1621 = vmatpush1.bf16.msra.mxu0 %v1362
    %1622 = vmatprep.subr.bf16.mxu0 0
    %1623 = vmatpush1.bf16.msra.mxu0 %v1361
    %1624 = vmatprep.subr.bf16.mxu0 0
    %1625 = vmatpush1.bf16.msra.mxu0 %v1360
    %1626 = vmatprep.subr.bf16.mxu0 0
    %1627 = vmatpush1.bf16.msra.mxu0 %v1359
    %1628 = vmatprep.subr.bf16.mxu0 0
    %1629 = vmatpush1.bf16.msra.mxu0 %v1358
    %1630 = vmatprep.subr.bf16.mxu0 0
    %1631 = vmatpush2.bf16.msra.mxu0 %v1373
    %1632 = vmatprep.subr.bf16.mxu0 0
    %1633 = vmatpush2.bf16.msra.mxu0 %v1372
    %1634 = vmatprep.subr.bf16.mxu0 0
    %1635 = vmatpush2.bf16.msra.mxu0 %v1371
    %1636 = vmatprep.subr.bf16.mxu0 0
    %1637 = vmatpush2.bf16.msra.mxu0 %v1370
    %1638 = vmatprep.subr.bf16.mxu0 0
    %1639 = vmatpush2.bf16.msra.mxu0 %v1369
    %1640 = vmatprep.subr.bf16.mxu0 0
    %1641 = vmatpush2.bf16.msra.mxu0 %v1368
    %1642 = vmatprep.subr.bf16.mxu0 0
    %1643 = vmatpush2.bf16.msra.mxu0 %v1367
    %1644 = vmatprep.subr.bf16.mxu0 0
    %1645 = vmatpush2.bf16.msra.mxu0 %v1366
    %1646 = vmatprep.mubr.bf16.mxu0 %v595
    %1647 = vmatmul.mubr.bf16.gmra.mxu0 %v551
    %v1648 = vpop.f32.mrf.mxu0
    %v1649 = vadd.f32 %v1521, %v1648
    %v1650 = vpop.f32.mrf.mxu0
    %v1651 = vpop.f32.mrf.mxu0
    %v1652 = vadd.f32 %v1524, %v1651
    %v1653 = vpop.f32.mrf.mxu0
    %1654 = vmatprep.mubr.bf16.mxu0 %v603
    %1655 = vmatmul.mubr.bf16.gmra.mxu0 %v553
    %v1656 = vpop.f32.mrf.mxu0
    %v1657 = vadd.f32 %v1529, %v1656
    %v1658 = vpop.f32.mrf.mxu0
    %v1659 = vpop.f32.mrf.mxu0
    %v1660 = vadd.f32 %v1532, %v1659
    %v1661 = vpop.f32.mrf.mxu0
    %1662 = vmatprep.mubr.bf16.mxu0 %v611
    %1663 = vmatmul.mubr.bf16.gmra.mxu0 %v555
    %v1664 = vpop.f32.mrf.mxu0
    %v1665 = vadd.f32 %v1537, %v1664
    %v1666 = vpop.f32.mrf.mxu0
    %v1667 = vpop.f32.mrf.mxu0
    %v1668 = vadd.f32 %v1540, %v1667
    %v1669 = vpop.f32.mrf.mxu0
    %1670 = vmatprep.mubr.bf16.mxu0 %v619
    %1671 = vmatmul.mubr.bf16.gmra.mxu0 %v557
    %v1672 = vpop.f32.mrf.mxu0
    %v1673 = vadd.f32 %v1545, %v1672
    %v1674 = vpop.f32.mrf.mxu0
    %v1675 = vpop.f32.mrf.mxu0
    %v1676 = vadd.f32 %v1548, %v1675
    %v1677 = vpop.f32.mrf.mxu0
    %1678 = vmatprep.mubr.bf16.mxu0 %v627
    %1679 = vmatmul.mubr.bf16.gmra.mxu0 %v559
    %v1680 = vpop.f32.mrf.mxu0
    %v1681 = vadd.f32 %v1553, %v1680
    %v1682 = vpop.f32.mrf.mxu0
    %v1683 = vpop.f32.mrf.mxu0
    %v1684 = vadd.f32 %v1556, %v1683
    %v1685 = vpop.f32.mrf.mxu0
    %1686 = vmatprep.mubr.bf16.mxu0 %v635
    %1687 = vmatmul.mubr.bf16.gmra.mxu0 %v561
    %v1688 = vpop.f32.mrf.mxu0
    %v1689 = vadd.f32 %v1561, %v1688
    %v1690 = vpop.f32.mrf.mxu0
    %v1691 = vpop.f32.mrf.mxu0
    %v1692 = vadd.f32 %v1564, %v1691
    %v1693 = vpop.f32.mrf.mxu0
    %1694 = vmatprep.mubr.bf16.mxu0 %v643
    %1695 = vmatmul.mubr.bf16.gmra.mxu0 %v563
    %v1696 = vpop.f32.mrf.mxu0
    %v1697 = vadd.f32 %v1569, %v1696
    %v1698 = vpop.f32.mrf.mxu0
    %v1699 = vpop.f32.mrf.mxu0
    %v1700 = vadd.f32 %v1572, %v1699
    %v1701 = vpop.f32.mrf.mxu0
    %1702 = vmatprep.mubr.bf16.mxu0 %v651
    %1703 = vmatmul.mubr.bf16.gmra.mxu0 %v565
    %v1704 = vpop.f32.mrf.mxu0
    %v1705 = vadd.f32 %v1577, %v1704
    %v1706 = vpop.f32.mrf.mxu0
    %v1707 = vpop.f32.mrf.mxu0
    %v1708 = vadd.f32 %v1580, %v1707
    %v1709 = vpop.f32.mrf.mxu0
    %1710 = vmatprep.mubr.bf16.mxu0 %v659
    %1711 = vmatmul.mubr.bf16.gmra.mxu0 %v567
    %v1712 = vpop.f32.mrf.mxu0
    %v1713 = vadd.f32 %v1585, %v1712
    %v1714 = vpop.f32.mrf.mxu0
    %v1715 = vpop.f32.mrf.mxu0
    %v1716 = vadd.f32 %v1588, %v1715
    %v1717 = vpop.f32.mrf.mxu0
    %1718 = vmatprep.mubr.bf16.mxu0 %v667
    %1719 = vmatmul.mubr.bf16.gmra.mxu0 %v569
    %v1720 = vpop.f32.mrf.mxu0
    %v1721 = vadd.f32 %v1593, %v1720
    %v1722 = vpop.f32.mrf.mxu0
    %v1723 = vpop.f32.mrf.mxu0
    %v1724 = vadd.f32 %v1596, %v1723
    %v1725 = vpop.f32.mrf.mxu0
    %1726 = vmatprep.mubr.bf16.mxu0 %v675
    %1727 = vmatmul.mubr.bf16.gmra.mxu0 %v571
    %v1728 = vpop.f32.mrf.mxu0
    %v1729 = vadd.f32 %v1601, %v1728
    %v1730 = vpop.f32.mrf.mxu0
    %v1731 = vpop.f32.mrf.mxu0
    %v1732 = vadd.f32 %v1604, %v1731
    %v1733 = vpop.f32.mrf.mxu0
    %1734 = vmatprep.mubr.bf16.mxu0 %v678
    %1735 = vmatmul.mubr.bf16.gmra.mxu0 %v570
    %v1736 = vpop.f32.mrf.mxu0
    %v1737 = vadd.f32 %v1609, %v1736
    %v1738 = vpop.f32.mrf.mxu0
    %v1739 = vpop.f32.mrf.mxu0
    %v1740 = vpop.f32.mrf.mxu0
    %1741 = vdwg.mxu0
    %1742 = vmatprep.subr.bf16.mxu0 0
    %1743 = vmatpush1.bf16.msra.mxu0 %v1381
    %1744 = vmatprep.subr.bf16.mxu0 0
    %1745 = vmatpush1.bf16.msra.mxu0 %v1380
    %1746 = vmatprep.subr.bf16.mxu0 0
    %1747 = vmatpush1.bf16.msra.mxu0 %v1379
    %1748 = vmatprep.subr.bf16.mxu0 0
    %1749 = vmatpush1.bf16.msra.mxu0 %v1378
    %1750 = vmatprep.subr.bf16.mxu0 0
    %1751 = vmatpush1.bf16.msra.mxu0 %v1377
    %1752 = vmatprep.subr.bf16.mxu0 0
    %1753 = vmatpush1.bf16.msra.mxu0 %v1376
    %1754 = vmatprep.subr.bf16.mxu0 0
    %1755 = vmatpush1.bf16.msra.mxu0 %v1375
    %1756 = vmatprep.subr.bf16.mxu0 0
    %1757 = vmatpush1.bf16.msra.mxu0 %v1374
    %1758 = vmatprep.subr.bf16.mxu0 0
    %1759 = vmatpush2.bf16.msra.mxu0 %v1389
    %1760 = vmatprep.subr.bf16.mxu0 0
    %1761 = vmatpush2.bf16.msra.mxu0 %v1388
    %1762 = vmatprep.subr.bf16.mxu0 0
    %1763 = vmatpush2.bf16.msra.mxu0 %v1387
    %1764 = vmatprep.subr.bf16.mxu0 0
    %1765 = vmatpush2.bf16.msra.mxu0 %v1386
    %1766 = vmatprep.subr.bf16.mxu0 0
    %1767 = vmatpush2.bf16.msra.mxu0 %v1385
    %1768 = vmatprep.subr.bf16.mxu0 0
    %1769 = vmatpush2.bf16.msra.mxu0 %v1384
    %1770 = vmatprep.subr.bf16.mxu0 0
    %1771 = vmatpush2.bf16.msra.mxu0 %v1383
    %1772 = vmatprep.subr.bf16.mxu0 0
    %1773 = vmatpush2.bf16.msra.mxu0 %v1382
    %1774 = vmatprep.mubr.bf16.mxu0 %v745
    %1775 = vmatmul.mubr.bf16.gmra.mxu0 %v705
    %v1776 = vpop.f32.mrf.mxu0
    %v1777 = vadd.f32 %v1649, %v1776
    %v1778 = vpop.f32.mrf.mxu0
    %v1779 = vpop.f32.mrf.mxu0
    %v1780 = vadd.f32 %v1652, %v1779
    %v1781 = vpop.f32.mrf.mxu0
    %1782 = vmatprep.mubr.bf16.mxu0 %v749
    %1783 = vmatmul.mubr.bf16.gmra.mxu0 %v707
    %v1784 = vpop.f32.mrf.mxu0
    %v1785 = vadd.f32 %v1657, %v1784
    %v1786 = vpop.f32.mrf.mxu0
    %v1787 = vpop.f32.mrf.mxu0
    %v1788 = vadd.f32 %v1660, %v1787
    %v1789 = vpop.f32.mrf.mxu0
    %1790 = vmatprep.mubr.bf16.mxu0 %v753
    %1791 = vmatmul.mubr.bf16.gmra.mxu0 %v709
    %v1792 = vpop.f32.mrf.mxu0
    %v1793 = vadd.f32 %v1665, %v1792
    %v1794 = vpop.f32.mrf.mxu0
    %v1795 = vpop.f32.mrf.mxu0
    %v1796 = vadd.f32 %v1668, %v1795
    %v1797 = vpop.f32.mrf.mxu0
    %1798 = vmatprep.mubr.bf16.mxu0 %v757
    %1799 = vmatmul.mubr.bf16.gmra.mxu0 %v711
    %v1800 = vpop.f32.mrf.mxu0
    %v1801 = vadd.f32 %v1673, %v1800
    %v1802 = vpop.f32.mrf.mxu0
    %v1803 = vpop.f32.mrf.mxu0
    %v1804 = vadd.f32 %v1676, %v1803
    %v1805 = vpop.f32.mrf.mxu0
    %1806 = vmatprep.mubr.bf16.mxu0 %v761
    %1807 = vmatmul.mubr.bf16.gmra.mxu0 %v713
    %v1808 = vpop.f32.mrf.mxu0
    %v1809 = vadd.f32 %v1681, %v1808
    %v1810 = vpop.f32.mrf.mxu0
    %v1811 = vpop.f32.mrf.mxu0
    %v1812 = vadd.f32 %v1684, %v1811
    %v1813 = vpop.f32.mrf.mxu0
    %1814 = vmatprep.mubr.bf16.mxu0 %v765
    %1815 = vmatmul.mubr.bf16.gmra.mxu0 %v715
    %v1816 = vpop.f32.mrf.mxu0
    %v1817 = vadd.f32 %v1689, %v1816
    %v1818 = vpop.f32.mrf.mxu0
    %v1819 = vpop.f32.mrf.mxu0
    %v1820 = vadd.f32 %v1692, %v1819
    %v1821 = vpop.f32.mrf.mxu0
    %1822 = vmatprep.mubr.bf16.mxu0 %v769
    %1823 = vmatmul.mubr.bf16.gmra.mxu0 %v717
    %v1824 = vpop.f32.mrf.mxu0
    %v1825 = vadd.f32 %v1697, %v1824
    %v1826 = vpop.f32.mrf.mxu0
    %v1827 = vpop.f32.mrf.mxu0
    %v1828 = vadd.f32 %v1700, %v1827
    %v1829 = vpop.f32.mrf.mxu0
    %1830 = vmatprep.mubr.bf16.mxu0 %v773
    %1831 = vmatmul.mubr.bf16.gmra.mxu0 %v719
    %v1832 = vpop.f32.mrf.mxu0
    %v1833 = vadd.f32 %v1705, %v1832
    %v1834 = vpop.f32.mrf.mxu0
    %v1835 = vpop.f32.mrf.mxu0
    %v1836 = vadd.f32 %v1708, %v1835
    %v1837 = vpop.f32.mrf.mxu0
    %1838 = vmatprep.mubr.bf16.mxu0 %v777
    %1839 = vmatmul.mubr.bf16.gmra.mxu0 %v721
    %v1840 = vpop.f32.mrf.mxu0
    %v1841 = vadd.f32 %v1713, %v1840
    %v1842 = vpop.f32.mrf.mxu0
    %v1843 = vpop.f32.mrf.mxu0
    %v1844 = vadd.f32 %v1716, %v1843
    %v1845 = vpop.f32.mrf.mxu0
    %1846 = vmatprep.mubr.bf16.mxu0 %v781
    %1847 = vmatmul.mubr.bf16.gmra.mxu0 %v723
    %v1848 = vpop.f32.mrf.mxu0
    %v1849 = vadd.f32 %v1721, %v1848
    %v1850 = vpop.f32.mrf.mxu0
    %v1851 = vpop.f32.mrf.mxu0
    %v1852 = vadd.f32 %v1724, %v1851
    %v1853 = vpop.f32.mrf.mxu0
    %1854 = vmatprep.mubr.bf16.mxu0 %v785
    %1855 = vmatmul.mubr.bf16.gmra.mxu0 %v725
    %v1856 = vpop.f32.mrf.mxu0
    %v1857 = vadd.f32 %v1729, %v1856
    %v1858 = vpop.f32.mrf.mxu0
    %v1859 = vpop.f32.mrf.mxu0
    %v1860 = vadd.f32 %v1732, %v1859
    %v1861 = vpop.f32.mrf.mxu0
    %1862 = vmatprep.mubr.bf16.mxu0 %v784
    %1863 = vmatmul.mubr.bf16.gmra.mxu0 %v724
    %v1864 = vpop.f32.mrf.mxu0
    %v1865 = vadd.f32 %v1737, %v1864
    %v1866 = vpop.f32.mrf.mxu0
    %v1867 = vpop.f32.mrf.mxu0
    %v1868 = vpop.f32.mrf.mxu0
    %1869 = vdwg.mxu0
    %1870 = vmatprep.subr.bf16.mxu0 0
    %1871 = vmatpush1.bf16.msra.mxu0 %v1397
    %1872 = vmatprep.subr.bf16.mxu0 0
    %1873 = vmatpush1.bf16.msra.mxu0 %v1396
    %1874 = vmatprep.subr.bf16.mxu0 0
    %1875 = vmatpush1.bf16.msra.mxu0 %v1395
    %1876 = vmatprep.subr.bf16.mxu0 0
    %1877 = vmatpush1.bf16.msra.mxu0 %v1394
    %1878 = vmatprep.subr.bf16.mxu0 0
    %1879 = vmatpush1.bf16.msra.mxu0 %v1393
    %1880 = vmatprep.subr.bf16.mxu0 0
    %1881 = vmatpush1.bf16.msra.mxu0 %v1392
    %1882 = vmatprep.subr.bf16.mxu0 0
    %1883 = vmatpush1.bf16.msra.mxu0 %v1391
    %1884 = vmatprep.subr.bf16.mxu0 0
    %1885 = vmatpush1.bf16.msra.mxu0 %v1390
    %1886 = vmatprep.subr.bf16.mxu0 0
    %1887 = vmatpush2.bf16.msra.mxu0 %v1405
    %1888 = vmatprep.subr.bf16.mxu0 0
    %1889 = vmatpush2.bf16.msra.mxu0 %v1404
    %1890 = vmatprep.subr.bf16.mxu0 0
    %1891 = vmatpush2.bf16.msra.mxu0 %v1403
    %1892 = vmatprep.subr.bf16.mxu0 0
    %1893 = vmatpush2.bf16.msra.mxu0 %v1402
    %1894 = vmatprep.subr.bf16.mxu0 0
    %1895 = vmatpush2.bf16.msra.mxu0 %v1401
    %1896 = vmatprep.subr.bf16.mxu0 0
    %1897 = vmatpush2.bf16.msra.mxu0 %v1400
    %1898 = vmatprep.subr.bf16.mxu0 0
    %1899 = vmatpush2.bf16.msra.mxu0 %v1399
    %1900 = vmatprep.subr.bf16.mxu0 0
    %1901 = vmatpush2.bf16.msra.mxu0 %v1398
    %1902 = vmatprep.mubr.bf16.mxu0 %v809
    %1903 = vmatmul.mubr.bf16.gmra.mxu0 %v553
    %v1904 = vpop.f32.mrf.mxu0
    %v1905 = vadd.f32 %v1777, %v1904
    %v1906 = vpop.f32.mrf.mxu0
    %v1907 = vpop.f32.mrf.mxu0
    %v1908 = vadd.f32 %v1780, %v1907
    %v1909 = vpop.f32.mrf.mxu0
    %1910 = vmatprep.mubr.bf16.mxu0 %v813
    %1911 = vmatmul.mubr.bf16.gmra.mxu0 %v555
    %v1912 = vpop.f32.mrf.mxu0
    %v1913 = vadd.f32 %v1785, %v1912
    %v1914 = vpop.f32.mrf.mxu0
    %v1915 = vpop.f32.mrf.mxu0
    %v1916 = vadd.f32 %v1788, %v1915
    %v1917 = vpop.f32.mrf.mxu0
    %1918 = vmatprep.mubr.bf16.mxu0 %v817
    %1919 = vmatmul.mubr.bf16.gmra.mxu0 %v557
    %v1920 = vpop.f32.mrf.mxu0
    %v1921 = vadd.f32 %v1793, %v1920
    %v1922 = vpop.f32.mrf.mxu0
    %v1923 = vpop.f32.mrf.mxu0
    %v1924 = vadd.f32 %v1796, %v1923
    %v1925 = vpop.f32.mrf.mxu0
    %1926 = vmatprep.mubr.bf16.mxu0 %v821
    %1927 = vmatmul.mubr.bf16.gmra.mxu0 %v559
    %v1928 = vpop.f32.mrf.mxu0
    %v1929 = vadd.f32 %v1801, %v1928
    %v1930 = vpop.f32.mrf.mxu0
    %v1931 = vpop.f32.mrf.mxu0
    %v1932 = vadd.f32 %v1804, %v1931
    %v1933 = vpop.f32.mrf.mxu0
    %1934 = vmatprep.mubr.bf16.mxu0 %v825
    %1935 = vmatmul.mubr.bf16.gmra.mxu0 %v561
    %v1936 = vpop.f32.mrf.mxu0
    %v1937 = vadd.f32 %v1809, %v1936
    %v1938 = vpop.f32.mrf.mxu0
    %v1939 = vpop.f32.mrf.mxu0
    %v1940 = vadd.f32 %v1812, %v1939
    %v1941 = vpop.f32.mrf.mxu0
    %1942 = vmatprep.mubr.bf16.mxu0 %v829
    %1943 = vmatmul.mubr.bf16.gmra.mxu0 %v563
    %v1944 = vpop.f32.mrf.mxu0
    %v1945 = vadd.f32 %v1817, %v1944
    %v1946 = vpop.f32.mrf.mxu0
    %v1947 = vpop.f32.mrf.mxu0
    %v1948 = vadd.f32 %v1820, %v1947
    %v1949 = vpop.f32.mrf.mxu0
    %1950 = vmatprep.mubr.bf16.mxu0 %v833
    %1951 = vmatmul.mubr.bf16.gmra.mxu0 %v565
    %v1952 = vpop.f32.mrf.mxu0
    %v1953 = vadd.f32 %v1825, %v1952
    %v1954 = vpop.f32.mrf.mxu0
    %v1955 = vpop.f32.mrf.mxu0
    %v1956 = vadd.f32 %v1828, %v1955
    %v1957 = vpop.f32.mrf.mxu0
    %1958 = vmatprep.mubr.bf16.mxu0 %v837
    %1959 = vmatmul.mubr.bf16.gmra.mxu0 %v567
    %v1960 = vpop.f32.mrf.mxu0
    %v1961 = vadd.f32 %v1833, %v1960
    %v1962 = vpop.f32.mrf.mxu0
    %v1963 = vpop.f32.mrf.mxu0
    %v1964 = vadd.f32 %v1836, %v1963
    %v1965 = vpop.f32.mrf.mxu0
    %1966 = vmatprep.mubr.bf16.mxu0 %v841
    %1967 = vmatmul.mubr.bf16.gmra.mxu0 %v569
    %v1968 = vpop.f32.mrf.mxu0
    %v1969 = vadd.f32 %v1841, %v1968
    %v1970 = vpop.f32.mrf.mxu0
    %v1971 = vpop.f32.mrf.mxu0
    %v1972 = vadd.f32 %v1844, %v1971
    %v1973 = vpop.f32.mrf.mxu0
    %1974 = vmatprep.mubr.bf16.mxu0 %v845
    %1975 = vmatmul.mubr.bf16.gmra.mxu0 %v571
    %v1976 = vpop.f32.mrf.mxu0
    %v1977 = vadd.f32 %v1849, %v1976
    %v1978 = vpop.f32.mrf.mxu0
    %v1979 = vpop.f32.mrf.mxu0
    %v1980 = vadd.f32 %v1852, %v1979
    %v1981 = vpop.f32.mrf.mxu0
    %1982 = vmatprep.mubr.bf16.mxu0 %v854
    %1983 = vmatmul.mubr.bf16.gmra.mxu0 %v800
    %v1984 = vpop.f32.mrf.mxu0
    %v1985 = vadd.f32 %v1857, %v1984
    %v1986 = vpop.f32.mrf.mxu0
    %v1987 = vpop.f32.mrf.mxu0
    %v1988 = vadd.f32 %v1860, %v1987
    %v1989 = vpop.f32.mrf.mxu0
    %1990 = vmatprep.mubr.bf16.mxu0 %v853
    %1991 = vmatmul.mubr.bf16.gmra.mxu0 %v799
    %v1992 = vpop.f32.mrf.mxu0
    %v1993 = vadd.f32 %v1865, %v1992
    %v1994 = vpop.f32.mrf.mxu0
    %v1995 = vpop.f32.mrf.mxu0
    %v1996 = vpop.f32.mrf.mxu0
    %1997 = vdwg.mxu0
    %1998 = vmatprep.subr.bf16.mxu0 0
    %1999 = vmatpush1.bf16.msra.mxu0 %v1413
    %2000 = vmatprep.subr.bf16.mxu0 0
    %2001 = vmatpush1.bf16.msra.mxu0 %v1412
    %2002 = vmatprep.subr.bf16.mxu0 0
    %2003 = vmatpush1.bf16.msra.mxu0 %v1411
    %2004 = vmatprep.subr.bf16.mxu0 0
    %2005 = vmatpush1.bf16.msra.mxu0 %v1410
    %2006 = vmatprep.subr.bf16.mxu0 0
    %2007 = vmatpush1.bf16.msra.mxu0 %v1409
    %2008 = vmatprep.subr.bf16.mxu0 0
    %2009 = vmatpush1.bf16.msra.mxu0 %v1408
    %2010 = vmatprep.subr.bf16.mxu0 0
    %2011 = vmatpush1.bf16.msra.mxu0 %v1407
    %2012 = vmatprep.subr.bf16.mxu0 0
    %2013 = vmatpush1.bf16.msra.mxu0 %v1406
    %2014 = vmatprep.subr.bf16.mxu0 0
    %2015 = vmatpush2.bf16.msra.mxu0 0
    %2016 = vmatprep.subr.bf16.mxu0 0
    %2017 = vmatpush2.bf16.msra.mxu0 0
    %2018 = vmatprep.subr.bf16.mxu0 0
    %2019 = vmatpush2.bf16.msra.mxu0 0
    %2020 = vmatprep.subr.bf16.mxu0 0
    %2021 = vmatpush2.bf16.msra.mxu0 0
    %2022 = vmatprep.subr.bf16.mxu0 0
    %2023 = vmatpush2.bf16.msra.mxu0 0
    %2024 = vmatprep.subr.bf16.mxu0 0
    %2025 = vmatpush2.bf16.msra.mxu0 0
    %2026 = vmatprep.subr.bf16.mxu0 0
    %2027 = vmatpush2.bf16.msra.mxu0 0
    %2028 = vmatprep.subr.bf16.mxu0 0
    %2029 = vmatpush2.bf16.msra.mxu0 0
    %2030 = vmatprep.mubr.bf16.mxu0 0
    %2031 = vmatmul.mubr.bf16.gmra.mxu0 %v870
    %v2032 = vpop.f32.mrf.mxu0
    %v2033 = vadd.f32 %v1905, %v2032
    %v2034 = vpop.f32.mrf.mxu0
    %v2035 = vpop.f32.mrf.mxu0
    %v2036 = vadd.f32 %v1908, %v2035
    %v2037 = vpop.f32.mrf.mxu0
    %2038 = vmatprep.mubr.bf16.mxu0 0
    %2039 = vmatmul.mubr.bf16.gmra.mxu0 %v872
    %v2040 = vpop.f32.mrf.mxu0
    %v2041 = vadd.f32 %v1913, %v2040
    %v2042 = vpop.f32.mrf.mxu0
    %v2043 = vpop.f32.mrf.mxu0
    %v2044 = vadd.f32 %v1916, %v2043
    %v2045 = vpop.f32.mrf.mxu0
    %2046 = vmatprep.mubr.bf16.mxu0 0
    %2047 = vmatmul.mubr.bf16.gmra.mxu0 %v874
    %v2048 = vpop.f32.mrf.mxu0
    %v2049 = vadd.f32 %v1921, %v2048
    %v2050 = vpop.f32.mrf.mxu0
    %v2051 = vpop.f32.mrf.mxu0
    %v2052 = vadd.f32 %v1924, %v2051
    %v2053 = vpop.f32.mrf.mxu0
    %2054 = vmatprep.mubr.bf16.mxu0 0
    %2055 = vmatmul.mubr.bf16.gmra.mxu0 %v876
    %v2056 = vpop.f32.mrf.mxu0
    %v2057 = vadd.f32 %v1929, %v2056
    %v2058 = vpop.f32.mrf.mxu0
    %v2059 = vpop.f32.mrf.mxu0
    %v2060 = vadd.f32 %v1932, %v2059
    %v2061 = vpop.f32.mrf.mxu0
    %2062 = vmatprep.mubr.bf16.mxu0 0
    %2063 = vmatmul.mubr.bf16.gmra.mxu0 %v878
    %v2064 = vpop.f32.mrf.mxu0
    %v2065 = vadd.f32 %v1937, %v2064
    %v2066 = vpop.f32.mrf.mxu0
    %v2067 = vpop.f32.mrf.mxu0
    %v2068 = vadd.f32 %v1940, %v2067
    %v2069 = vpop.f32.mrf.mxu0
    %2070 = vmatprep.mubr.bf16.mxu0 0
    %2071 = vmatmul.mubr.bf16.gmra.mxu0 %v880
    %v2072 = vpop.f32.mrf.mxu0
    %v2073 = vadd.f32 %v1945, %v2072
    %v2074 = vpop.f32.mrf.mxu0
    %v2075 = vpop.f32.mrf.mxu0
    %v2076 = vadd.f32 %v1948, %v2075
    %v2077 = vpop.f32.mrf.mxu0
    %2078 = vmatprep.mubr.bf16.mxu0 0
    %2079 = vmatmul.mubr.bf16.gmra.mxu0 %v882
    %v2080 = vpop.f32.mrf.mxu0
    %v2081 = vadd.f32 %v1953, %v2080
    %v2082 = vpop.f32.mrf.mxu0
    %v2083 = vpop.f32.mrf.mxu0
    %v2084 = vadd.f32 %v1956, %v2083
    %v2085 = vpop.f32.mrf.mxu0
    %2086 = vmatprep.mubr.bf16.mxu0 0
    %2087 = vmatmul.mubr.bf16.gmra.mxu0 %v884
    %v2088 = vpop.f32.mrf.mxu0
    %v2089 = vadd.f32 %v1961, %v2088
    %v2090 = vpop.f32.mrf.mxu0
    %v2091 = vpop.f32.mrf.mxu0
    %v2092 = vadd.f32 %v1964, %v2091
    %v2093 = vpop.f32.mrf.mxu0
    %2094 = vmatprep.mubr.bf16.mxu0 0
    %2095 = vmatmul.mubr.bf16.gmra.mxu0 %v886
    %v2096 = vpop.f32.mrf.mxu0
    %v2097 = vadd.f32 %v1969, %v2096
    %v2098 = vpop.f32.mrf.mxu0
    %v2099 = vpop.f32.mrf.mxu0
    %v2100 = vadd.f32 %v1972, %v2099
    %v2101 = vpop.f32.mrf.mxu0
    %2102 = vmatprep.mubr.bf16.mxu0 0
    %2103 = vmatmul.mubr.bf16.gmra.mxu0 %v888
    %v2104 = vpop.f32.mrf.mxu0
    %v2105 = vadd.f32 %v1977, %v2104
    %v2106 = vpop.f32.mrf.mxu0
    %v2107 = vpop.f32.mrf.mxu0
    %v2108 = vadd.f32 %v1980, %v2107
    %v2109 = vpop.f32.mrf.mxu0
    %2110 = vmatprep.mubr.bf16.mxu0 0
    %2111 = vmatmul.mubr.bf16.gmra.mxu0 %v890
    %v2112 = vpop.f32.mrf.mxu0
    %v2113 = vadd.f32 %v1985, %v2112
    %v2114 = vpop.f32.mrf.mxu0
    %v2115 = vpop.f32.mrf.mxu0
    %v2116 = vadd.f32 %v1988, %v2115
    %v2117 = vpop.f32.mrf.mxu0
    %2118 = vmatprep.mubr.bf16.mxu0 0
    %2119 = vmatmul.mubr.bf16.gmra.mxu0 %v889
    %v2120 = vpop.f32.mrf.mxu0
    %v2121 = vadd.f32 %v1993, %v2120
    %v2122 = vpop.f32.mrf.mxu0
    %v2123 = vpop.f32.mrf.mxu0
    %v2124 = vpop.f32.mrf.mxu0
    %2125 = vdwg.mxu0
    %v2126 = vmax.f32 %v2033, 0.0
    %v2127 = vmax.f32 %v2036, 0.0
    %v2128 = vmax.f32 %v2041, 0.0
    %v2129 = vmax.f32 %v2044, 0.0
    %v2130 = vmax.f32 %v2049, 0.0
    %v2131 = vmax.f32 %v2052, 0.0
    %v2132 = vmax.f32 %v2057, 0.0
    %v2133 = vmax.f32 %v2060, 0.0
    %v2134 = vmax.f32 %v2065, 0.0
    %v2135 = vmax.f32 %v2068, 0.0
    %v2136 = vmax.f32 %v2073, 0.0
    %v2137 = vmax.f32 %v2076, 0.0
    %v2138 = vmax.f32 %v2081, 0.0
    %v2139 = vmax.f32 %v2084, 0.0
    %v2140 = vmax.f32 %v2089, 0.0
    %v2141 = vmax.f32 %v2092, 0.0
    %v2142 = vmax.f32 %v2097, 0.0
    %v2143 = vmax.f32 %v2100, 0.0
    %v2144 = vmax.f32 %v2105, 0.0
    %v2145 = vmax.f32 %v2108, 0.0
    %v2146 = vmax.f32 %v2113, 0.0
    %v2147 = vmax.f32 %v2116, 0.0
    %v2148 = vmax.f32 %v2121, 0.0
    %v2149 = vpack.c.bf16 %v2127, %v2126
    %v2150 = vpack.c.bf16 %v2129, %v2128
    %v2151 = vpack.c.bf16 %v2131, %v2130
    %v2152 = vpack.c.bf16 %v2133, %v2132
    %v2153 = vpack.c.bf16 %v2135, %v2134
    %v2154 = vpack.c.bf16 %v2137, %v2136
    %v2155 = vpack.c.bf16 %v2139, %v2138
    %v2156 = vpack.c.bf16 %v2141, %v2140
    %v2157 = vpack.c.bf16 %v2143, %v2142
    %v2158 = vpack.c.bf16 %v2145, %v2144
    %v2159 = vpack.c.bf16 %v2146, %v2146
    %v2160 = vpack.c.bf16 %v2147, %v2146
    %v2161 = vpack.c.bf16 %v2128, %v2127
    %v2162 = vpack.c.bf16 %v2130, %v2129
    %v2163 = vpack.c.bf16 %v2132, %v2131
    %v2164 = vpack.c.bf16 %v2134, %v2133
    %v2165 = vpack.c.bf16 %v2136, %v2135
    %v2166 = vpack.c.bf16 %v2138, %v2137
    %v2167 = vpack.c.bf16 %v2140, %v2139
    %v2168 = vpack.c.bf16 %v2142, %v2141
    %v2169 = vpack.c.bf16 %v2144, %v2143
    %v2170 = vpack.c.bf16 %v2146, %v2145
    %v2171 = vpack.c.bf16 %v2148, %v2147
    %v2173 = vshrl.u32 %v2149, 16
    %v2175 = vshll.u32 %v2149, 16
    %v2177 = vrot.slane %v2175, 1
    %v2178 = vor.u32 %v2173, %v2177
    %v2180 = vshll.u32 %v2150, 16
    %v2182 = vrot.slane %v2180, 1
    %v2183 = vsel %vm428, %v2178, %v2182
    %v2184 = vshrl.u32 %v2150, 16
    %v2186 = vor.u32 %v2184, %v2182
    %v2188 = vshll.u32 %v2151, 16
    %v2190 = vrot.slane %v2188, 1
    %v2191 = vsel %vm428, %v2186, %v2190
    %v2192 = vshrl.u32 %v2151, 16
    %v2194 = vor.u32 %v2192, %v2190
    %v2196 = vshll.u32 %v2152, 16
    %v2198 = vrot.slane %v2196, 1
    %v2199 = vsel %vm428, %v2194, %v2198
    %v2200 = vshrl.u32 %v2152, 16
    %v2202 = vor.u32 %v2200, %v2198
    %v2204 = vshll.u32 %v2153, 16
    %v2206 = vrot.slane %v2204, 1
    %v2207 = vsel %vm428, %v2202, %v2206
    %v2208 = vshrl.u32 %v2153, 16
    %v2210 = vor.u32 %v2208, %v2206
    %v2212 = vshll.u32 %v2154, 16
    %v2214 = vrot.slane %v2212, 1
    %v2215 = vsel %vm428, %v2210, %v2214
    %v2216 = vshrl.u32 %v2154, 16
    %v2218 = vor.u32 %v2216, %v2214
    %v2220 = vshll.u32 %v2155, 16
    %v2222 = vrot.slane %v2220, 1
    %v2223 = vsel %vm428, %v2218, %v2222
    %v2224 = vshrl.u32 %v2155, 16
    %v2226 = vor.u32 %v2224, %v2222
    %v2228 = vshll.u32 %v2156, 16
    %v2230 = vrot.slane %v2228, 1
    %v2231 = vsel %vm428, %v2226, %v2230
    %v2232 = vshrl.u32 %v2156, 16
    %v2234 = vor.u32 %v2232, %v2230
    %v2236 = vshll.u32 %v2157, 16
    %v2238 = vrot.slane %v2236, 1
    %v2239 = vsel %vm428, %v2234, %v2238
    %v2240 = vshrl.u32 %v2157, 16
    %v2242 = vor.u32 %v2240, %v2238
    %v2244 = vshll.u32 %v2158, 16
    %v2246 = vrot.slane %v2244, 1
    %v2247 = vsel %vm428, %v2242, %v2246
    %v2248 = vshrl.u32 %v2158, 16
    %v2250 = vor.u32 %v2248, %v2246
    %v2252 = vshll.u32 %v2160, 16
    %v2254 = vrot.slane %v2252, 1
    %v2255 = vsel %vm428, %v2250, %v2254
    %v2256 = vshrl.u32 %v2160, 16
    %v2258 = vor.u32 %v2256, %v2254
    %v2271 = vshrl.u32 %v2161, 16
    %v2273 = vshll.u32 %v2161, 16
    %v2275 = vrot.slane %v2273, 1
    %v2276 = vor.u32 %v2271, %v2275
    %v2278 = vshll.u32 %v2162, 16
    %v2280 = vrot.slane %v2278, 1
    %v2281 = vsel %vm428, %v2276, %v2280
    %v2282 = vshrl.u32 %v2162, 16
    %v2284 = vor.u32 %v2282, %v2280
    %v2286 = vshll.u32 %v2163, 16
    %v2288 = vrot.slane %v2286, 1
    %v2289 = vsel %vm428, %v2284, %v2288
    %v2290 = vshrl.u32 %v2163, 16
    %v2292 = vor.u32 %v2290, %v2288
    %v2294 = vshll.u32 %v2164, 16
    %v2296 = vrot.slane %v2294, 1
    %v2297 = vsel %vm428, %v2292, %v2296
    %v2298 = vshrl.u32 %v2164, 16
    %v2300 = vor.u32 %v2298, %v2296
    %v2302 = vshll.u32 %v2165, 16
    %v2304 = vrot.slane %v2302, 1
    %v2305 = vsel %vm428, %v2300, %v2304
    %v2306 = vshrl.u32 %v2165, 16
    %v2308 = vor.u32 %v2306, %v2304
    %v2310 = vshll.u32 %v2166, 16
    %v2312 = vrot.slane %v2310, 1
    %v2313 = vsel %vm428, %v2308, %v2312
    %v2314 = vshrl.u32 %v2166, 16
    %v2316 = vor.u32 %v2314, %v2312
    %v2318 = vshll.u32 %v2167, 16
    %v2320 = vrot.slane %v2318, 1
    %v2321 = vsel %vm428, %v2316, %v2320
    %v2322 = vshrl.u32 %v2167, 16
    %v2324 = vor.u32 %v2322, %v2320
    %v2326 = vshll.u32 %v2168, 16
    %v2328 = vrot.slane %v2326, 1
    %v2329 = vsel %vm428, %v2324, %v2328
    %v2330 = vshrl.u32 %v2168, 16
    %v2332 = vor.u32 %v2330, %v2328
    %v2334 = vshll.u32 %v2169, 16
    %v2336 = vrot.slane %v2334, 1
    %v2337 = vsel %vm428, %v2332, %v2336
    %v2338 = vshrl.u32 %v2169, 16
    %v2340 = vor.u32 %v2338, %v2336
    %v2342 = vshll.u32 %v2170, 16
    %v2344 = vrot.slane %v2342, 1
    %v2345 = vsel %vm428, %v2340, %v2344
    %v2346 = vshrl.u32 %v2170, 16
    %v2348 = vor.u32 %v2346, %v2344
    %v2350 = vshll.u32 %v2171, 16
    %v2352 = vrot.slane %v2350, 1
    %v2353 = vsel %vm428, %v2348, %v2352
    %v2354 = vshrl.u32 %v2171, 16
    %v2356 = vor.u32 %v2354, %v2352
    %v2379 = vrot.slane %v2161, 1
    %v2380 = vrot.slane %v2162, 1
    %v2381 = vsel %vm548, %v2379, %v2380
    %v2382 = vrot.slane %v2163, 1
    %v2383 = vsel %vm548, %v2380, %v2382
    %v2384 = vrot.slane %v2164, 1
    %v2385 = vsel %vm548, %v2382, %v2384
    %v2386 = vrot.slane %v2165, 1
    %v2387 = vsel %vm548, %v2384, %v2386
    %v2388 = vrot.slane %v2166, 1
    %v2389 = vsel %vm548, %v2386, %v2388
    %v2390 = vrot.slane %v2167, 1
    %v2391 = vsel %vm548, %v2388, %v2390
    %v2392 = vrot.slane %v2168, 1
    %v2393 = vsel %vm548, %v2390, %v2392
    %v2394 = vrot.slane %v2169, 1
    %v2395 = vsel %vm548, %v2392, %v2394
    %v2396 = vrot.slane %v2170, 1
    %v2397 = vsel %vm548, %v2394, %v2396
    %v2398 = vrot.slane %v2171, 1
    %v2399 = vsel %vm548, %v2396, %v2398
    %v2411 = vld [vmem:[%s5] sm:$0xf]
    %v2412 = vld [vmem:[%s5 + $0x4] sm:$0xf]
    %v2413 = vld [vmem:[%s5 + $0x8] sm:$0xf]
    %v2414 = vld [vmem:[%s5 + $0xc] sm:$0xf]
    %v2415 = vld [vmem:[%s5 + $0x10] sm:$0xf]
    %v2416 = vld [vmem:[%s5 + $0x14] sm:$0xf]
    %v2417 = vld [vmem:[%s5 + $0x18] sm:$0xf]
    %v2418 = vld [vmem:[%s5 + $0x1c] sm:$0xf]
    %v2419 = vld [vmem:[%s5 + $0x20] sm:$0xf]
    %v2420 = vld [vmem:[%s5 + $0x24] sm:$0xf]
    %v2421 = vld [vmem:[%s5 + $0x28] sm:$0xf]
    %v2422 = vld [vmem:[%s5 + $0x2c] sm:$0xf]
    %v2423 = vld [vmem:[%s5 + $0x30] sm:$0xf]
    %v2424 = vld [vmem:[%s5 + $0x34] sm:$0xf]
    %v2425 = vld [vmem:[%s5 + $0x38] sm:$0xf]
    %v2426 = vld [vmem:[%s5 + $0x3c] sm:$0xf]
    %v2427 = vld [vmem:[%s5 + $0x40] sm:$0xf]
    %v2428 = vld [vmem:[%s5 + $0x44] sm:$0xf]
    %v2429 = vld [vmem:[%s5 + $0x48] sm:$0xf]
    %v2430 = vld [vmem:[%s5 + $0x4c] sm:$0xf]
    %v2431 = vld [vmem:[%s5 + $0x50] sm:$0xf]
    %v2432 = vld [vmem:[%s5 + $0x54] sm:$0xf]
    %v2433 = vld [vmem:[%s5 + $0x58] sm:$0xf]
    %v2434 = vld [vmem:[%s5 + $0x5c] sm:$0xf]
    %v2435 = vld [vmem:[%s5 + $0x60] sm:$0xf]
    %v2436 = vld [vmem:[%s5 + $0x64] sm:$0xf]
    %v2437 = vld [vmem:[%s5 + $0x68] sm:$0xf]
    %v2438 = vld [vmem:[%s5 + $0x6c] sm:$0xf]
    %v2439 = vld [vmem:[%s5 + $0x70] sm:$0xf]
    %v2440 = vld [vmem:[%s5 + $0x74] sm:$0xf]
    %v2441 = vld [vmem:[%s5 + $0x78] sm:$0xf]
    %v2442 = vld [vmem:[%s5 + $0x7c] sm:$0xf]
    %v2443 = vld [vmem:[%s5 + $0x80] sm:$0xf]
    %v2444 = vld [vmem:[%s5 + $0x84] sm:$0xf]
    %v2445 = vld [vmem:[%s5 + $0x88] sm:$0xf]
    %v2446 = vld [vmem:[%s5 + $0x8c] sm:$0xf]
    %v2447 = vld [vmem:[%s5 + $0x90] sm:$0xf]
    %v2448 = vld [vmem:[%s5 + $0x94] sm:$0xf]
    %v2449 = vld [vmem:[%s5 + $0x98] sm:$0xf]
    %v2450 = vld [vmem:[%s5 + $0x9c] sm:$0xf]
    %v2451 = vld [vmem:[%s5 + $0xa0] sm:$0xf]
    %v2452 = vld [vmem:[%s5 + $0xa4] sm:$0xf]
    %v2453 = vld [vmem:[%s5 + $0xa8] sm:$0xf]
    %v2454 = vld [vmem:[%s5 + $0xac] sm:$0xf]
    %v2455 = vld [vmem:[%s5 + $0xb0] sm:$0xf]
    %v2456 = vld [vmem:[%s5 + $0xb4] sm:$0xf]
    %v2457 = vld [vmem:[%s5 + $0xb8] sm:$0xf]
    %v2458 = vld [vmem:[%s5 + $0xbc] sm:$0xf]
    %v2459 = vld [vmem:[%s5 + $0xc0] sm:$0xf]
    %v2460 = vld [vmem:[%s5 + $0xc4] sm:$0xf]
    %v2461 = vld [vmem:[%s5 + $0xc8] sm:$0xf]
    %v2462 = vld [vmem:[%s5 + $0xcc] sm:$0xf]
    %v2463 = vld [vmem:[%s5 + $0xd0] sm:$0xf]
    %v2464 = vld [vmem:[%s5 + $0xd4] sm:$0xf]
    %v2465 = vld [vmem:[%s5 + $0xd8] sm:$0xf]
    %v2466 = vld [vmem:[%s5 + $0xdc] sm:$0xf]
    %v2467 = vld [vmem:[%s5 + $0xe0] sm:$0xf]
    %v2468 = vld [vmem:[%s5 + $0xe4] sm:$0xf]
    %v2469 = vld [vmem:[%s5 + $0xe8] sm:$0xf]
    %v2470 = vld [vmem:[%s5 + $0xec] sm:$0xf]
    %v2471 = vld [vmem:[%s5 + $0xf0] sm:$0xf]
    %v2472 = vld [vmem:[%s5 + $0xf4] sm:$0xf]
    %v2473 = vld [vmem:[%s5 + $0xf8] sm:$0xf]
    %v2474 = vld [vmem:[%s5 + $0xfc] sm:$0xf]
    %v2475 = vld [vmem:[%s6] sm:$0x1]
    %v2477 = vlaneseq
    %v2478 = vshrl.u32 %v2477, 7
    %v2479 = vsub.s32 0, %v2478
    %v2480 = vrot.slane %v2475, %v2479
    %v2546 = vunpack.c.l.b16 %v2411
    %v2547 = vunpack.c.l.b16 %v2412
    %v2548 = vunpack.c.l.b16 %v2413
    %v2549 = vunpack.c.l.b16 %v2414
    %v2550 = vunpack.c.l.b16 %v2415
    %v2551 = vunpack.c.l.b16 %v2416
    %v2552 = vunpack.c.l.b16 %v2417
    %v2553 = vunpack.c.l.b16 %v2418
    %v2554 = vunpack.c.l.b16 %v2419
    %v2555 = vunpack.c.l.b16 %v2420
    %v2556 = vunpack.c.l.b16 %v2421
    %v2557 = vunpack.c.l.b16 %v2422
    %v2558 = vunpack.c.l.b16 %v2423
    %v2559 = vunpack.c.l.b16 %v2424
    %v2560 = vunpack.c.l.b16 %v2425
    %v2561 = vunpack.c.l.b16 %v2426
    %v2562 = vunpack.c.l.b16 %v2427
    %v2563 = vunpack.c.l.b16 %v2428
    %v2564 = vunpack.c.l.b16 %v2429
    %v2565 = vunpack.c.l.b16 %v2430
    %v2566 = vunpack.c.l.b16 %v2431
    %v2567 = vunpack.c.l.b16 %v2432
    %v2568 = vunpack.c.l.b16 %v2433
    %v2569 = vunpack.c.l.b16 %v2434
    %v2570 = vunpack.c.l.b16 %v2435
    %v2571 = vunpack.c.l.b16 %v2436
    %v2572 = vunpack.c.l.b16 %v2437
    %v2573 = vunpack.c.l.b16 %v2438
    %v2574 = vunpack.c.l.b16 %v2439
    %v2575 = vunpack.c.l.b16 %v2440
    %v2576 = vunpack.c.l.b16 %v2441
    %v2577 = vunpack.c.l.b16 %v2442
    %v2578 = vunpack.c.l.b16 %v2443
    %v2579 = vunpack.c.l.b16 %v2444
    %v2580 = vunpack.c.l.b16 %v2445
    %v2581 = vunpack.c.l.b16 %v2446
    %v2582 = vunpack.c.l.b16 %v2447
    %v2583 = vunpack.c.l.b16 %v2448
    %v2584 = vunpack.c.l.b16 %v2449
    %v2585 = vunpack.c.l.b16 %v2450
    %v2586 = vunpack.c.l.b16 %v2451
    %v2587 = vunpack.c.l.b16 %v2452
    %v2588 = vunpack.c.l.b16 %v2453
    %v2589 = vunpack.c.l.b16 %v2454
    %v2590 = vunpack.c.l.b16 %v2455
    %v2591 = vunpack.c.l.b16 %v2456
    %v2592 = vunpack.c.l.b16 %v2457
    %v2593 = vunpack.c.l.b16 %v2458
    %v2594 = vunpack.c.l.b16 %v2459
    %v2595 = vunpack.c.l.b16 %v2460
    %v2596 = vunpack.c.l.b16 %v2461
    %v2597 = vunpack.c.l.b16 %v2462
    %v2598 = vunpack.c.l.b16 %v2463
    %v2599 = vunpack.c.l.b16 %v2464
    %v2600 = vunpack.c.l.b16 %v2465
    %v2601 = vunpack.c.l.b16 %v2466
    %v2602 = vunpack.c.l.b16 %v2467
    %v2603 = vunpack.c.l.b16 %v2468
    %v2604 = vunpack.c.l.b16 %v2469
    %v2605 = vunpack.c.l.b16 %v2470
    %v2606 = vunpack.c.l.b16 %v2471
    %v2607 = vunpack.c.l.b16 %v2472
    %v2608 = vunpack.c.l.b16 %v2473
    %v2609 = vunpack.c.l.b16 %v2474
    %v2610 = vpack.c.b16 %v2547, %v2546
    %v2611 = vpack.c.b16 %v2549, %v2548
    %v2612 = vpack.c.b16 %v2551, %v2550
    %v2613 = vpack.c.b16 %v2553, %v2552
    %v2614 = vpack.c.b16 %v2555, %v2554
    %v2615 = vpack.c.b16 %v2557, %v2556
    %v2616 = vpack.c.b16 %v2559, %v2558
    %v2617 = vpack.c.b16 %v2561, %v2560
    %v2618 = vpack.c.b16 %v2563, %v2562
    %v2619 = vpack.c.b16 %v2565, %v2564
    %v2620 = vpack.c.b16 %v2567, %v2566
    %v2621 = vpack.c.b16 %v2569, %v2568
    %v2622 = vpack.c.b16 %v2571, %v2570
    %v2623 = vpack.c.b16 %v2573, %v2572
    %v2624 = vpack.c.b16 %v2575, %v2574
    %v2625 = vpack.c.b16 %v2577, %v2576
    %v2626 = vpack.c.b16 %v2579, %v2578
    %v2627 = vpack.c.b16 %v2581, %v2580
    %v2628 = vpack.c.b16 %v2583, %v2582
    %v2629 = vpack.c.b16 %v2585, %v2584
    %v2630 = vpack.c.b16 %v2587, %v2586
    %v2631 = vpack.c.b16 %v2589, %v2588
    %v2632 = vpack.c.b16 %v2591, %v2590
    %v2633 = vpack.c.b16 %v2593, %v2592
    %v2634 = vpack.c.b16 %v2595, %v2594
    %v2635 = vpack.c.b16 %v2597, %v2596
    %v2636 = vpack.c.b16 %v2599, %v2598
    %v2637 = vpack.c.b16 %v2601, %v2600
    %v2638 = vpack.c.b16 %v2603, %v2602
    %v2639 = vpack.c.b16 %v2605, %v2604
    %v2640 = vpack.c.b16 %v2607, %v2606
    %v2641 = vpack.c.b16 %v2609, %v2608
    %2674 = vmatprep.subr.bf16.mxu0 0
    %2675 = vmatpush1.bf16.msra.mxu0 %v2617
    %2676 = vmatprep.subr.bf16.mxu0 0
    %2677 = vmatpush1.bf16.msra.mxu0 %v2616
    %2678 = vmatprep.subr.bf16.mxu0 0
    %2679 = vmatpush1.bf16.msra.mxu0 %v2615
    %2680 = vmatprep.subr.bf16.mxu0 0
    %2681 = vmatpush1.bf16.msra.mxu0 %v2614
    %2682 = vmatprep.subr.bf16.mxu0 0
    %2683 = vmatpush1.bf16.msra.mxu0 %v2613
    %2684 = vmatprep.subr.bf16.mxu0 0
    %2685 = vmatpush1.bf16.msra.mxu0 %v2612
    %2686 = vmatprep.subr.bf16.mxu0 0
    %2687 = vmatpush1.bf16.msra.mxu0 %v2611
    %2688 = vmatprep.subr.bf16.mxu0 0
    %2689 = vmatpush1.bf16.msra.mxu0 %v2610
    %2690 = vmatprep.subr.bf16.mxu0 0
    %2691 = vmatpush2.bf16.msra.mxu0 %v2625
    %2692 = vmatprep.subr.bf16.mxu0 0
    %2693 = vmatpush2.bf16.msra.mxu0 %v2624
    %2694 = vmatprep.subr.bf16.mxu0 0
    %2695 = vmatpush2.bf16.msra.mxu0 %v2623
    %2696 = vmatprep.subr.bf16.mxu0 0
    %2697 = vmatpush2.bf16.msra.mxu0 %v2622
    %2698 = vmatprep.subr.bf16.mxu0 0
    %2699 = vmatpush2.bf16.msra.mxu0 %v2621
    %2700 = vmatprep.subr.bf16.mxu0 0
    %2701 = vmatpush2.bf16.msra.mxu0 %v2620
    %2702 = vmatprep.subr.bf16.mxu0 0
    %2703 = vmatpush2.bf16.msra.mxu0 %v2619
    %2704 = vmatprep.subr.bf16.mxu0 0
    %2705 = vmatpush2.bf16.msra.mxu0 %v2618
    %2706 = vmatprep.mubr.bf16.mxu0 %v2183
    %2707 = vmatmul.mubr.bf16.gmra.mxu0 %v2149
    %v2708 = vpop.f32.mrf.mxu0
    %v2709 = vadd.f32 %v2480, %v2708
    %v2710 = vpop.f32.mrf.mxu0
    %v2711 = vpop.f32.mrf.mxu0
    %v2712 = vadd.f32 %v2480, %v2711
    %v2713 = vpop.f32.mrf.mxu0
    %2714 = vmatprep.mubr.bf16.mxu0 %v2191
    %2715 = vmatmul.mubr.bf16.gmra.mxu0 %v2150
    %v2716 = vpop.f32.mrf.mxu0
    %v2717 = vadd.f32 %v2480, %v2716
    %v2718 = vpop.f32.mrf.mxu0
    %v2719 = vpop.f32.mrf.mxu0
    %v2720 = vadd.f32 %v2480, %v2719
    %v2721 = vpop.f32.mrf.mxu0
    %2722 = vmatprep.mubr.bf16.mxu0 %v2199
    %2723 = vmatmul.mubr.bf16.gmra.mxu0 %v2151
    %v2724 = vpop.f32.mrf.mxu0
    %v2725 = vadd.f32 %v2480, %v2724
    %v2726 = vpop.f32.mrf.mxu0
    %v2727 = vpop.f32.mrf.mxu0
    %v2728 = vadd.f32 %v2480, %v2727
    %v2729 = vpop.f32.mrf.mxu0
    %2730 = vmatprep.mubr.bf16.mxu0 %v2207
    %2731 = vmatmul.mubr.bf16.gmra.mxu0 %v2152
    %v2732 = vpop.f32.mrf.mxu0
    %v2733 = vadd.f32 %v2480, %v2732
    %v2734 = vpop.f32.mrf.mxu0
    %v2735 = vpop.f32.mrf.mxu0
    %v2736 = vadd.f32 %v2480, %v2735
    %v2737 = vpop.f32.mrf.mxu0
    %2738 = vmatprep.mubr.bf16.mxu0 %v2215
    %2739 = vmatmul.mubr.bf16.gmra.mxu0 %v2153
    %v2740 = vpop.f32.mrf.mxu0
    %v2741 = vadd.f32 %v2480, %v2740
    %v2742 = vpop.f32.mrf.mxu0
    %v2743 = vpop.f32.mrf.mxu0
    %v2744 = vadd.f32 %v2480, %v2743
    %v2745 = vpop.f32.mrf.mxu0
    %2746 = vmatprep.mubr.bf16.mxu0 %v2223
    %2747 = vmatmul.mubr.bf16.gmra.mxu0 %v2154
    %v2748 = vpop.f32.mrf.mxu0
    %v2749 = vadd.f32 %v2480, %v2748
    %v2750 = vpop.f32.mrf.mxu0
    %v2751 = vpop.f32.mrf.mxu0
    %v2752 = vadd.f32 %v2480, %v2751
    %v2753 = vpop.f32.mrf.mxu0
    %2754 = vmatprep.mubr.bf16.mxu0 %v2231
    %2755 = vmatmul.mubr.bf16.gmra.mxu0 %v2155
    %v2756 = vpop.f32.mrf.mxu0
    %v2757 = vadd.f32 %v2480, %v2756
    %v2758 = vpop.f32.mrf.mxu0
    %v2759 = vpop.f32.mrf.mxu0
    %v2760 = vadd.f32 %v2480, %v2759
    %v2761 = vpop.f32.mrf.mxu0
    %2762 = vmatprep.mubr.bf16.mxu0 %v2239
    %2763 = vmatmul.mubr.bf16.gmra.mxu0 %v2156
    %v2764 = vpop.f32.mrf.mxu0
    %v2765 = vadd.f32 %v2480, %v2764
    %v2766 = vpop.f32.mrf.mxu0
    %v2767 = vpop.f32.mrf.mxu0
    %v2768 = vadd.f32 %v2480, %v2767
    %v2769 = vpop.f32.mrf.mxu0
    %2770 = vmatprep.mubr.bf16.mxu0 %v2247
    %2771 = vmatmul.mubr.bf16.gmra.mxu0 %v2157
    %v2772 = vpop.f32.mrf.mxu0
    %v2773 = vadd.f32 %v2480, %v2772
    %v2774 = vpop.f32.mrf.mxu0
    %v2775 = vpop.f32.mrf.mxu0
    %v2776 = vadd.f32 %v2480, %v2775
    %v2777 = vpop.f32.mrf.mxu0
    %2778 = vmatprep.mubr.bf16.mxu0 %v2255
    %2779 = vmatmul.mubr.bf16.gmra.mxu0 %v2158
    %v2780 = vpop.f32.mrf.mxu0
    %v2781 = vadd.f32 %v2480, %v2780
    %v2782 = vpop.f32.mrf.mxu0
    %v2783 = vpop.f32.mrf.mxu0
    %v2784 = vadd.f32 %v2480, %v2783
    %v2785 = vpop.f32.mrf.mxu0
    %2786 = vmatprep.mubr.bf16.mxu0 %v2258
    %2787 = vmatmul.mubr.bf16.gmra.mxu0 %v2159
    %v2788 = vpop.f32.mrf.mxu0
    %v2789 = vadd.f32 %v2480, %v2788
    %v2790 = vpop.f32.mrf.mxu0
    %v2791 = vpop.f32.mrf.mxu0
    %v2792 = vpop.f32.mrf.mxu0
    %2793 = vdwg.mxu0
    %2794 = vmatprep.subr.bf16.mxu0 0
    %2795 = vmatpush1.bf16.msra.mxu0 %v2633
    %2796 = vmatprep.subr.bf16.mxu0 0
    %2797 = vmatpush1.bf16.msra.mxu0 %v2632
    %2798 = vmatprep.subr.bf16.mxu0 0
    %2799 = vmatpush1.bf16.msra.mxu0 %v2631
    %2800 = vmatprep.subr.bf16.mxu0 0
    %2801 = vmatpush1.bf16.msra.mxu0 %v2630
    %2802 = vmatprep.subr.bf16.mxu0 0
    %2803 = vmatpush1.bf16.msra.mxu0 %v2629
    %2804 = vmatprep.subr.bf16.mxu0 0
    %2805 = vmatpush1.bf16.msra.mxu0 %v2628
    %2806 = vmatprep.subr.bf16.mxu0 0
    %2807 = vmatpush1.bf16.msra.mxu0 %v2627
    %2808 = vmatprep.subr.bf16.mxu0 0
    %2809 = vmatpush1.bf16.msra.mxu0 %v2626
    %2810 = vmatprep.subr.bf16.mxu0 0
    %2811 = vmatpush2.bf16.msra.mxu0 %v2641
    %2812 = vmatprep.subr.bf16.mxu0 0
    %2813 = vmatpush2.bf16.msra.mxu0 %v2640
    %2814 = vmatprep.subr.bf16.mxu0 0
    %2815 = vmatpush2.bf16.msra.mxu0 %v2639
    %2816 = vmatprep.subr.bf16.mxu0 0
    %2817 = vmatpush2.bf16.msra.mxu0 %v2638
    %2818 = vmatprep.subr.bf16.mxu0 0
    %2819 = vmatpush2.bf16.msra.mxu0 %v2637
    %2820 = vmatprep.subr.bf16.mxu0 0
    %2821 = vmatpush2.bf16.msra.mxu0 %v2636
    %2822 = vmatprep.subr.bf16.mxu0 0
    %2823 = vmatpush2.bf16.msra.mxu0 %v2635
    %2824 = vmatprep.subr.bf16.mxu0 0
    %2825 = vmatpush2.bf16.msra.mxu0 %v2634
    %2826 = vmatprep.mubr.bf16.mxu0 %v2381
    %2827 = vmatmul.mubr.bf16.gmra.mxu0 %v2281
    %v2828 = vpop.f32.mrf.mxu0
    %v2829 = vadd.f32 %v2709, %v2828
    %v2830 = vpop.f32.mrf.mxu0
    %v2831 = vpop.f32.mrf.mxu0
    %v2832 = vadd.f32 %v2712, %v2831
    %v2833 = vpop.f32.mrf.mxu0
    %2834 = vmatprep.mubr.bf16.mxu0 %v2383
    %2835 = vmatmul.mubr.bf16.gmra.mxu0 %v2289
    %v2836 = vpop.f32.mrf.mxu0
    %v2837 = vadd.f32 %v2717, %v2836
    %v2838 = vpop.f32.mrf.mxu0
    %v2839 = vpop.f32.mrf.mxu0
    %v2840 = vadd.f32 %v2720, %v2839
    %v2841 = vpop.f32.mrf.mxu0
    %2842 = vmatprep.mubr.bf16.mxu0 %v2385
    %2843 = vmatmul.mubr.bf16.gmra.mxu0 %v2297
    %v2844 = vpop.f32.mrf.mxu0
    %v2845 = vadd.f32 %v2725, %v2844
    %v2846 = vpop.f32.mrf.mxu0
    %v2847 = vpop.f32.mrf.mxu0
    %v2848 = vadd.f32 %v2728, %v2847
    %v2849 = vpop.f32.mrf.mxu0
    %2850 = vmatprep.mubr.bf16.mxu0 %v2387
    %2851 = vmatmul.mubr.bf16.gmra.mxu0 %v2305
    %v2852 = vpop.f32.mrf.mxu0
    %v2853 = vadd.f32 %v2733, %v2852
    %v2854 = vpop.f32.mrf.mxu0
    %v2855 = vpop.f32.mrf.mxu0
    %v2856 = vadd.f32 %v2736, %v2855
    %v2857 = vpop.f32.mrf.mxu0
    %2858 = vmatprep.mubr.bf16.mxu0 %v2389
    %2859 = vmatmul.mubr.bf16.gmra.mxu0 %v2313
    %v2860 = vpop.f32.mrf.mxu0
    %v2861 = vadd.f32 %v2741, %v2860
    %v2862 = vpop.f32.mrf.mxu0
    %v2863 = vpop.f32.mrf.mxu0
    %v2864 = vadd.f32 %v2744, %v2863
    %v2865 = vpop.f32.mrf.mxu0
    %2866 = vmatprep.mubr.bf16.mxu0 %v2391
    %2867 = vmatmul.mubr.bf16.gmra.mxu0 %v2321
    %v2868 = vpop.f32.mrf.mxu0
    %v2869 = vadd.f32 %v2749, %v2868
    %v2870 = vpop.f32.mrf.mxu0
    %v2871 = vpop.f32.mrf.mxu0
    %v2872 = vadd.f32 %v2752, %v2871
    %v2873 = vpop.f32.mrf.mxu0
    %2874 = vmatprep.mubr.bf16.mxu0 %v2393
    %2875 = vmatmul.mubr.bf16.gmra.mxu0 %v2329
    %v2876 = vpop.f32.mrf.mxu0
    %v2877 = vadd.f32 %v2757, %v2876
    %v2878 = vpop.f32.mrf.mxu0
    %v2879 = vpop.f32.mrf.mxu0
    %v2880 = vadd.f32 %v2760, %v2879
    %v2881 = vpop.f32.mrf.mxu0
    %2882 = vmatprep.mubr.bf16.mxu0 %v2395
    %2883 = vmatmul.mubr.bf16.gmra.mxu0 %v2337
    %v2884 = vpop.f32.mrf.mxu0
    %v2885 = vadd.f32 %v2765, %v2884
    %v2886 = vpop.f32.mrf.mxu0
    %v2887 = vpop.f32.mrf.mxu0
    %v2888 = vadd.f32 %v2768, %v2887
    %v2889 = vpop.f32.mrf.mxu0
    %2890 = vmatprep.mubr.bf16.mxu0 %v2397
    %2891 = vmatmul.mubr.bf16.gmra.mxu0 %v2345
    %v2892 = vpop.f32.mrf.mxu0
    %v2893 = vadd.f32 %v2773, %v2892
    %v2894 = vpop.f32.mrf.mxu0
    %v2895 = vpop.f32.mrf.mxu0
    %v2896 = vadd.f32 %v2776, %v2895
    %v2897 = vpop.f32.mrf.mxu0
    %2898 = vmatprep.mubr.bf16.mxu0 %v2399
    %2899 = vmatmul.mubr.bf16.gmra.mxu0 %v2353
    %v2900 = vpop.f32.mrf.mxu0
    %v2901 = vadd.f32 %v2781, %v2900
    %v2902 = vpop.f32.mrf.mxu0
    %v2903 = vpop.f32.mrf.mxu0
    %v2904 = vadd.f32 %v2784, %v2903
    %v2905 = vpop.f32.mrf.mxu0
    %2906 = vmatprep.mubr.bf16.mxu0 %v2398
    %2907 = vmatmul.mubr.bf16.gmra.mxu0 %v2356
    %v2908 = vpop.f32.mrf.mxu0
    %v2909 = vadd.f32 %v2789, %v2908
    %v2910 = vpop.f32.mrf.mxu0
    %v2911 = vpop.f32.mrf.mxu0
    %v2912 = vpop.f32.mrf.mxu0
    %2913 = vdwg.mxu0
    %v2914 = vmax.f32 %v2829, 0.0
    %v2915 = vmax.f32 %v2832, 0.0
    %v2916 = vmax.f32 %v2837, 0.0
    %v2917 = vmax.f32 %v2840, 0.0
    %v2918 = vmax.f32 %v2845, 0.0
    %v2919 = vmax.f32 %v2848, 0.0
    %v2920 = vmax.f32 %v2853, 0.0
    %v2921 = vmax.f32 %v2856, 0.0
    %v2922 = vmax.f32 %v2861, 0.0
    %v2923 = vmax.f32 %v2864, 0.0
    %v2924 = vmax.f32 %v2869, 0.0
    %v2925 = vmax.f32 %v2872, 0.0
    %v2926 = vmax.f32 %v2877, 0.0
    %v2927 = vmax.f32 %v2880, 0.0
    %v2928 = vmax.f32 %v2885, 0.0
    %v2929 = vmax.f32 %v2888, 0.0
    %v2930 = vmax.f32 %v2893, 0.0
    %v2931 = vmax.f32 %v2896, 0.0
    %v2932 = vmax.f32 %v2901, 0.0
    %v2933 = vmax.f32 %v2904, 0.0
    %v2934 = vmax.f32 %v2909, 0.0
    %v2935 = vpack.c.bf16 %v2915, %v2914
    %v2936 = vpack.c.bf16 %v2917, %v2916
    %v2937 = vpack.c.bf16 %v2919, %v2918
    %v2938 = vpack.c.bf16 %v2921, %v2920
    %v2939 = vpack.c.bf16 %v2923, %v2922
    %v2940 = vpack.c.bf16 %v2925, %v2924
    %v2941 = vpack.c.bf16 %v2927, %v2926
    %v2942 = vpack.c.bf16 %v2929, %v2928
    %v2943 = vpack.c.bf16 %v2931, %v2930
    %v2944 = vpack.c.bf16 %v2932, %v2932
    %v2945 = vpack.c.bf16 %v2916, %v2915
    %v2946 = vpack.c.bf16 %v2918, %v2917
    %v2947 = vpack.c.bf16 %v2920, %v2919
    %v2948 = vpack.c.bf16 %v2922, %v2921
    %v2949 = vpack.c.bf16 %v2924, %v2923
    %v2950 = vpack.c.bf16 %v2926, %v2925
    %v2951 = vpack.c.bf16 %v2928, %v2927
    %v2952 = vpack.c.bf16 %v2930, %v2929
    %v2953 = vpack.c.bf16 %v2932, %v2931
    %v2954 = vpack.c.bf16 %v2933, %v2933
    %v2955 = vpack.c.bf16 %v2933, %v2932
    %v2956 = vpack.c.bf16 %v2934, %v2934
    %v2958 = vshrl.u32 %v2935, 16
    %v2960 = vshll.u32 %v2935, 16
    %v2962 = vrot.slane %v2960, 1
    %v2963 = vor.u32 %v2958, %v2962
    %v2965 = vshll.u32 %v2936, 16
    %v2967 = vrot.slane %v2965, 1
    %v2968 = vsel %vm428, %v2963, %v2967
    %v2969 = vshrl.u32 %v2936, 16
    %v2971 = vor.u32 %v2969, %v2967
    %v2973 = vshll.u32 %v2937, 16
    %v2975 = vrot.slane %v2973, 1
    %v2976 = vsel %vm428, %v2971, %v2975
    %v2977 = vshrl.u32 %v2937, 16
    %v2979 = vor.u32 %v2977, %v2975
    %v2981 = vshll.u32 %v2938, 16
    %v2983 = vrot.slane %v2981, 1
    %v2984 = vsel %vm428, %v2979, %v2983
    %v2985 = vshrl.u32 %v2938, 16
    %v2987 = vor.u32 %v2985, %v2983
    %v2989 = vshll.u32 %v2939, 16
    %v2991 = vrot.slane %v2989, 1
    %v2992 = vsel %vm428, %v2987, %v2991
    %v2993 = vshrl.u32 %v2939, 16
    %v2995 = vor.u32 %v2993, %v2991
    %v2997 = vshll.u32 %v2940, 16
    %v2999 = vrot.slane %v2997, 1
    %v3000 = vsel %vm428, %v2995, %v2999
    %v3001 = vshrl.u32 %v2940, 16
    %v3003 = vor.u32 %v3001, %v2999
    %v3005 = vshll.u32 %v2941, 16
    %v3007 = vrot.slane %v3005, 1
    %v3008 = vsel %vm428, %v3003, %v3007
    %v3009 = vshrl.u32 %v2941, 16
    %v3011 = vor.u32 %v3009, %v3007
    %v3013 = vshll.u32 %v2942, 16
    %v3015 = vrot.slane %v3013, 1
    %v3016 = vsel %vm428, %v3011, %v3015
    %v3017 = vshrl.u32 %v2942, 16
    %v3019 = vor.u32 %v3017, %v3015
    %v3021 = vshll.u32 %v2943, 16
    %v3023 = vrot.slane %v3021, 1
    %v3024 = vsel %vm428, %v3019, %v3023
    %v3025 = vshrl.u32 %v2943, 16
    %v3027 = vor.u32 %v3025, %v3023
    %v3029 = vshll.u32 %v2944, 16
    %v3031 = vrot.slane %v3029, 1
    %v3032 = vsel %vm428, %v3027, %v3031
    %v3052 = vrot.slane %v2935, 1
    %v3053 = vrot.slane %v2936, 1
    %v3054 = vsel %vm548, %v3052, %v3053
    %v3055 = vrot.slane %v2937, 1
    %v3056 = vsel %vm548, %v3053, %v3055
    %v3057 = vrot.slane %v2938, 1
    %v3058 = vsel %vm548, %v3055, %v3057
    %v3059 = vrot.slane %v2939, 1
    %v3060 = vsel %vm548, %v3057, %v3059
    %v3061 = vrot.slane %v2940, 1
    %v3062 = vsel %vm548, %v3059, %v3061
    %v3063 = vrot.slane %v2941, 1
    %v3064 = vsel %vm548, %v3061, %v3063
    %v3065 = vrot.slane %v2942, 1
    %v3066 = vsel %vm548, %v3063, %v3065
    %v3067 = vrot.slane %v2943, 1
    %v3068 = vsel %vm548, %v3065, %v3067
    %v3069 = vrot.slane %v2944, 1
    %v3070 = vsel %vm548, %v3067, %v3069
    %v3080 = vrot.slane %v2958, 1
    %v3081 = vrot.slane %v2960, 2
    %v3082 = vor.u32 %v3080, %v3081
    %v3083 = vrot.slane %v2969, 1
    %v3084 = vrot.slane %v2965, 2
    %v3085 = vor.u32 %v3083, %v3084
    %v3086 = vsel %vm738, %v3082, %v3085
    %v3087 = vrot.slane %v2977, 1
    %v3088 = vrot.slane %v2973, 2
    %v3089 = vor.u32 %v3087, %v3088
    %v3090 = vsel %vm738, %v3085, %v3089
    %v3091 = vrot.slane %v2985, 1
    %v3092 = vrot.slane %v2981, 2
    %v3093 = vor.u32 %v3091, %v3092
    %v3094 = vsel %vm738, %v3089, %v3093
    %v3095 = vrot.slane %v2993, 1
    %v3096 = vrot.slane %v2989, 2
    %v3097 = vor.u32 %v3095, %v3096
    %v3098 = vsel %vm738, %v3093, %v3097
    %v3099 = vrot.slane %v3001, 1
    %v3100 = vrot.slane %v2997, 2
    %v3101 = vor.u32 %v3099, %v3100
    %v3102 = vsel %vm738, %v3097, %v3101
    %v3103 = vrot.slane %v3009, 1
    %v3104 = vrot.slane %v3005, 2
    %v3105 = vor.u32 %v3103, %v3104
    %v3106 = vsel %vm738, %v3101, %v3105
    %v3107 = vrot.slane %v3017, 1
    %v3108 = vrot.slane %v3013, 2
    %v3109 = vor.u32 %v3107, %v3108
    %v3110 = vsel %vm738, %v3105, %v3109
    %v3111 = vrot.slane %v3025, 1
    %v3112 = vrot.slane %v3021, 2
    %v3113 = vor.u32 %v3111, %v3112
    %v3114 = vsel %vm738, %v3109, %v3113
    %v3115 = vshrl.u32 %v2944, 16
    %v3117 = vrot.slane %v3115, 1
    %v3118 = vrot.slane %v3029, 2
    %v3119 = vor.u32 %v3117, %v3118
    %v3120 = vsel %vm738, %v3113, %v3119
    %v3131 = vshrl.u32 %v2945, 16
    %v3133 = vshll.u32 %v2945, 16
    %v3135 = vrot.slane %v3133, 1
    %v3136 = vor.u32 %v3131, %v3135
    %v3138 = vshll.u32 %v2946, 16
    %v3140 = vrot.slane %v3138, 1
    %v3141 = vsel %vm428, %v3136, %v3140
    %v3142 = vshrl.u32 %v2946, 16
    %v3144 = vor.u32 %v3142, %v3140
    %v3146 = vshll.u32 %v2947, 16
    %v3148 = vrot.slane %v3146, 1
    %v3149 = vsel %vm428, %v3144, %v3148
    %v3150 = vshrl.u32 %v2947, 16
    %v3152 = vor.u32 %v3150, %v3148
    %v3154 = vshll.u32 %v2948, 16
    %v3156 = vrot.slane %v3154, 1
    %v3157 = vsel %vm428, %v3152, %v3156
    %v3158 = vshrl.u32 %v2948, 16
    %v3160 = vor.u32 %v3158, %v3156
    %v3162 = vshll.u32 %v2949, 16
    %v3164 = vrot.slane %v3162, 1
    %v3165 = vsel %vm428, %v3160, %v3164
    %v3166 = vshrl.u32 %v2949, 16
    %v3168 = vor.u32 %v3166, %v3164
    %v3170 = vshll.u32 %v2950, 16
    %v3172 = vrot.slane %v3170, 1
    %v3173 = vsel %vm428, %v3168, %v3172
    %v3174 = vshrl.u32 %v2950, 16
    %v3176 = vor.u32 %v3174, %v3172
    %v3178 = vshll.u32 %v2951, 16
    %v3180 = vrot.slane %v3178, 1
    %v3181 = vsel %vm428, %v3176, %v3180
    %v3182 = vshrl.u32 %v2951, 16
    %v3184 = vor.u32 %v3182, %v3180
    %v3186 = vshll.u32 %v2952, 16
    %v3188 = vrot.slane %v3186, 1
    %v3189 = vsel %vm428, %v3184, %v3188
    %v3190 = vshrl.u32 %v2952, 16
    %v3192 = vor.u32 %v3190, %v3188
    %v3194 = vshll.u32 %v2953, 16
    %v3196 = vrot.slane %v3194, 1
    %v3197 = vsel %vm428, %v3192, %v3196
    %v3198 = vshrl.u32 %v2953, 16
    %v3200 = vor.u32 %v3198, %v3196
    %v3202 = vshll.u32 %v2954, 16
    %v3204 = vrot.slane %v3202, 1
    %v3205 = vsel %vm428, %v3200, %v3204
    %v3225 = vrot.slane %v2945, 1
    %v3226 = vrot.slane %v2946, 1
    %v3227 = vsel %vm548, %v3225, %v3226
    %v3228 = vrot.slane %v2947, 1
    %v3229 = vsel %vm548, %v3226, %v3228
    %v3230 = vrot.slane %v2948, 1
    %v3231 = vsel %vm548, %v3228, %v3230
    %v3232 = vrot.slane %v2949, 1
    %v3233 = vsel %vm548, %v3230, %v3232
    %v3234 = vrot.slane %v2950, 1
    %v3235 = vsel %vm548, %v3232, %v3234
    %v3236 = vrot.slane %v2951, 1
    %v3237 = vsel %vm548, %v3234, %v3236
    %v3238 = vrot.slane %v2952, 1
    %v3239 = vsel %vm548, %v3236, %v3238
    %v3240 = vrot.slane %v2953, 1
    %v3241 = vsel %vm548, %v3238, %v3240
    %v3242 = vrot.slane %v2954, 1
    %v3243 = vsel %vm548, %v3240, %v3242
    %v3253 = vrot.slane %v3131, 1
    %v3254 = vrot.slane %v3133, 2
    %v3255 = vor.u32 %v3253, %v3254
    %v3256 = vrot.slane %v3142, 1
    %v3257 = vrot.slane %v3138, 2
    %v3258 = vor.u32 %v3256, %v3257
    %v3259 = vsel %vm738, %v3255, %v3258
    %v3260 = vrot.slane %v3150, 1
    %v3261 = vrot.slane %v3146, 2
    %v3262 = vor.u32 %v3260, %v3261
    %v3263 = vsel %vm738, %v3258, %v3262
    %v3264 = vrot.slane %v3158, 1
    %v3265 = vrot.slane %v3154, 2
    %v3266 = vor.u32 %v3264, %v3265
    %v3267 = vsel %vm738, %v3262, %v3266
    %v3268 = vrot.slane %v3166, 1
    %v3269 = vrot.slane %v3162, 2
    %v3270 = vor.u32 %v3268, %v3269
    %v3271 = vsel %vm738, %v3266, %v3270
    %v3272 = vrot.slane %v3174, 1
    %v3273 = vrot.slane %v3170, 2
    %v3274 = vor.u32 %v3272, %v3273
    %v3275 = vsel %vm738, %v3270, %v3274
    %v3276 = vrot.slane %v3182, 1
    %v3277 = vrot.slane %v3178, 2
    %v3278 = vor.u32 %v3276, %v3277
    %v3279 = vsel %vm738, %v3274, %v3278
    %v3280 = vrot.slane %v3190, 1
    %v3281 = vrot.slane %v3186, 2
    %v3282 = vor.u32 %v3280, %v3281
    %v3283 = vsel %vm738, %v3278, %v3282
    %v3284 = vrot.slane %v3198, 1
    %v3285 = vrot.slane %v3194, 2
    %v3286 = vor.u32 %v3284, %v3285
    %v3287 = vsel %vm738, %v3282, %v3286
    %v3288 = vshrl.u32 %v2954, 16
    %v3290 = vrot.slane %v3288, 1
    %v3291 = vrot.slane %v3202, 2
    %v3292 = vor.u32 %v3290, %v3291
    %v3293 = vsel %vm738, %v3286, %v3292
    %v3303 = vrot.slane %v2945, 2
    %v3304 = vrot.slane %v2946, 2
    %v3305 = vsel %vm867, %v3303, %v3304
    %v3306 = vrot.slane %v2947, 2
    %v3307 = vsel %vm867, %v3304, %v3306
    %v3308 = vrot.slane %v2948, 2
    %v3309 = vsel %vm867, %v3306, %v3308
    %v3310 = vrot.slane %v2949, 2
    %v3311 = vsel %vm867, %v3308, %v3310
    %v3312 = vrot.slane %v2950, 2
    %v3313 = vsel %vm867, %v3310, %v3312
    %v3314 = vrot.slane %v2951, 2
    %v3315 = vsel %vm867, %v3312, %v3314
    %v3316 = vrot.slane %v2952, 2
    %v3317 = vsel %vm867, %v3314, %v3316
    %v3318 = vrot.slane %v2953, 2
    %v3319 = vsel %vm867, %v3316, %v3318
    %v3320 = vrot.slane %v2954, 2
    %v3321 = vsel %vm867, %v3318, %v3320
    %v3333 = vrot.slane %v2955, 1
    %v3334 = vsel %vm548, %v3067, %v3333
    %v3335 = vrot.slane %v2956, 1
    %v3336 = vsel %vm548, %v3333, %v3335
    %v3340 = vshrl.u32 %v2955, 16
    %v3342 = vrot.slane %v3340, 1
    %v3343 = vshll.u32 %v2955, 16
    %v3345 = vrot.slane %v3343, 2
    %v3346 = vor.u32 %v3342, %v3345
    %v3347 = vsel %vm738, %v3113, %v3346
    %v3349 = vshrl.u32 %v2956, 16
    %v3351 = vrot.slane %v3349, 1
    %v3352 = vshll.u32 %v2956, 16
    %v3354 = vrot.slane %v3352, 2
    %v3355 = vor.u32 %v3351, %v3354
    %v3356 = vsel %vm738, %v3346, %v3355
    %v3359 = vrot.slane %v2936, 2
    %v3360 = vrot.slane %v2937, 2
    %v3361 = vsel %vm867, %v3359, %v3360
    %v3362 = vrot.slane %v2938, 2
    %v3363 = vsel %vm867, %v3360, %v3362
    %v3364 = vrot.slane %v2939, 2
    %v3365 = vsel %vm867, %v3362, %v3364
    %v3366 = vrot.slane %v2940, 2
    %v3367 = vsel %vm867, %v3364, %v3366
    %v3368 = vrot.slane %v2941, 2
    %v3369 = vsel %vm867, %v3366, %v3368
    %v3370 = vrot.slane %v2942, 2
    %v3371 = vsel %vm867, %v3368, %v3370
    %v3372 = vrot.slane %v2943, 2
    %v3373 = vsel %vm867, %v3370, %v3372
    %v3374 = vrot.slane %v2955, 2
    %v3375 = vsel %vm867, %v3372, %v3374
    %v3376 = vrot.slane %v2956, 2
    %v3377 = vsel %vm867, %v3374, %v3376
    %vm3387 = vsmask.f32 5376
    %v3388 = vrot.slane %v2969, 2
    %v3389 = vrot.slane %v2965, 3
    %v3390 = vor.u32 %v3388, %v3389
    %v3391 = vrot.slane %v2977, 2
    %v3392 = vrot.slane %v2973, 3
    %v3393 = vor.u32 %v3391, %v3392
    %v3394 = vsel %vm3387, %v3390, %v3393
    %v3395 = vrot.slane %v2985, 2
    %v3396 = vrot.slane %v2981, 3
    %v3397 = vor.u32 %v3395, %v3396
    %v3398 = vsel %vm3387, %v3393, %v3397
    %v3399 = vrot.slane %v2993, 2
    %v3400 = vrot.slane %v2989, 3
    %v3401 = vor.u32 %v3399, %v3400
    %v3402 = vsel %vm3387, %v3397, %v3401
    %v3403 = vrot.slane %v3001, 2
    %v3404 = vrot.slane %v2997, 3
    %v3405 = vor.u32 %v3403, %v3404
    %v3406 = vsel %vm3387, %v3401, %v3405
    %v3407 = vrot.slane %v3009, 2
    %v3408 = vrot.slane %v3005, 3
    %v3409 = vor.u32 %v3407, %v3408
    %v3410 = vsel %vm3387, %v3405, %v3409
    %v3411 = vrot.slane %v3017, 2
    %v3412 = vrot.slane %v3013, 3
    %v3413 = vor.u32 %v3411, %v3412
    %v3414 = vsel %vm3387, %v3409, %v3413
    %v3415 = vrot.slane %v3025, 2
    %v3416 = vrot.slane %v3021, 3
    %v3417 = vor.u32 %v3415, %v3416
    %v3418 = vsel %vm3387, %v3413, %v3417
    %v3419 = vrot.slane %v3340, 2
    %v3420 = vrot.slane %v3343, 3
    %v3421 = vor.u32 %v3419, %v3420
    %v3422 = vsel %vm3387, %v3417, %v3421
    %v3423 = vrot.slane %v3349, 2
    %v3424 = vrot.slane %v3352, 3
    %v3425 = vor.u32 %v3423, %v3424
    %v3426 = vsel %vm3387, %v3421, %v3425
    %v3436 = vld [vmem:[#allocation4] sm:$0xff]
    %v3437 = vld [vmem:[#allocation4 + $0x8] sm:$0xff]
    %v3438 = vld [vmem:[#allocation4 + $0x10] sm:$0xff]
    %v3439 = vld [vmem:[#allocation4 + $0x18] sm:$0xff]
    %v3440 = vld [vmem:[#allocation4 + $0x20] sm:$0xff]
    %v3441 = vld [vmem:[#allocation4 + $0x28] sm:$0xff]
    %v3442 = vld [vmem:[#allocation4 + $0x30] sm:$0xff]
    %v3443 = vld [vmem:[#allocation4 + $0x38] sm:$0xff]
    %v3444 = vld [vmem:[#allocation4 + $0x40] sm:$0xff]
    %v3445 = vld [vmem:[#allocation4 + $0x48] sm:$0xff]
    %v3446 = vld [vmem:[#allocation4 + $0x50] sm:$0xff]
    %v3447 = vld [vmem:[#allocation4 + $0x58] sm:$0xff]
    %v3448 = vld [vmem:[#allocation4 + $0x60] sm:$0xff]
    %v3449 = vld [vmem:[#allocation4 + $0x68] sm:$0xff]
    %v3450 = vld [vmem:[#allocation4 + $0x70] sm:$0xff]
    %v3451 = vld [vmem:[#allocation4 + $0x78] sm:$0xff]
    %v3452 = vld [vmem:[#allocation4 + $0x80] sm:$0xff]
    %v3453 = vld [vmem:[#allocation4 + $0x88] sm:$0xff]
    %v3454 = vld [vmem:[#allocation4 + $0x90] sm:$0xff]
    %v3455 = vld [vmem:[#allocation4 + $0x98] sm:$0xff]
    %v3456 = vld [vmem:[#allocation4 + $0xa0] sm:$0xff]
    %v3457 = vld [vmem:[#allocation4 + $0xa8] sm:$0xff]
    %v3458 = vld [vmem:[#allocation4 + $0xb0] sm:$0xff]
    %v3459 = vld [vmem:[#allocation4 + $0xb8] sm:$0xff]
    %v3460 = vld [vmem:[#allocation4 + $0xc0] sm:$0xff]
    %v3461 = vld [vmem:[#allocation4 + $0xc8] sm:$0xff]
    %v3462 = vld [vmem:[#allocation4 + $0xd0] sm:$0xff]
    %v3463 = vld [vmem:[#allocation4 + $0xd8] sm:$0xff]
    %v3464 = vld [vmem:[#allocation4 + $0xe0] sm:$0xff]
    %v3465 = vld [vmem:[#allocation4 + $0xe8] sm:$0xff]
    %v3466 = vld [vmem:[#allocation4 + $0xf0] sm:$0xff]
    %v3467 = vld [vmem:[#allocation4 + $0xf8] sm:$0xff]
    %v3468 = vld [vmem:[#allocation4 + $0x100] sm:$0xff]
    %v3469 = vld [vmem:[#allocation4 + $0x108] sm:$0xff]
    %v3470 = vld [vmem:[#allocation4 + $0x110] sm:$0xff]
    %v3471 = vld [vmem:[#allocation4 + $0x118] sm:$0xff]
    %v3472 = vld [vmem:[#allocation4 + $0x120] sm:$0xff]
    %v3473 = vld [vmem:[#allocation4 + $0x128] sm:$0xff]
    %v3474 = vld [vmem:[#allocation4 + $0x130] sm:$0xff]
    %v3475 = vld [vmem:[#allocation4 + $0x138] sm:$0xff]
    %v3476 = vld [vmem:[#allocation4 + $0x140] sm:$0xff]
    %v3477 = vld [vmem:[#allocation4 + $0x148] sm:$0xff]
    %v3478 = vld [vmem:[#allocation4 + $0x150] sm:$0xff]
    %v3479 = vld [vmem:[#allocation4 + $0x158] sm:$0xff]
    %v3480 = vld [vmem:[#allocation4 + $0x160] sm:$0xff]
    %v3481 = vld [vmem:[#allocation4 + $0x168] sm:$0xff]
    %v3482 = vld [vmem:[#allocation4 + $0x170] sm:$0xff]
    %v3483 = vld [vmem:[#allocation4 + $0x178] sm:$0xff]
    %v3484 = vld [vmem:[#allocation4 + $0x180] sm:$0xff]
    %v3485 = vld [vmem:[#allocation4 + $0x188] sm:$0xff]
    %v3486 = vld [vmem:[#allocation4 + $0x190] sm:$0xff]
    %v3487 = vld [vmem:[#allocation4 + $0x198] sm:$0xff]
    %v3488 = vld [vmem:[#allocation4 + $0x1a0] sm:$0xff]
    %v3489 = vld [vmem:[#allocation4 + $0x1a8] sm:$0xff]
    %v3490 = vld [vmem:[#allocation4 + $0x1b0] sm:$0xff]
    %v3491 = vld [vmem:[#allocation4 + $0x1b8] sm:$0xff]
    %v3492 = vld [vmem:[#allocation4 + $0x1c0] sm:$0xff]
    %v3493 = vld [vmem:[#allocation4 + $0x1c8] sm:$0xff]
    %v3494 = vld [vmem:[#allocation4 + $0x1d0] sm:$0xff]
    %v3495 = vld [vmem:[#allocation4 + $0x1d8] sm:$0xff]
    %v3496 = vld [vmem:[#allocation4 + $0x1e0] sm:$0xff]
    %v3497 = vld [vmem:[#allocation4 + $0x1e8] sm:$0xff]
    %v3498 = vld [vmem:[#allocation4 + $0x1f0] sm:$0xff]
    %v3499 = vld [vmem:[#allocation4 + $0x1f8] sm:$0xff]
    %v3500 = vld [vmem:[#allocation4 + $0x200] sm:$0xff]
    %v3501 = vld [vmem:[#allocation4 + $0x208] sm:$0xff]
    %v3502 = vld [vmem:[#allocation4 + $0x210] sm:$0xff]
    %v3503 = vld [vmem:[#allocation4 + $0x218] sm:$0xff]
    %v3504 = vld [vmem:[#allocation4 + $0x220] sm:$0xff]
    %v3505 = vld [vmem:[#allocation4 + $0x228] sm:$0xff]
    %v3506 = vld [vmem:[#allocation4 + $0x230] sm:$0xff]
    %v3507 = vld [vmem:[#allocation4 + $0x238] sm:$0xff]
    %v3508 = vld [vmem:[#allocation4 + $0x240] sm:$0xff]
    %v3509 = vld [vmem:[#allocation4 + $0x248] sm:$0xff]
    %v3510 = vld [vmem:[#allocation4 + $0x250] sm:$0xff]
    %v3511 = vld [vmem:[#allocation4 + $0x258] sm:$0xff]
    %v3512 = vld [vmem:[#allocation4 + $0x260] sm:$0xff]
    %v3513 = vld [vmem:[#allocation4 + $0x268] sm:$0xff]
    %v3514 = vld [vmem:[#allocation4 + $0x270] sm:$0xff]
    %v3515 = vld [vmem:[#allocation4 + $0x278] sm:$0xff]
    %v3516 = vld [vmem:[#allocation4 + $0x280] sm:$0xff]
    %v3517 = vld [vmem:[#allocation4 + $0x288] sm:$0xff]
    %v3518 = vld [vmem:[#allocation4 + $0x290] sm:$0xff]
    %v3519 = vld [vmem:[#allocation4 + $0x298] sm:$0xff]
    %v3520 = vld [vmem:[#allocation4 + $0x2a0] sm:$0xff]
    %v3521 = vld [vmem:[#allocation4 + $0x2a8] sm:$0xff]
    %v3522 = vld [vmem:[#allocation4 + $0x2b0] sm:$0xff]
    %v3523 = vld [vmem:[#allocation4 + $0x2b8] sm:$0xff]
    %v3524 = vld [vmem:[#allocation4 + $0x2c0] sm:$0xff]
    %v3525 = vld [vmem:[#allocation4 + $0x2c8] sm:$0xff]
    %v3526 = vld [vmem:[#allocation4 + $0x2d0] sm:$0xff]
    %v3527 = vld [vmem:[#allocation4 + $0x2d8] sm:$0xff]
    %v3528 = vld [vmem:[#allocation4 + $0x2e0] sm:$0xff]
    %v3529 = vld [vmem:[#allocation4 + $0x2e8] sm:$0xff]
    %v3530 = vld [vmem:[#allocation4 + $0x2f0] sm:$0xff]
    %v3531 = vld [vmem:[#allocation4 + $0x2f8] sm:$0xff]
    %v3532 = vld [vmem:[#allocation4 + $0x300] sm:$0xff]
    %v3533 = vld [vmem:[#allocation4 + $0x308] sm:$0xff]
    %v3534 = vld [vmem:[#allocation4 + $0x310] sm:$0xff]
    %v3535 = vld [vmem:[#allocation4 + $0x318] sm:$0xff]
    %v3536 = vld [vmem:[#allocation4 + $0x320] sm:$0xff]
    %v3537 = vld [vmem:[#allocation4 + $0x328] sm:$0xff]
    %v3538 = vld [vmem:[#allocation4 + $0x330] sm:$0xff]
    %v3539 = vld [vmem:[#allocation4 + $0x338] sm:$0xff]
    %v3540 = vld [vmem:[#allocation4 + $0x340] sm:$0xff]
    %v3541 = vld [vmem:[#allocation4 + $0x348] sm:$0xff]
    %v3542 = vld [vmem:[#allocation4 + $0x350] sm:$0xff]
    %v3543 = vld [vmem:[#allocation4 + $0x358] sm:$0xff]
    %v3544 = vld [vmem:[#allocation4 + $0x360] sm:$0xff]
    %v3545 = vld [vmem:[#allocation4 + $0x368] sm:$0xff]
    %v3546 = vld [vmem:[#allocation4 + $0x370] sm:$0xff]
    %v3547 = vld [vmem:[#allocation4 + $0x378] sm:$0xff]
    %v3548 = vld [vmem:[#allocation4 + $0x380] sm:$0xff]
    %v3549 = vld [vmem:[#allocation4 + $0x388] sm:$0xff]
    %v3550 = vld [vmem:[#allocation4 + $0x390] sm:$0xff]
    %v3551 = vld [vmem:[#allocation4 + $0x398] sm:$0xff]
    %v3552 = vld [vmem:[#allocation4 + $0x3a0] sm:$0xff]
    %v3553 = vld [vmem:[#allocation4 + $0x3a8] sm:$0xff]
    %v3554 = vld [vmem:[#allocation4 + $0x3b0] sm:$0xff]
    %v3555 = vld [vmem:[#allocation4 + $0x3b8] sm:$0xff]
    %v3556 = vld [vmem:[#allocation4 + $0x3c0] sm:$0xff]
    %v3557 = vld [vmem:[#allocation4 + $0x3c8] sm:$0xff]
    %v3558 = vld [vmem:[#allocation4 + $0x3d0] sm:$0xff]
    %v3559 = vld [vmem:[#allocation4 + $0x3d8] sm:$0xff]
    %v3560 = vld [vmem:[#allocation4 + $0x3e0] sm:$0xff]
    %v3561 = vld [vmem:[#allocation4 + $0x3e8] sm:$0xff]
    %v3562 = vld [vmem:[#allocation4 + $0x3f0] sm:$0xff]
    %v3563 = vld [vmem:[#allocation4 + $0x3f8] sm:$0xff]
    %v3564 = vld [vmem:[#allocation4 + $0x400] sm:$0xff]
    %v3565 = vld [vmem:[#allocation4 + $0x408] sm:$0xff]
    %v3566 = vld [vmem:[#allocation4 + $0x410] sm:$0xff]
    %v3567 = vld [vmem:[#allocation4 + $0x418] sm:$0xff]
    %v3568 = vld [vmem:[#allocation4 + $0x420] sm:$0xff]
    %v3569 = vld [vmem:[#allocation4 + $0x428] sm:$0xff]
    %v3570 = vld [vmem:[#allocation4 + $0x430] sm:$0xff]
    %v3571 = vld [vmem:[#allocation4 + $0x438] sm:$0xff]
    %v3572 = vld [vmem:[#allocation4 + $0x440] sm:$0xff]
    %v3573 = vld [vmem:[#allocation4 + $0x448] sm:$0xff]
    %v3574 = vld [vmem:[#allocation4 + $0x450] sm:$0xff]
    %v3575 = vld [vmem:[#allocation4 + $0x458] sm:$0xff]
    %v3576 = vld [vmem:[#allocation4 + $0x460] sm:$0xff]
    %v3577 = vld [vmem:[#allocation4 + $0x468] sm:$0xff]
    %v3578 = vld [vmem:[#allocation4 + $0x470] sm:$0xff]
    %v3579 = vld [vmem:[#allocation4 + $0x478] sm:$0xff]
    %v3580 = vld [vmem:[#allocation4 + $0x480] sm:$0xff]
    %v3581 = vld [vmem:[#allocation4 + $0x488] sm:$0xff]
    %v3582 = vld [vmem:[#allocation4 + $0x490] sm:$0xff]
    %v3583 = vld [vmem:[#allocation4 + $0x498] sm:$0xff]
    %v3584 = vld [vmem:[#allocation4 + $0x4a0] sm:$0xff]
    %v3585 = vld [vmem:[#allocation4 + $0x4a8] sm:$0xff]
    %v3586 = vld [vmem:[#allocation4 + $0x4b0] sm:$0xff]
    %v3587 = vld [vmem:[#allocation4 + $0x4b8] sm:$0xff]
    %v3588 = vld [vmem:[#allocation4 + $0x4c0] sm:$0xff]
    %v3589 = vld [vmem:[#allocation4 + $0x4c8] sm:$0xff]
    %v3590 = vld [vmem:[#allocation4 + $0x4d0] sm:$0xff]
    %v3591 = vld [vmem:[#allocation4 + $0x4d8] sm:$0xff]
    %v3592 = vld [vmem:[#allocation4 + $0x4e0] sm:$0xff]
    %v3593 = vld [vmem:[#allocation4 + $0x4e8] sm:$0xff]
    %v3594 = vld [vmem:[#allocation4 + $0x4f0] sm:$0xff]
    %v3595 = vld [vmem:[#allocation4 + $0x4f8] sm:$0xff]
    %v3596 = vld [vmem:[#allocation4 + $0x500] sm:$0xff]
    %v3597 = vld [vmem:[#allocation4 + $0x508] sm:$0xff]
    %v3598 = vld [vmem:[#allocation4 + $0x510] sm:$0xff]
    %v3599 = vld [vmem:[#allocation4 + $0x518] sm:$0xff]
    %v3600 = vld [vmem:[#allocation4 + $0x520] sm:$0xff]
    %v3601 = vld [vmem:[#allocation4 + $0x528] sm:$0xff]
    %v3602 = vld [vmem:[#allocation4 + $0x530] sm:$0xff]
    %v3603 = vld [vmem:[#allocation4 + $0x538] sm:$0xff]
    %v3604 = vld [vmem:[#allocation4 + $0x540] sm:$0xff]
    %v3605 = vld [vmem:[#allocation4 + $0x548] sm:$0xff]
    %v3606 = vld [vmem:[#allocation4 + $0x550] sm:$0xff]
    %v3607 = vld [vmem:[#allocation4 + $0x558] sm:$0xff]
    %v3608 = vld [vmem:[#allocation4 + $0x560] sm:$0xff]
    %v3609 = vld [vmem:[#allocation4 + $0x568] sm:$0xff]
    %v3610 = vld [vmem:[#allocation4 + $0x570] sm:$0xff]
    %v3611 = vld [vmem:[#allocation4 + $0x578] sm:$0xff]
    %v3612 = vld [vmem:[#allocation4 + $0x580] sm:$0xff]
    %v3613 = vld [vmem:[#allocation4 + $0x588] sm:$0xff]
    %v3614 = vld [vmem:[#allocation4 + $0x590] sm:$0xff]
    %v3615 = vld [vmem:[#allocation4 + $0x598] sm:$0xff]
    %v3616 = vld [vmem:[#allocation4 + $0x5a0] sm:$0xff]
    %v3617 = vld [vmem:[#allocation4 + $0x5a8] sm:$0xff]
    %v3618 = vld [vmem:[#allocation4 + $0x5b0] sm:$0xff]
    %v3619 = vld [vmem:[#allocation4 + $0x5b8] sm:$0xff]
    %v3620 = vld [vmem:[#allocation4 + $0x5c0] sm:$0xff]
    %v3621 = vld [vmem:[#allocation4 + $0x5c8] sm:$0xff]
    %v3622 = vld [vmem:[#allocation4 + $0x5d0] sm:$0xff]
    %v3623 = vld [vmem:[#allocation4 + $0x5d8] sm:$0xff]
    %v3624 = vld [vmem:[#allocation4 + $0x5e0] sm:$0xff]
    %v3625 = vld [vmem:[#allocation4 + $0x5e8] sm:$0xff]
    %v3626 = vld [vmem:[#allocation4 + $0x5f0] sm:$0xff]
    %v3627 = vld [vmem:[#allocation4 + $0x5f8] sm:$0xff]
    %v3628 = vld [vmem:[%s8] sm:$0x3]
    %v3630 = vlaneseq
    %v3631 = vshrl.u32 %v3630, 7
    %v3632 = vsub.s32 0, %v3631
    %v3633 = vrot.slane %v3628, %v3632
    %v3634 = vlaneseq
    %v3635 = vshrl.u32 %v3634, 7
    %v3636 = vsub.s32 1, %v3635
    %v3637 = vrot.slane %v3628, %v3636
    %v3832 = vunpack.c.l.b16 %v3436
    %v3833 = vunpack.c.h.b16 %v3436
    %v3834 = vunpack.c.l.b16 %v3437
    %v3835 = vunpack.c.h.b16 %v3437
    %v3836 = vunpack.c.l.b16 %v3438
    %v3837 = vunpack.c.h.b16 %v3438
    %v3838 = vunpack.c.l.b16 %v3439
    %v3839 = vunpack.c.h.b16 %v3439
    %v3840 = vunpack.c.l.b16 %v3440
    %v3841 = vunpack.c.h.b16 %v3440
    %v3842 = vunpack.c.l.b16 %v3441
    %v3843 = vunpack.c.h.b16 %v3441
    %v3844 = vunpack.c.l.b16 %v3442
    %v3845 = vunpack.c.h.b16 %v3442
    %v3846 = vunpack.c.l.b16 %v3443
    %v3847 = vunpack.c.h.b16 %v3443
    %v3848 = vunpack.c.l.b16 %v3444
    %v3849 = vunpack.c.h.b16 %v3444
    %v3850 = vunpack.c.l.b16 %v3445
    %v3851 = vunpack.c.h.b16 %v3445
    %v3852 = vunpack.c.l.b16 %v3446
    %v3853 = vunpack.c.h.b16 %v3446
    %v3854 = vunpack.c.l.b16 %v3447
    %v3855 = vunpack.c.h.b16 %v3447
    %v3856 = vunpack.c.l.b16 %v3448
    %v3857 = vunpack.c.h.b16 %v3448
    %v3858 = vunpack.c.l.b16 %v3449
    %v3859 = vunpack.c.h.b16 %v3449
    %v3860 = vunpack.c.l.b16 %v3450
    %v3861 = vunpack.c.h.b16 %v3450
    %v3862 = vunpack.c.l.b16 %v3451
    %v3863 = vunpack.c.h.b16 %v3451
    %v3864 = vunpack.c.l.b16 %v3452
    %v3865 = vunpack.c.h.b16 %v3452
    %v3866 = vunpack.c.l.b16 %v3453
    %v3867 = vunpack.c.h.b16 %v3453
    %v3868 = vunpack.c.l.b16 %v3454
    %v3869 = vunpack.c.h.b16 %v3454
    %v3870 = vunpack.c.l.b16 %v3455
    %v3871 = vunpack.c.h.b16 %v3455
    %v3872 = vunpack.c.l.b16 %v3456
    %v3873 = vunpack.c.h.b16 %v3456
    %v3874 = vunpack.c.l.b16 %v3457
    %v3875 = vunpack.c.h.b16 %v3457
    %v3876 = vunpack.c.l.b16 %v3458
    %v3877 = vunpack.c.h.b16 %v3458
    %v3878 = vunpack.c.l.b16 %v3459
    %v3879 = vunpack.c.h.b16 %v3459
    %v3880 = vunpack.c.l.b16 %v3460
    %v3881 = vunpack.c.h.b16 %v3460
    %v3882 = vunpack.c.l.b16 %v3461
    %v3883 = vunpack.c.h.b16 %v3461
    %v3884 = vunpack.c.l.b16 %v3462
    %v3885 = vunpack.c.h.b16 %v3462
    %v3886 = vunpack.c.l.b16 %v3463
    %v3887 = vunpack.c.h.b16 %v3463
    %v3888 = vunpack.c.l.b16 %v3464
    %v3889 = vunpack.c.h.b16 %v3464
    %v3890 = vunpack.c.l.b16 %v3465
    %v3891 = vunpack.c.h.b16 %v3465
    %v3892 = vunpack.c.l.b16 %v3466
    %v3893 = vunpack.c.h.b16 %v3466
    %v3894 = vunpack.c.l.b16 %v3467
    %v3895 = vunpack.c.h.b16 %v3467
    %v3896 = vunpack.c.l.b16 %v3468
    %v3897 = vunpack.c.h.b16 %v3468
    %v3898 = vunpack.c.l.b16 %v3469
    %v3899 = vunpack.c.h.b16 %v3469
    %v3900 = vunpack.c.l.b16 %v3470
    %v3901 = vunpack.c.h.b16 %v3470
    %v3902 = vunpack.c.l.b16 %v3471
    %v3903 = vunpack.c.h.b16 %v3471
    %v3904 = vunpack.c.l.b16 %v3472
    %v3905 = vunpack.c.h.b16 %v3472
    %v3906 = vunpack.c.l.b16 %v3473
    %v3907 = vunpack.c.h.b16 %v3473
    %v3908 = vunpack.c.l.b16 %v3474
    %v3909 = vunpack.c.h.b16 %v3474
    %v3910 = vunpack.c.l.b16 %v3475
    %v3911 = vunpack.c.h.b16 %v3475
    %v3912 = vunpack.c.l.b16 %v3476
    %v3913 = vunpack.c.h.b16 %v3476
    %v3914 = vunpack.c.l.b16 %v3477
    %v3915 = vunpack.c.h.b16 %v3477
    %v3916 = vunpack.c.l.b16 %v3478
    %v3917 = vunpack.c.h.b16 %v3478
    %v3918 = vunpack.c.l.b16 %v3479
    %v3919 = vunpack.c.h.b16 %v3479
    %v3920 = vunpack.c.l.b16 %v3480
    %v3921 = vunpack.c.h.b16 %v3480
    %v3922 = vunpack.c.l.b16 %v3481
    %v3923 = vunpack.c.h.b16 %v3481
    %v3924 = vunpack.c.l.b16 %v3482
    %v3925 = vunpack.c.h.b16 %v3482
    %v3926 = vunpack.c.l.b16 %v3483
    %v3927 = vunpack.c.h.b16 %v3483
    %v3928 = vunpack.c.l.b16 %v3484
    %v3929 = vunpack.c.h.b16 %v3484
    %v3930 = vunpack.c.l.b16 %v3485
    %v3931 = vunpack.c.h.b16 %v3485
    %v3932 = vunpack.c.l.b16 %v3486
    %v3933 = vunpack.c.h.b16 %v3486
    %v3934 = vunpack.c.l.b16 %v3487
    %v3935 = vunpack.c.h.b16 %v3487
    %v3936 = vunpack.c.l.b16 %v3488
    %v3937 = vunpack.c.h.b16 %v3488
    %v3938 = vunpack.c.l.b16 %v3489
    %v3939 = vunpack.c.h.b16 %v3489
    %v3940 = vunpack.c.l.b16 %v3490
    %v3941 = vunpack.c.h.b16 %v3490
    %v3942 = vunpack.c.l.b16 %v3491
    %v3943 = vunpack.c.h.b16 %v3491
    %v3944 = vunpack.c.l.b16 %v3492
    %v3945 = vunpack.c.h.b16 %v3492
    %v3946 = vunpack.c.l.b16 %v3493
    %v3947 = vunpack.c.h.b16 %v3493
    %v3948 = vunpack.c.l.b16 %v3494
    %v3949 = vunpack.c.h.b16 %v3494
    %v3950 = vunpack.c.l.b16 %v3495
    %v3951 = vunpack.c.h.b16 %v3495
    %v3952 = vunpack.c.l.b16 %v3496
    %v3953 = vunpack.c.h.b16 %v3496
    %v3954 = vunpack.c.l.b16 %v3497
    %v3955 = vunpack.c.h.b16 %v3497
    %v3956 = vunpack.c.l.b16 %v3498
    %v3957 = vunpack.c.h.b16 %v3498
    %v3958 = vunpack.c.l.b16 %v3499
    %v3959 = vunpack.c.h.b16 %v3499
    %v3960 = vunpack.c.l.b16 %v3500
    %v3961 = vunpack.c.h.b16 %v3500
    %v3962 = vunpack.c.l.b16 %v3501
    %v3963 = vunpack.c.h.b16 %v3501
    %v3964 = vunpack.c.l.b16 %v3502
    %v3965 = vunpack.c.h.b16 %v3502
    %v3966 = vunpack.c.l.b16 %v3503
    %v3967 = vunpack.c.h.b16 %v3503
    %v3968 = vunpack.c.l.b16 %v3504
    %v3969 = vunpack.c.h.b16 %v3504
    %v3970 = vunpack.c.l.b16 %v3505
    %v3971 = vunpack.c.h.b16 %v3505
    %v3972 = vunpack.c.l.b16 %v3506
    %v3973 = vunpack.c.h.b16 %v3506
    %v3974 = vunpack.c.l.b16 %v3507
    %v3975 = vunpack.c.h.b16 %v3507
    %v3976 = vunpack.c.l.b16 %v3508
    %v3977 = vunpack.c.h.b16 %v3508
    %v3978 = vunpack.c.l.b16 %v3509
    %v3979 = vunpack.c.h.b16 %v3509
    %v3980 = vunpack.c.l.b16 %v3510
    %v3981 = vunpack.c.h.b16 %v3510
    %v3982 = vunpack.c.l.b16 %v3511
    %v3983 = vunpack.c.h.b16 %v3511
    %v3984 = vunpack.c.l.b16 %v3512
    %v3985 = vunpack.c.h.b16 %v3512
    %v3986 = vunpack.c.l.b16 %v3513
    %v3987 = vunpack.c.h.b16 %v3513
    %v3988 = vunpack.c.l.b16 %v3514
    %v3989 = vunpack.c.h.b16 %v3514
    %v3990 = vunpack.c.l.b16 %v3515
    %v3991 = vunpack.c.h.b16 %v3515
    %v3992 = vunpack.c.l.b16 %v3516
    %v3993 = vunpack.c.h.b16 %v3516
    %v3994 = vunpack.c.l.b16 %v3517
    %v3995 = vunpack.c.h.b16 %v3517
    %v3996 = vunpack.c.l.b16 %v3518
    %v3997 = vunpack.c.h.b16 %v3518
    %v3998 = vunpack.c.l.b16 %v3519
    %v3999 = vunpack.c.h.b16 %v3519
    %v4000 = vunpack.c.l.b16 %v3520
    %v4001 = vunpack.c.h.b16 %v3520
    %v4002 = vunpack.c.l.b16 %v3521
    %v4003 = vunpack.c.h.b16 %v3521
    %v4004 = vunpack.c.l.b16 %v3522
    %v4005 = vunpack.c.h.b16 %v3522
    %v4006 = vunpack.c.l.b16 %v3523
    %v4007 = vunpack.c.h.b16 %v3523
    %v4008 = vunpack.c.l.b16 %v3524
    %v4009 = vunpack.c.h.b16 %v3524
    %v4010 = vunpack.c.l.b16 %v3525
    %v4011 = vunpack.c.h.b16 %v3525
    %v4012 = vunpack.c.l.b16 %v3526
    %v4013 = vunpack.c.h.b16 %v3526
    %v4014 = vunpack.c.l.b16 %v3527
    %v4015 = vunpack.c.h.b16 %v3527
    %v4016 = vunpack.c.l.b16 %v3528
    %v4017 = vunpack.c.h.b16 %v3528
    %v4018 = vunpack.c.l.b16 %v3529
    %v4019 = vunpack.c.h.b16 %v3529
    %v4020 = vunpack.c.l.b16 %v3530
    %v4021 = vunpack.c.h.b16 %v3530
    %v4022 = vunpack.c.l.b16 %v3531
    %v4023 = vunpack.c.h.b16 %v3531
    %v4024 = vunpack.c.l.b16 %v3532
    %v4025 = vunpack.c.h.b16 %v3532
    %v4026 = vunpack.c.l.b16 %v3533
    %v4027 = vunpack.c.h.b16 %v3533
    %v4028 = vunpack.c.l.b16 %v3534
    %v4029 = vunpack.c.h.b16 %v3534
    %v4030 = vunpack.c.l.b16 %v3535
    %v4031 = vunpack.c.h.b16 %v3535
    %v4032 = vunpack.c.l.b16 %v3536
    %v4033 = vunpack.c.h.b16 %v3536
    %v4034 = vunpack.c.l.b16 %v3537
    %v4035 = vunpack.c.h.b16 %v3537
    %v4036 = vunpack.c.l.b16 %v3538
    %v4037 = vunpack.c.h.b16 %v3538
    %v4038 = vunpack.c.l.b16 %v3539
    %v4039 = vunpack.c.h.b16 %v3539
    %v4040 = vunpack.c.l.b16 %v3540
    %v4041 = vunpack.c.h.b16 %v3540
    %v4042 = vunpack.c.l.b16 %v3541
    %v4043 = vunpack.c.h.b16 %v3541
    %v4044 = vunpack.c.l.b16 %v3542
    %v4045 = vunpack.c.h.b16 %v3542
    %v4046 = vunpack.c.l.b16 %v3543
    %v4047 = vunpack.c.h.b16 %v3543
    %v4048 = vunpack.c.l.b16 %v3544
    %v4049 = vunpack.c.h.b16 %v3544
    %v4050 = vunpack.c.l.b16 %v3545
    %v4051 = vunpack.c.h.b16 %v3545
    %v4052 = vunpack.c.l.b16 %v3546
    %v4053 = vunpack.c.h.b16 %v3546
    %v4054 = vunpack.c.l.b16 %v3547
    %v4055 = vunpack.c.h.b16 %v3547
    %v4056 = vunpack.c.l.b16 %v3548
    %v4057 = vunpack.c.h.b16 %v3548
    %v4058 = vunpack.c.l.b16 %v3549
    %v4059 = vunpack.c.h.b16 %v3549
    %v4060 = vunpack.c.l.b16 %v3550
    %v4061 = vunpack.c.h.b16 %v3550
    %v4062 = vunpack.c.l.b16 %v3551
    %v4063 = vunpack.c.h.b16 %v3551
    %v4064 = vunpack.c.l.b16 %v3552
    %v4065 = vunpack.c.h.b16 %v3552
    %v4066 = vunpack.c.l.b16 %v3553
    %v4067 = vunpack.c.h.b16 %v3553
    %v4068 = vunpack.c.l.b16 %v3554
    %v4069 = vunpack.c.h.b16 %v3554
    %v4070 = vunpack.c.l.b16 %v3555
    %v4071 = vunpack.c.h.b16 %v3555
    %v4072 = vunpack.c.l.b16 %v3556
    %v4073 = vunpack.c.h.b16 %v3556
    %v4074 = vunpack.c.l.b16 %v3557
    %v4075 = vunpack.c.h.b16 %v3557
    %v4076 = vunpack.c.l.b16 %v3558
    %v4077 = vunpack.c.h.b16 %v3558
    %v4078 = vunpack.c.l.b16 %v3559
    %v4079 = vunpack.c.h.b16 %v3559
    %v4080 = vunpack.c.l.b16 %v3560
    %v4081 = vunpack.c.h.b16 %v3560
    %v4082 = vunpack.c.l.b16 %v3561
    %v4083 = vunpack.c.h.b16 %v3561
    %v4084 = vunpack.c.l.b16 %v3562
    %v4085 = vunpack.c.h.b16 %v3562
    %v4086 = vunpack.c.l.b16 %v3563
    %v4087 = vunpack.c.h.b16 %v3563
    %v4088 = vunpack.c.l.b16 %v3564
    %v4089 = vunpack.c.h.b16 %v3564
    %v4090 = vunpack.c.l.b16 %v3565
    %v4091 = vunpack.c.h.b16 %v3565
    %v4092 = vunpack.c.l.b16 %v3566
    %v4093 = vunpack.c.h.b16 %v3566
    %v4094 = vunpack.c.l.b16 %v3567
    %v4095 = vunpack.c.h.b16 %v3567
    %v4096 = vunpack.c.l.b16 %v3568
    %v4097 = vunpack.c.h.b16 %v3568
    %v4098 = vunpack.c.l.b16 %v3569
    %v4099 = vunpack.c.h.b16 %v3569
    %v4100 = vunpack.c.l.b16 %v3570
    %v4101 = vunpack.c.h.b16 %v3570
    %v4102 = vunpack.c.l.b16 %v3571
    %v4103 = vunpack.c.h.b16 %v3571
    %v4104 = vunpack.c.l.b16 %v3572
    %v4105 = vunpack.c.h.b16 %v3572
    %v4106 = vunpack.c.l.b16 %v3573
    %v4107 = vunpack.c.h.b16 %v3573
    %v4108 = vunpack.c.l.b16 %v3574
    %v4109 = vunpack.c.h.b16 %v3574
    %v4110 = vunpack.c.l.b16 %v3575
    %v4111 = vunpack.c.h.b16 %v3575
    %v4112 = vunpack.c.l.b16 %v3576
    %v4113 = vunpack.c.h.b16 %v3576
    %v4114 = vunpack.c.l.b16 %v3577
    %v4115 = vunpack.c.h.b16 %v3577
    %v4116 = vunpack.c.l.b16 %v3578
    %v4117 = vunpack.c.h.b16 %v3578
    %v4118 = vunpack.c.l.b16 %v3579
    %v4119 = vunpack.c.h.b16 %v3579
    %v4120 = vunpack.c.l.b16 %v3580
    %v4121 = vunpack.c.h.b16 %v3580
    %v4122 = vunpack.c.l.b16 %v3581
    %v4123 = vunpack.c.h.b16 %v3581
    %v4124 = vunpack.c.l.b16 %v3582
    %v4125 = vunpack.c.h.b16 %v3582
    %v4126 = vunpack.c.l.b16 %v3583
    %v4127 = vunpack.c.h.b16 %v3583
    %v4128 = vunpack.c.l.b16 %v3584
    %v4129 = vunpack.c.h.b16 %v3584
    %v4130 = vunpack.c.l.b16 %v3585
    %v4131 = vunpack.c.h.b16 %v3585
    %v4132 = vunpack.c.l.b16 %v3586
    %v4133 = vunpack.c.h.b16 %v3586
    %v4134 = vunpack.c.l.b16 %v3587
    %v4135 = vunpack.c.h.b16 %v3587
    %v4136 = vunpack.c.l.b16 %v3588
    %v4137 = vunpack.c.h.b16 %v3588
    %v4138 = vunpack.c.l.b16 %v3589
    %v4139 = vunpack.c.h.b16 %v3589
    %v4140 = vunpack.c.l.b16 %v3590
    %v4141 = vunpack.c.h.b16 %v3590
    %v4142 = vunpack.c.l.b16 %v3591
    %v4143 = vunpack.c.h.b16 %v3591
    %v4144 = vunpack.c.l.b16 %v3592
    %v4145 = vunpack.c.h.b16 %v3592
    %v4146 = vunpack.c.l.b16 %v3593
    %v4147 = vunpack.c.h.b16 %v3593
    %v4148 = vunpack.c.l.b16 %v3594
    %v4149 = vunpack.c.h.b16 %v3594
    %v4150 = vunpack.c.l.b16 %v3595
    %v4151 = vunpack.c.h.b16 %v3595
    %v4152 = vunpack.c.l.b16 %v3596
    %v4153 = vunpack.c.h.b16 %v3596
    %v4154 = vunpack.c.l.b16 %v3597
    %v4155 = vunpack.c.h.b16 %v3597
    %v4156 = vunpack.c.l.b16 %v3598
    %v4157 = vunpack.c.h.b16 %v3598
    %v4158 = vunpack.c.l.b16 %v3599
    %v4159 = vunpack.c.h.b16 %v3599
    %v4160 = vunpack.c.l.b16 %v3600
    %v4161 = vunpack.c.h.b16 %v3600
    %v4162 = vunpack.c.l.b16 %v3601
    %v4163 = vunpack.c.h.b16 %v3601
    %v4164 = vunpack.c.l.b16 %v3602
    %v4165 = vunpack.c.h.b16 %v3602
    %v4166 = vunpack.c.l.b16 %v3603
    %v4167 = vunpack.c.h.b16 %v3603
    %v4168 = vunpack.c.l.b16 %v3604
    %v4169 = vunpack.c.h.b16 %v3604
    %v4170 = vunpack.c.l.b16 %v3605
    %v4171 = vunpack.c.h.b16 %v3605
    %v4172 = vunpack.c.l.b16 %v3606
    %v4173 = vunpack.c.h.b16 %v3606
    %v4174 = vunpack.c.l.b16 %v3607
    %v4175 = vunpack.c.h.b16 %v3607
    %v4176 = vunpack.c.l.b16 %v3608
    %v4177 = vunpack.c.h.b16 %v3608
    %v4178 = vunpack.c.l.b16 %v3609
    %v4179 = vunpack.c.h.b16 %v3609
    %v4180 = vunpack.c.l.b16 %v3610
    %v4181 = vunpack.c.h.b16 %v3610
    %v4182 = vunpack.c.l.b16 %v3611
    %v4183 = vunpack.c.h.b16 %v3611
    %v4184 = vunpack.c.l.b16 %v3612
    %v4185 = vunpack.c.h.b16 %v3612
    %v4186 = vunpack.c.l.b16 %v3613
    %v4187 = vunpack.c.h.b16 %v3613
    %v4188 = vunpack.c.l.b16 %v3614
    %v4189 = vunpack.c.h.b16 %v3614
    %v4190 = vunpack.c.l.b16 %v3615
    %v4191 = vunpack.c.h.b16 %v3615
    %v4192 = vunpack.c.l.b16 %v3616
    %v4193 = vunpack.c.h.b16 %v3616
    %v4194 = vunpack.c.l.b16 %v3617
    %v4195 = vunpack.c.h.b16 %v3617
    %v4196 = vunpack.c.l.b16 %v3618
    %v4197 = vunpack.c.h.b16 %v3618
    %v4198 = vunpack.c.l.b16 %v3619
    %v4199 = vunpack.c.h.b16 %v3619
    %v4200 = vunpack.c.l.b16 %v3620
    %v4201 = vunpack.c.h.b16 %v3620
    %v4202 = vunpack.c.l.b16 %v3621
    %v4203 = vunpack.c.h.b16 %v3621
    %v4204 = vunpack.c.l.b16 %v3622
    %v4205 = vunpack.c.h.b16 %v3622
    %v4206 = vunpack.c.l.b16 %v3623
    %v4207 = vunpack.c.h.b16 %v3623
    %v4208 = vunpack.c.l.b16 %v3624
    %v4209 = vunpack.c.h.b16 %v3624
    %v4210 = vunpack.c.l.b16 %v3625
    %v4211 = vunpack.c.h.b16 %v3625
    %v4212 = vunpack.c.l.b16 %v3626
    %v4213 = vunpack.c.h.b16 %v3626
    %v4214 = vunpack.c.l.b16 %v3627
    %v4215 = vunpack.c.h.b16 %v3627
    %v4216 = vpack.c.b16 %v3834, %v3832
    %v4217 = vpack.c.b16 %v3835, %v3833
    %v4218 = vpack.c.b16 %v3838, %v3836
    %v4219 = vpack.c.b16 %v3839, %v3837
    %v4220 = vpack.c.b16 %v3842, %v3840
    %v4221 = vpack.c.b16 %v3843, %v3841
    %v4222 = vpack.c.b16 %v3846, %v3844
    %v4223 = vpack.c.b16 %v3847, %v3845
    %v4224 = vpack.c.b16 %v3850, %v3848
    %v4225 = vpack.c.b16 %v3851, %v3849
    %v4226 = vpack.c.b16 %v3854, %v3852
    %v4227 = vpack.c.b16 %v3855, %v3853
    %v4228 = vpack.c.b16 %v3858, %v3856
    %v4229 = vpack.c.b16 %v3859, %v3857
    %v4230 = vpack.c.b16 %v3862, %v3860
    %v4231 = vpack.c.b16 %v3863, %v3861
    %v4232 = vpack.c.b16 %v3866, %v3864
    %v4233 = vpack.c.b16 %v3867, %v3865
    %v4234 = vpack.c.b16 %v3870, %v3868
    %v4235 = vpack.c.b16 %v3871, %v3869
    %v4236 = vpack.c.b16 %v3874, %v3872
    %v4237 = vpack.c.b16 %v3875, %v3873
    %v4238 = vpack.c.b16 %v3878, %v3876
    %v4239 = vpack.c.b16 %v3879, %v3877
    %v4240 = vpack.c.b16 %v3882, %v3880
    %v4241 = vpack.c.b16 %v3883, %v3881
    %v4242 = vpack.c.b16 %v3886, %v3884
    %v4243 = vpack.c.b16 %v3887, %v3885
    %v4244 = vpack.c.b16 %v3890, %v3888
    %v4245 = vpack.c.b16 %v3891, %v3889
    %v4246 = vpack.c.b16 %v3894, %v3892
    %v4247 = vpack.c.b16 %v3895, %v3893
    %v4248 = vpack.c.b16 %v3898, %v3896
    %v4249 = vpack.c.b16 %v3899, %v3897
    %v4250 = vpack.c.b16 %v3902, %v3900
    %v4251 = vpack.c.b16 %v3903, %v3901
    %v4252 = vpack.c.b16 %v3906, %v3904
    %v4253 = vpack.c.b16 %v3907, %v3905
    %v4254 = vpack.c.b16 %v3910, %v3908
    %v4255 = vpack.c.b16 %v3911, %v3909
    %v4256 = vpack.c.b16 %v3914, %v3912
    %v4257 = vpack.c.b16 %v3915, %v3913
    %v4258 = vpack.c.b16 %v3918, %v3916
    %v4259 = vpack.c.b16 %v3919, %v3917
    %v4260 = vpack.c.b16 %v3922, %v3920
    %v4261 = vpack.c.b16 %v3923, %v3921
    %v4262 = vpack.c.b16 %v3926, %v3924
    %v4263 = vpack.c.b16 %v3927, %v3925
    %v4264 = vpack.c.b16 %v3930, %v3928
    %v4265 = vpack.c.b16 %v3931, %v3929
    %v4266 = vpack.c.b16 %v3934, %v3932
    %v4267 = vpack.c.b16 %v3935, %v3933
    %v4268 = vpack.c.b16 %v3938, %v3936
    %v4269 = vpack.c.b16 %v3939, %v3937
    %v4270 = vpack.c.b16 %v3942, %v3940
    %v4271 = vpack.c.b16 %v3943, %v3941
    %v4272 = vpack.c.b16 %v3946, %v3944
    %v4273 = vpack.c.b16 %v3947, %v3945
    %v4274 = vpack.c.b16 %v3950, %v3948
    %v4275 = vpack.c.b16 %v3951, %v3949
    %v4276 = vpack.c.b16 %v3954, %v3952
    %v4277 = vpack.c.b16 %v3955, %v3953
    %v4278 = vpack.c.b16 %v3958, %v3956
    %v4279 = vpack.c.b16 %v3959, %v3957
    %v4280 = vpack.c.b16 %v3962, %v3960
    %v4281 = vpack.c.b16 %v3963, %v3961
    %v4282 = vpack.c.b16 %v3966, %v3964
    %v4283 = vpack.c.b16 %v3967, %v3965
    %v4284 = vpack.c.b16 %v3970, %v3968
    %v4285 = vpack.c.b16 %v3971, %v3969
    %v4286 = vpack.c.b16 %v3974, %v3972
    %v4287 = vpack.c.b16 %v3975, %v3973
    %v4288 = vpack.c.b16 %v3978, %v3976
    %v4289 = vpack.c.b16 %v3979, %v3977
    %v4290 = vpack.c.b16 %v3982, %v3980
    %v4291 = vpack.c.b16 %v3983, %v3981
    %v4292 = vpack.c.b16 %v3986, %v3984
    %v4293 = vpack.c.b16 %v3987, %v3985
    %v4294 = vpack.c.b16 %v3990, %v3988
    %v4295 = vpack.c.b16 %v3991, %v3989
    %v4296 = vpack.c.b16 %v3994, %v3992
    %v4297 = vpack.c.b16 %v3995, %v3993
    %v4298 = vpack.c.b16 %v3998, %v3996
    %v4299 = vpack.c.b16 %v3999, %v3997
    %v4300 = vpack.c.b16 %v4002, %v4000
    %v4301 = vpack.c.b16 %v4003, %v4001
    %v4302 = vpack.c.b16 %v4006, %v4004
    %v4303 = vpack.c.b16 %v4007, %v4005
    %v4304 = vpack.c.b16 %v4010, %v4008
    %v4305 = vpack.c.b16 %v4011, %v4009
    %v4306 = vpack.c.b16 %v4014, %v4012
    %v4307 = vpack.c.b16 %v4015, %v4013
    %v4308 = vpack.c.b16 %v4018, %v4016
    %v4309 = vpack.c.b16 %v4019, %v4017
    %v4310 = vpack.c.b16 %v4022, %v4020
    %v4311 = vpack.c.b16 %v4023, %v4021
    %v4312 = vpack.c.b16 %v4026, %v4024
    %v4313 = vpack.c.b16 %v4027, %v4025
    %v4314 = vpack.c.b16 %v4030, %v4028
    %v4315 = vpack.c.b16 %v4031, %v4029
    %v4316 = vpack.c.b16 %v4034, %v4032
    %v4317 = vpack.c.b16 %v4035, %v4033
    %v4318 = vpack.c.b16 %v4038, %v4036
    %v4319 = vpack.c.b16 %v4039, %v4037
    %v4320 = vpack.c.b16 %v4042, %v4040
    %v4321 = vpack.c.b16 %v4043, %v4041
    %v4322 = vpack.c.b16 %v4046, %v4044
    %v4323 = vpack.c.b16 %v4047, %v4045
    %v4324 = vpack.c.b16 %v4050, %v4048
    %v4325 = vpack.c.b16 %v4051, %v4049
    %v4326 = vpack.c.b16 %v4054, %v4052
    %v4327 = vpack.c.b16 %v4055, %v4053
    %v4328 = vpack.c.b16 %v4058, %v4056
    %v4329 = vpack.c.b16 %v4059, %v4057
    %v4330 = vpack.c.b16 %v4062, %v4060
    %v4331 = vpack.c.b16 %v4063, %v4061
    %v4332 = vpack.c.b16 %v4066, %v4064
    %v4333 = vpack.c.b16 %v4067, %v4065
    %v4334 = vpack.c.b16 %v4070, %v4068
    %v4335 = vpack.c.b16 %v4071, %v4069
    %v4336 = vpack.c.b16 %v4074, %v4072
    %v4337 = vpack.c.b16 %v4075, %v4073
    %v4338 = vpack.c.b16 %v4078, %v4076
    %v4339 = vpack.c.b16 %v4079, %v4077
    %v4340 = vpack.c.b16 %v4082, %v4080
    %v4341 = vpack.c.b16 %v4083, %v4081
    %v4342 = vpack.c.b16 %v4086, %v4084
    %v4343 = vpack.c.b16 %v4087, %v4085
    %v4344 = vpack.c.b16 %v4090, %v4088
    %v4345 = vpack.c.b16 %v4091, %v4089
    %v4346 = vpack.c.b16 %v4094, %v4092
    %v4347 = vpack.c.b16 %v4095, %v4093
    %v4348 = vpack.c.b16 %v4098, %v4096
    %v4349 = vpack.c.b16 %v4099, %v4097
    %v4350 = vpack.c.b16 %v4102, %v4100
    %v4351 = vpack.c.b16 %v4103, %v4101
    %v4352 = vpack.c.b16 %v4106, %v4104
    %v4353 = vpack.c.b16 %v4107, %v4105
    %v4354 = vpack.c.b16 %v4110, %v4108
    %v4355 = vpack.c.b16 %v4111, %v4109
    %v4356 = vpack.c.b16 %v4114, %v4112
    %v4357 = vpack.c.b16 %v4115, %v4113
    %v4358 = vpack.c.b16 %v4118, %v4116
    %v4359 = vpack.c.b16 %v4119, %v4117
    %v4360 = vpack.c.b16 %v4122, %v4120
    %v4361 = vpack.c.b16 %v4123, %v4121
    %v4362 = vpack.c.b16 %v4126, %v4124
    %v4363 = vpack.c.b16 %v4127, %v4125
    %v4364 = vpack.c.b16 %v4130, %v4128
    %v4365 = vpack.c.b16 %v4131, %v4129
    %v4366 = vpack.c.b16 %v4134, %v4132
    %v4367 = vpack.c.b16 %v4135, %v4133
    %v4368 = vpack.c.b16 %v4138, %v4136
    %v4369 = vpack.c.b16 %v4139, %v4137
    %v4370 = vpack.c.b16 %v4142, %v4140
    %v4371 = vpack.c.b16 %v4143, %v4141
    %v4372 = vpack.c.b16 %v4146, %v4144
    %v4373 = vpack.c.b16 %v4147, %v4145
    %v4374 = vpack.c.b16 %v4150, %v4148
    %v4375 = vpack.c.b16 %v4151, %v4149
    %v4376 = vpack.c.b16 %v4154, %v4152
    %v4377 = vpack.c.b16 %v4155, %v4153
    %v4378 = vpack.c.b16 %v4158, %v4156
    %v4379 = vpack.c.b16 %v4159, %v4157
    %v4380 = vpack.c.b16 %v4162, %v4160
    %v4381 = vpack.c.b16 %v4163, %v4161
    %v4382 = vpack.c.b16 %v4166, %v4164
    %v4383 = vpack.c.b16 %v4167, %v4165
    %v4384 = vpack.c.b16 %v4170, %v4168
    %v4385 = vpack.c.b16 %v4171, %v4169
    %v4386 = vpack.c.b16 %v4174, %v4172
    %v4387 = vpack.c.b16 %v4175, %v4173
    %v4388 = vpack.c.b16 %v4178, %v4176
    %v4389 = vpack.c.b16 %v4179, %v4177
    %v4390 = vpack.c.b16 %v4182, %v4180
    %v4391 = vpack.c.b16 %v4183, %v4181
    %v4392 = vpack.c.b16 %v4186, %v4184
    %v4393 = vpack.c.b16 %v4187, %v4185
    %v4394 = vpack.c.b16 %v4190, %v4188
    %v4395 = vpack.c.b16 %v4191, %v4189
    %v4396 = vpack.c.b16 %v4194, %v4192
    %v4397 = vpack.c.b16 %v4195, %v4193
    %v4398 = vpack.c.b16 %v4198, %v4196
    %v4399 = vpack.c.b16 %v4199, %v4197
    %v4400 = vpack.c.b16 %v4202, %v4200
    %v4401 = vpack.c.b16 %v4203, %v4201
    %v4402 = vpack.c.b16 %v4206, %v4204
    %v4403 = vpack.c.b16 %v4207, %v4205
    %v4404 = vpack.c.b16 %v4210, %v4208
    %v4405 = vpack.c.b16 %v4211, %v4209
    %v4406 = vpack.c.b16 %v4214, %v4212
    %v4407 = vpack.c.b16 %v4215, %v4213
    %4600 = vmatprep.subr.bf16.mxu0 %v4231
    %4601 = vmatpush1.bf16.msra.mxu0 %v4230
    %4602 = vmatprep.subr.bf16.mxu0 %v4229
    %4603 = vmatpush1.bf16.msra.mxu0 %v4228
    %4604 = vmatprep.subr.bf16.mxu0 %v4227
    %4605 = vmatpush1.bf16.msra.mxu0 %v4226
    %4606 = vmatprep.subr.bf16.mxu0 %v4225
    %4607 = vmatpush1.bf16.msra.mxu0 %v4224
    %4608 = vmatprep.subr.bf16.mxu0 %v4223
    %4609 = vmatpush1.bf16.msra.mxu0 %v4222
    %4610 = vmatprep.subr.bf16.mxu0 %v4221
    %4611 = vmatpush1.bf16.msra.mxu0 %v4220
    %4612 = vmatprep.subr.bf16.mxu0 %v4219
    %4613 = vmatpush1.bf16.msra.mxu0 %v4218
    %4614 = vmatprep.subr.bf16.mxu0 %v4217
    %4615 = vmatpush1.bf16.msra.mxu0 %v4216
    %4616 = vmatprep.subr.bf16.mxu0 %v4247
    %4617 = vmatpush2.bf16.msra.mxu0 %v4246
    %4618 = vmatprep.subr.bf16.mxu0 %v4245
    %4619 = vmatpush2.bf16.msra.mxu0 %v4244
    %4620 = vmatprep.subr.bf16.mxu0 %v4243
    %4621 = vmatpush2.bf16.msra.mxu0 %v4242
    %4622 = vmatprep.subr.bf16.mxu0 %v4241
    %4623 = vmatpush2.bf16.msra.mxu0 %v4240
    %4624 = vmatprep.subr.bf16.mxu0 %v4239
    %4625 = vmatpush2.bf16.msra.mxu0 %v4238
    %4626 = vmatprep.subr.bf16.mxu0 %v4237
    %4627 = vmatpush2.bf16.msra.mxu0 %v4236
    %4628 = vmatprep.subr.bf16.mxu0 %v4235
    %4629 = vmatpush2.bf16.msra.mxu0 %v4234
    %4630 = vmatprep.subr.bf16.mxu0 %v4233
    %4631 = vmatpush2.bf16.msra.mxu0 %v4232
    %4632 = vmatprep.mubr.bf16.mxu0 %v2968
    %4633 = vmatmul.mubr.bf16.gmra.mxu0 %v2935
    %v4634 = vpop.f32.mrf.mxu0
    %v4635 = vadd.f32 %v3633, %v4634
    %v4636 = vpop.f32.mrf.mxu0
    %v4637 = vadd.f32 %v3637, %v4636
    %v4638 = vpop.f32.mrf.mxu0
    %v4639 = vadd.f32 %v3633, %v4638
    %v4640 = vpop.f32.mrf.mxu0
    %v4641 = vadd.f32 %v3637, %v4640
    %4642 = vmatprep.mubr.bf16.mxu0 %v2976
    %4643 = vmatmul.mubr.bf16.gmra.mxu0 %v2936
    %v4644 = vpop.f32.mrf.mxu0
    %v4645 = vadd.f32 %v3633, %v4644
    %v4646 = vpop.f32.mrf.mxu0
    %v4647 = vadd.f32 %v3637, %v4646
    %v4648 = vpop.f32.mrf.mxu0
    %v4649 = vadd.f32 %v3633, %v4648
    %v4650 = vpop.f32.mrf.mxu0
    %v4651 = vadd.f32 %v3637, %v4650
    %4652 = vmatprep.mubr.bf16.mxu0 %v2984
    %4653 = vmatmul.mubr.bf16.gmra.mxu0 %v2937
    %v4654 = vpop.f32.mrf.mxu0
    %v4655 = vadd.f32 %v3633, %v4654
    %v4656 = vpop.f32.mrf.mxu0
    %v4657 = vadd.f32 %v3637, %v4656
    %v4658 = vpop.f32.mrf.mxu0
    %v4659 = vadd.f32 %v3633, %v4658
    %v4660 = vpop.f32.mrf.mxu0
    %v4661 = vadd.f32 %v3637, %v4660
    %4662 = vmatprep.mubr.bf16.mxu0 %v2992
    %4663 = vmatmul.mubr.bf16.gmra.mxu0 %v2938
    %v4664 = vpop.f32.mrf.mxu0
    %v4665 = vadd.f32 %v3633, %v4664
    %v4666 = vpop.f32.mrf.mxu0
    %v4667 = vadd.f32 %v3637, %v4666
    %v4668 = vpop.f32.mrf.mxu0
    %v4669 = vadd.f32 %v3633, %v4668
    %v4670 = vpop.f32.mrf.mxu0
    %v4671 = vadd.f32 %v3637, %v4670
    %4672 = vmatprep.mubr.bf16.mxu0 %v3000
    %4673 = vmatmul.mubr.bf16.gmra.mxu0 %v2939
    %v4674 = vpop.f32.mrf.mxu0
    %v4675 = vadd.f32 %v3633, %v4674
    %v4676 = vpop.f32.mrf.mxu0
    %v4677 = vadd.f32 %v3637, %v4676
    %v4678 = vpop.f32.mrf.mxu0
    %v4679 = vadd.f32 %v3633, %v4678
    %v4680 = vpop.f32.mrf.mxu0
    %v4681 = vadd.f32 %v3637, %v4680
    %4682 = vmatprep.mubr.bf16.mxu0 %v3008
    %4683 = vmatmul.mubr.bf16.gmra.mxu0 %v2940
    %v4684 = vpop.f32.mrf.mxu0
    %v4685 = vadd.f32 %v3633, %v4684
    %v4686 = vpop.f32.mrf.mxu0
    %v4687 = vadd.f32 %v3637, %v4686
    %v4688 = vpop.f32.mrf.mxu0
    %v4689 = vadd.f32 %v3633, %v4688
    %v4690 = vpop.f32.mrf.mxu0
    %v4691 = vadd.f32 %v3637, %v4690
    %4692 = vmatprep.mubr.bf16.mxu0 %v3016
    %4693 = vmatmul.mubr.bf16.gmra.mxu0 %v2941
    %v4694 = vpop.f32.mrf.mxu0
    %v4695 = vadd.f32 %v3633, %v4694
    %v4696 = vpop.f32.mrf.mxu0
    %v4697 = vadd.f32 %v3637, %v4696
    %v4698 = vpop.f32.mrf.mxu0
    %v4699 = vadd.f32 %v3633, %v4698
    %v4700 = vpop.f32.mrf.mxu0
    %v4701 = vadd.f32 %v3637, %v4700
    %4702 = vmatprep.mubr.bf16.mxu0 %v3024
    %4703 = vmatmul.mubr.bf16.gmra.mxu0 %v2942
    %v4704 = vpop.f32.mrf.mxu0
    %v4705 = vadd.f32 %v3633, %v4704
    %v4706 = vpop.f32.mrf.mxu0
    %v4707 = vadd.f32 %v3637, %v4706
    %v4708 = vpop.f32.mrf.mxu0
    %v4709 = vadd.f32 %v3633, %v4708
    %v4710 = vpop.f32.mrf.mxu0
    %v4711 = vadd.f32 %v3637, %v4710
    %4712 = vmatprep.mubr.bf16.mxu0 %v3032
    %4713 = vmatmul.mubr.bf16.gmra.mxu0 %v2943
    %v4714 = vpop.f32.mrf.mxu0
    %v4715 = vadd.f32 %v3633, %v4714
    %v4716 = vpop.f32.mrf.mxu0
    %v4717 = vadd.f32 %v3637, %v4716
    %v4718 = vpop.f32.mrf.mxu0
    %v4719 = vadd.f32 %v3633, %v4718
    %v4720 = vpop.f32.mrf.mxu0
    %v4721 = vadd.f32 %v3637, %v4720
    %4722 = vdwg.mxu0
    %4723 = vmatprep.subr.bf16.mxu0 %v4263
    %4724 = vmatpush1.bf16.msra.mxu0 %v4262
    %4725 = vmatprep.subr.bf16.mxu0 %v4261
    %4726 = vmatpush1.bf16.msra.mxu0 %v4260
    %4727 = vmatprep.subr.bf16.mxu0 %v4259
    %4728 = vmatpush1.bf16.msra.mxu0 %v4258
    %4729 = vmatprep.subr.bf16.mxu0 %v4257
    %4730 = vmatpush1.bf16.msra.mxu0 %v4256
    %4731 = vmatprep.subr.bf16.mxu0 %v4255
    %4732 = vmatpush1.bf16.msra.mxu0 %v4254
    %4733 = vmatprep.subr.bf16.mxu0 %v4253
    %4734 = vmatpush1.bf16.msra.mxu0 %v4252
    %4735 = vmatprep.subr.bf16.mxu0 %v4251
    %4736 = vmatpush1.bf16.msra.mxu0 %v4250
    %4737 = vmatprep.subr.bf16.mxu0 %v4249
    %4738 = vmatpush1.bf16.msra.mxu0 %v4248
    %4739 = vmatprep.subr.bf16.mxu0 %v4279
    %4740 = vmatpush2.bf16.msra.mxu0 %v4278
    %4741 = vmatprep.subr.bf16.mxu0 %v4277
    %4742 = vmatpush2.bf16.msra.mxu0 %v4276
    %4743 = vmatprep.subr.bf16.mxu0 %v4275
    %4744 = vmatpush2.bf16.msra.mxu0 %v4274
    %4745 = vmatprep.subr.bf16.mxu0 %v4273
    %4746 = vmatpush2.bf16.msra.mxu0 %v4272
    %4747 = vmatprep.subr.bf16.mxu0 %v4271
    %4748 = vmatpush2.bf16.msra.mxu0 %v4270
    %4749 = vmatprep.subr.bf16.mxu0 %v4269
    %4750 = vmatpush2.bf16.msra.mxu0 %v4268
    %4751 = vmatprep.subr.bf16.mxu0 %v4267
    %4752 = vmatpush2.bf16.msra.mxu0 %v4266
    %4753 = vmatprep.subr.bf16.mxu0 %v4265
    %4754 = vmatpush2.bf16.msra.mxu0 %v4264
    %4755 = vmatprep.mubr.bf16.mxu0 %v3086
    %4756 = vmatmul.mubr.bf16.gmra.mxu0 %v3054
    %v4757 = vpop.f32.mrf.mxu0
    %v4758 = vadd.f32 %v4635, %v4757
    %v4759 = vpop.f32.mrf.mxu0
    %v4760 = vadd.f32 %v4637, %v4759
    %v4761 = vpop.f32.mrf.mxu0
    %v4762 = vadd.f32 %v4639, %v4761
    %v4763 = vpop.f32.mrf.mxu0
    %v4764 = vadd.f32 %v4641, %v4763
    %4765 = vmatprep.mubr.bf16.mxu0 %v3090
    %4766 = vmatmul.mubr.bf16.gmra.mxu0 %v3056
    %v4767 = vpop.f32.mrf.mxu0
    %v4768 = vadd.f32 %v4645, %v4767
    %v4769 = vpop.f32.mrf.mxu0
    %v4770 = vadd.f32 %v4647, %v4769
    %v4771 = vpop.f32.mrf.mxu0
    %v4772 = vadd.f32 %v4649, %v4771
    %v4773 = vpop.f32.mrf.mxu0
    %v4774 = vadd.f32 %v4651, %v4773
    %4775 = vmatprep.mubr.bf16.mxu0 %v3094
    %4776 = vmatmul.mubr.bf16.gmra.mxu0 %v3058
    %v4777 = vpop.f32.mrf.mxu0
    %v4778 = vadd.f32 %v4655, %v4777
    %v4779 = vpop.f32.mrf.mxu0
    %v4780 = vadd.f32 %v4657, %v4779
    %v4781 = vpop.f32.mrf.mxu0
    %v4782 = vadd.f32 %v4659, %v4781
    %v4783 = vpop.f32.mrf.mxu0
    %v4784 = vadd.f32 %v4661, %v4783
    %4785 = vmatprep.mubr.bf16.mxu0 %v3098
    %4786 = vmatmul.mubr.bf16.gmra.mxu0 %v3060
    %v4787 = vpop.f32.mrf.mxu0
    %v4788 = vadd.f32 %v4665, %v4787
    %v4789 = vpop.f32.mrf.mxu0
    %v4790 = vadd.f32 %v4667, %v4789
    %v4791 = vpop.f32.mrf.mxu0
    %v4792 = vadd.f32 %v4669, %v4791
    %v4793 = vpop.f32.mrf.mxu0
    %v4794 = vadd.f32 %v4671, %v4793
    %4795 = vmatprep.mubr.bf16.mxu0 %v3102
    %4796 = vmatmul.mubr.bf16.gmra.mxu0 %v3062
    %v4797 = vpop.f32.mrf.mxu0
    %v4798 = vadd.f32 %v4675, %v4797
    %v4799 = vpop.f32.mrf.mxu0
    %v4800 = vadd.f32 %v4677, %v4799
    %v4801 = vpop.f32.mrf.mxu0
    %v4802 = vadd.f32 %v4679, %v4801
    %v4803 = vpop.f32.mrf.mxu0
    %v4804 = vadd.f32 %v4681, %v4803
    %4805 = vmatprep.mubr.bf16.mxu0 %v3106
    %4806 = vmatmul.mubr.bf16.gmra.mxu0 %v3064
    %v4807 = vpop.f32.mrf.mxu0
    %v4808 = vadd.f32 %v4685, %v4807
    %v4809 = vpop.f32.mrf.mxu0
    %v4810 = vadd.f32 %v4687, %v4809
    %v4811 = vpop.f32.mrf.mxu0
    %v4812 = vadd.f32 %v4689, %v4811
    %v4813 = vpop.f32.mrf.mxu0
    %v4814 = vadd.f32 %v4691, %v4813
    %4815 = vmatprep.mubr.bf16.mxu0 %v3110
    %4816 = vmatmul.mubr.bf16.gmra.mxu0 %v3066
    %v4817 = vpop.f32.mrf.mxu0
    %v4818 = vadd.f32 %v4695, %v4817
    %v4819 = vpop.f32.mrf.mxu0
    %v4820 = vadd.f32 %v4697, %v4819
    %v4821 = vpop.f32.mrf.mxu0
    %v4822 = vadd.f32 %v4699, %v4821
    %v4823 = vpop.f32.mrf.mxu0
    %v4824 = vadd.f32 %v4701, %v4823
    %4825 = vmatprep.mubr.bf16.mxu0 %v3114
    %4826 = vmatmul.mubr.bf16.gmra.mxu0 %v3068
    %v4827 = vpop.f32.mrf.mxu0
    %v4828 = vadd.f32 %v4705, %v4827
    %v4829 = vpop.f32.mrf.mxu0
    %v4830 = vadd.f32 %v4707, %v4829
    %v4831 = vpop.f32.mrf.mxu0
    %v4832 = vadd.f32 %v4709, %v4831
    %v4833 = vpop.f32.mrf.mxu0
    %v4834 = vadd.f32 %v4711, %v4833
    %4835 = vmatprep.mubr.bf16.mxu0 %v3120
    %4836 = vmatmul.mubr.bf16.gmra.mxu0 %v3070
    %v4837 = vpop.f32.mrf.mxu0
    %v4838 = vadd.f32 %v4715, %v4837
    %v4839 = vpop.f32.mrf.mxu0
    %v4840 = vadd.f32 %v4717, %v4839
    %v4841 = vpop.f32.mrf.mxu0
    %v4842 = vadd.f32 %v4719, %v4841
    %v4843 = vpop.f32.mrf.mxu0
    %v4844 = vadd.f32 %v4721, %v4843
    %4845 = vdwg.mxu0
    %4846 = vmatprep.subr.bf16.mxu0 %v4295
    %4847 = vmatpush1.bf16.msra.mxu0 %v4294
    %4848 = vmatprep.subr.bf16.mxu0 %v4293
    %4849 = vmatpush1.bf16.msra.mxu0 %v4292
    %4850 = vmatprep.subr.bf16.mxu0 %v4291
    %4851 = vmatpush1.bf16.msra.mxu0 %v4290
    %4852 = vmatprep.subr.bf16.mxu0 %v4289
    %4853 = vmatpush1.bf16.msra.mxu0 %v4288
    %4854 = vmatprep.subr.bf16.mxu0 %v4287
    %4855 = vmatpush1.bf16.msra.mxu0 %v4286
    %4856 = vmatprep.subr.bf16.mxu0 %v4285
    %4857 = vmatpush1.bf16.msra.mxu0 %v4284
    %4858 = vmatprep.subr.bf16.mxu0 %v4283
    %4859 = vmatpush1.bf16.msra.mxu0 %v4282
    %4860 = vmatprep.subr.bf16.mxu0 %v4281
    %4861 = vmatpush1.bf16.msra.mxu0 %v4280
    %4862 = vmatprep.subr.bf16.mxu0 %v4311
    %4863 = vmatpush2.bf16.msra.mxu0 %v4310
    %4864 = vmatprep.subr.bf16.mxu0 %v4309
    %4865 = vmatpush2.bf16.msra.mxu0 %v4308
    %4866 = vmatprep.subr.bf16.mxu0 %v4307
    %4867 = vmatpush2.bf16.msra.mxu0 %v4306
    %4868 = vmatprep.subr.bf16.mxu0 %v4305
    %4869 = vmatpush2.bf16.msra.mxu0 %v4304
    %4870 = vmatprep.subr.bf16.mxu0 %v4303
    %4871 = vmatpush2.bf16.msra.mxu0 %v4302
    %4872 = vmatprep.subr.bf16.mxu0 %v4301
    %4873 = vmatpush2.bf16.msra.mxu0 %v4300
    %4874 = vmatprep.subr.bf16.mxu0 %v4299
    %4875 = vmatpush2.bf16.msra.mxu0 %v4298
    %4876 = vmatprep.subr.bf16.mxu0 %v4297
    %4877 = vmatpush2.bf16.msra.mxu0 %v4296
    %4878 = vmatprep.mubr.bf16.mxu0 %v3227
    %4879 = vmatmul.mubr.bf16.gmra.mxu0 %v3141
    %v4880 = vpop.f32.mrf.mxu0
    %v4881 = vadd.f32 %v4758, %v4880
    %v4882 = vpop.f32.mrf.mxu0
    %v4883 = vadd.f32 %v4760, %v4882
    %v4884 = vpop.f32.mrf.mxu0
    %v4885 = vadd.f32 %v4762, %v4884
    %v4886 = vpop.f32.mrf.mxu0
    %v4887 = vadd.f32 %v4764, %v4886
    %4888 = vmatprep.mubr.bf16.mxu0 %v3229
    %4889 = vmatmul.mubr.bf16.gmra.mxu0 %v3149
    %v4890 = vpop.f32.mrf.mxu0
    %v4891 = vadd.f32 %v4768, %v4890
    %v4892 = vpop.f32.mrf.mxu0
    %v4893 = vadd.f32 %v4770, %v4892
    %v4894 = vpop.f32.mrf.mxu0
    %v4895 = vadd.f32 %v4772, %v4894
    %v4896 = vpop.f32.mrf.mxu0
    %v4897 = vadd.f32 %v4774, %v4896
    %4898 = vmatprep.mubr.bf16.mxu0 %v3231
    %4899 = vmatmul.mubr.bf16.gmra.mxu0 %v3157
    %v4900 = vpop.f32.mrf.mxu0
    %v4901 = vadd.f32 %v4778, %v4900
    %v4902 = vpop.f32.mrf.mxu0
    %v4903 = vadd.f32 %v4780, %v4902
    %v4904 = vpop.f32.mrf.mxu0
    %v4905 = vadd.f32 %v4782, %v4904
    %v4906 = vpop.f32.mrf.mxu0
    %v4907 = vadd.f32 %v4784, %v4906
    %4908 = vmatprep.mubr.bf16.mxu0 %v3233
    %4909 = vmatmul.mubr.bf16.gmra.mxu0 %v3165
    %v4910 = vpop.f32.mrf.mxu0
    %v4911 = vadd.f32 %v4788, %v4910
    %v4912 = vpop.f32.mrf.mxu0
    %v4913 = vadd.f32 %v4790, %v4912
    %v4914 = vpop.f32.mrf.mxu0
    %v4915 = vadd.f32 %v4792, %v4914
    %v4916 = vpop.f32.mrf.mxu0
    %v4917 = vadd.f32 %v4794, %v4916
    %4918 = vmatprep.mubr.bf16.mxu0 %v3235
    %4919 = vmatmul.mubr.bf16.gmra.mxu0 %v3173
    %v4920 = vpop.f32.mrf.mxu0
    %v4921 = vadd.f32 %v4798, %v4920
    %v4922 = vpop.f32.mrf.mxu0
    %v4923 = vadd.f32 %v4800, %v4922
    %v4924 = vpop.f32.mrf.mxu0
    %v4925 = vadd.f32 %v4802, %v4924
    %v4926 = vpop.f32.mrf.mxu0
    %v4927 = vadd.f32 %v4804, %v4926
    %4928 = vmatprep.mubr.bf16.mxu0 %v3237
    %4929 = vmatmul.mubr.bf16.gmra.mxu0 %v3181
    %v4930 = vpop.f32.mrf.mxu0
    %v4931 = vadd.f32 %v4808, %v4930
    %v4932 = vpop.f32.mrf.mxu0
    %v4933 = vadd.f32 %v4810, %v4932
    %v4934 = vpop.f32.mrf.mxu0
    %v4935 = vadd.f32 %v4812, %v4934
    %v4936 = vpop.f32.mrf.mxu0
    %v4937 = vadd.f32 %v4814, %v4936
    %4938 = vmatprep.mubr.bf16.mxu0 %v3239
    %4939 = vmatmul.mubr.bf16.gmra.mxu0 %v3189
    %v4940 = vpop.f32.mrf.mxu0
    %v4941 = vadd.f32 %v4818, %v4940
    %v4942 = vpop.f32.mrf.mxu0
    %v4943 = vadd.f32 %v4820, %v4942
    %v4944 = vpop.f32.mrf.mxu0
    %v4945 = vadd.f32 %v4822, %v4944
    %v4946 = vpop.f32.mrf.mxu0
    %v4947 = vadd.f32 %v4824, %v4946
    %4948 = vmatprep.mubr.bf16.mxu0 %v3241
    %4949 = vmatmul.mubr.bf16.gmra.mxu0 %v3197
    %v4950 = vpop.f32.mrf.mxu0
    %v4951 = vadd.f32 %v4828, %v4950
    %v4952 = vpop.f32.mrf.mxu0
    %v4953 = vadd.f32 %v4830, %v4952
    %v4954 = vpop.f32.mrf.mxu0
    %v4955 = vadd.f32 %v4832, %v4954
    %v4956 = vpop.f32.mrf.mxu0
    %v4957 = vadd.f32 %v4834, %v4956
    %4958 = vmatprep.mubr.bf16.mxu0 %v3243
    %4959 = vmatmul.mubr.bf16.gmra.mxu0 %v3205
    %v4960 = vpop.f32.mrf.mxu0
    %v4961 = vadd.f32 %v4838, %v4960
    %v4962 = vpop.f32.mrf.mxu0
    %v4963 = vadd.f32 %v4840, %v4962
    %v4964 = vpop.f32.mrf.mxu0
    %v4965 = vadd.f32 %v4842, %v4964
    %v4966 = vpop.f32.mrf.mxu0
    %v4967 = vadd.f32 %v4844, %v4966
    %4968 = vdwg.mxu0
    %4969 = vmatprep.subr.bf16.mxu0 %v4327
    %4970 = vmatpush1.bf16.msra.mxu0 %v4326
    %4971 = vmatprep.subr.bf16.mxu0 %v4325
    %4972 = vmatpush1.bf16.msra.mxu0 %v4324
    %4973 = vmatprep.subr.bf16.mxu0 %v4323
    %4974 = vmatpush1.bf16.msra.mxu0 %v4322
    %4975 = vmatprep.subr.bf16.mxu0 %v4321
    %4976 = vmatpush1.bf16.msra.mxu0 %v4320
    %4977 = vmatprep.subr.bf16.mxu0 %v4319
    %4978 = vmatpush1.bf16.msra.mxu0 %v4318
    %4979 = vmatprep.subr.bf16.mxu0 %v4317
    %4980 = vmatpush1.bf16.msra.mxu0 %v4316
    %4981 = vmatprep.subr.bf16.mxu0 %v4315
    %4982 = vmatpush1.bf16.msra.mxu0 %v4314
    %4983 = vmatprep.subr.bf16.mxu0 %v4313
    %4984 = vmatpush1.bf16.msra.mxu0 %v4312
    %4985 = vmatprep.subr.bf16.mxu0 %v4343
    %4986 = vmatpush2.bf16.msra.mxu0 %v4342
    %4987 = vmatprep.subr.bf16.mxu0 %v4341
    %4988 = vmatpush2.bf16.msra.mxu0 %v4340
    %4989 = vmatprep.subr.bf16.mxu0 %v4339
    %4990 = vmatpush2.bf16.msra.mxu0 %v4338
    %4991 = vmatprep.subr.bf16.mxu0 %v4337
    %4992 = vmatpush2.bf16.msra.mxu0 %v4336
    %4993 = vmatprep.subr.bf16.mxu0 %v4335
    %4994 = vmatpush2.bf16.msra.mxu0 %v4334
    %4995 = vmatprep.subr.bf16.mxu0 %v4333
    %4996 = vmatpush2.bf16.msra.mxu0 %v4332
    %4997 = vmatprep.subr.bf16.mxu0 %v4331
    %4998 = vmatpush2.bf16.msra.mxu0 %v4330
    %4999 = vmatprep.subr.bf16.mxu0 %v4329
    %5000 = vmatpush2.bf16.msra.mxu0 %v4328
    %5001 = vmatprep.mubr.bf16.mxu0 %v3305
    %5002 = vmatmul.mubr.bf16.gmra.mxu0 %v3259
    %v5003 = vpop.f32.mrf.mxu0
    %v5004 = vadd.f32 %v4881, %v5003
    %v5005 = vpop.f32.mrf.mxu0
    %v5006 = vadd.f32 %v4883, %v5005
    %v5007 = vpop.f32.mrf.mxu0
    %v5008 = vadd.f32 %v4885, %v5007
    %v5009 = vpop.f32.mrf.mxu0
    %v5010 = vadd.f32 %v4887, %v5009
    %5011 = vmatprep.mubr.bf16.mxu0 %v3307
    %5012 = vmatmul.mubr.bf16.gmra.mxu0 %v3263
    %v5013 = vpop.f32.mrf.mxu0
    %v5014 = vadd.f32 %v4891, %v5013
    %v5015 = vpop.f32.mrf.mxu0
    %v5016 = vadd.f32 %v4893, %v5015
    %v5017 = vpop.f32.mrf.mxu0
    %v5018 = vadd.f32 %v4895, %v5017
    %v5019 = vpop.f32.mrf.mxu0
    %v5020 = vadd.f32 %v4897, %v5019
    %5021 = vmatprep.mubr.bf16.mxu0 %v3309
    %5022 = vmatmul.mubr.bf16.gmra.mxu0 %v3267
    %v5023 = vpop.f32.mrf.mxu0
    %v5024 = vadd.f32 %v4901, %v5023
    %v5025 = vpop.f32.mrf.mxu0
    %v5026 = vadd.f32 %v4903, %v5025
    %v5027 = vpop.f32.mrf.mxu0
    %v5028 = vadd.f32 %v4905, %v5027
    %v5029 = vpop.f32.mrf.mxu0
    %v5030 = vadd.f32 %v4907, %v5029
    %5031 = vmatprep.mubr.bf16.mxu0 %v3311
    %5032 = vmatmul.mubr.bf16.gmra.mxu0 %v3271
    %v5033 = vpop.f32.mrf.mxu0
    %v5034 = vadd.f32 %v4911, %v5033
    %v5035 = vpop.f32.mrf.mxu0
    %v5036 = vadd.f32 %v4913, %v5035
    %v5037 = vpop.f32.mrf.mxu0
    %v5038 = vadd.f32 %v4915, %v5037
    %v5039 = vpop.f32.mrf.mxu0
    %v5040 = vadd.f32 %v4917, %v5039
    %5041 = vmatprep.mubr.bf16.mxu0 %v3313
    %5042 = vmatmul.mubr.bf16.gmra.mxu0 %v3275
    %v5043 = vpop.f32.mrf.mxu0
    %v5044 = vadd.f32 %v4921, %v5043
    %v5045 = vpop.f32.mrf.mxu0
    %v5046 = vadd.f32 %v4923, %v5045
    %v5047 = vpop.f32.mrf.mxu0
    %v5048 = vadd.f32 %v4925, %v5047
    %v5049 = vpop.f32.mrf.mxu0
    %v5050 = vadd.f32 %v4927, %v5049
    %5051 = vmatprep.mubr.bf16.mxu0 %v3315
    %5052 = vmatmul.mubr.bf16.gmra.mxu0 %v3279
    %v5053 = vpop.f32.mrf.mxu0
    %v5054 = vadd.f32 %v4931, %v5053
    %v5055 = vpop.f32.mrf.mxu0
    %v5056 = vadd.f32 %v4933, %v5055
    %v5057 = vpop.f32.mrf.mxu0
    %v5058 = vadd.f32 %v4935, %v5057
    %v5059 = vpop.f32.mrf.mxu0
    %v5060 = vadd.f32 %v4937, %v5059
    %5061 = vmatprep.mubr.bf16.mxu0 %v3317
    %5062 = vmatmul.mubr.bf16.gmra.mxu0 %v3283
    %v5063 = vpop.f32.mrf.mxu0
    %v5064 = vadd.f32 %v4941, %v5063
    %v5065 = vpop.f32.mrf.mxu0
    %v5066 = vadd.f32 %v4943, %v5065
    %v5067 = vpop.f32.mrf.mxu0
    %v5068 = vadd.f32 %v4945, %v5067
    %v5069 = vpop.f32.mrf.mxu0
    %v5070 = vadd.f32 %v4947, %v5069
    %5071 = vmatprep.mubr.bf16.mxu0 %v3319
    %5072 = vmatmul.mubr.bf16.gmra.mxu0 %v3287
    %v5073 = vpop.f32.mrf.mxu0
    %v5074 = vadd.f32 %v4951, %v5073
    %v5075 = vpop.f32.mrf.mxu0
    %v5076 = vadd.f32 %v4953, %v5075
    %v5077 = vpop.f32.mrf.mxu0
    %v5078 = vadd.f32 %v4955, %v5077
    %v5079 = vpop.f32.mrf.mxu0
    %v5080 = vadd.f32 %v4957, %v5079
    %5081 = vmatprep.mubr.bf16.mxu0 %v3321
    %5082 = vmatmul.mubr.bf16.gmra.mxu0 %v3293
    %v5083 = vpop.f32.mrf.mxu0
    %v5084 = vadd.f32 %v4961, %v5083
    %v5085 = vpop.f32.mrf.mxu0
    %v5086 = vadd.f32 %v4963, %v5085
    %v5087 = vpop.f32.mrf.mxu0
    %v5088 = vadd.f32 %v4965, %v5087
    %v5089 = vpop.f32.mrf.mxu0
    %v5090 = vadd.f32 %v4967, %v5089
    %5091 = vdwg.mxu0
    %5092 = vmatprep.subr.bf16.mxu0 %v4359
    %5093 = vmatpush1.bf16.msra.mxu0 %v4358
    %5094 = vmatprep.subr.bf16.mxu0 %v4357
    %5095 = vmatpush1.bf16.msra.mxu0 %v4356
    %5096 = vmatprep.subr.bf16.mxu0 %v4355
    %5097 = vmatpush1.bf16.msra.mxu0 %v4354
    %5098 = vmatprep.subr.bf16.mxu0 %v4353
    %5099 = vmatpush1.bf16.msra.mxu0 %v4352
    %5100 = vmatprep.subr.bf16.mxu0 %v4351
    %5101 = vmatpush1.bf16.msra.mxu0 %v4350
    %5102 = vmatprep.subr.bf16.mxu0 %v4349
    %5103 = vmatpush1.bf16.msra.mxu0 %v4348
    %5104 = vmatprep.subr.bf16.mxu0 %v4347
    %5105 = vmatpush1.bf16.msra.mxu0 %v4346
    %5106 = vmatprep.subr.bf16.mxu0 %v4345
    %5107 = vmatpush1.bf16.msra.mxu0 %v4344
    %5108 = vmatprep.subr.bf16.mxu0 %v4375
    %5109 = vmatpush2.bf16.msra.mxu0 %v4374
    %5110 = vmatprep.subr.bf16.mxu0 %v4373
    %5111 = vmatpush2.bf16.msra.mxu0 %v4372
    %5112 = vmatprep.subr.bf16.mxu0 %v4371
    %5113 = vmatpush2.bf16.msra.mxu0 %v4370
    %5114 = vmatprep.subr.bf16.mxu0 %v4369
    %5115 = vmatpush2.bf16.msra.mxu0 %v4368
    %5116 = vmatprep.subr.bf16.mxu0 %v4367
    %5117 = vmatpush2.bf16.msra.mxu0 %v4366
    %5118 = vmatprep.subr.bf16.mxu0 %v4365
    %5119 = vmatpush2.bf16.msra.mxu0 %v4364
    %5120 = vmatprep.subr.bf16.mxu0 %v4363
    %5121 = vmatpush2.bf16.msra.mxu0 %v4362
    %5122 = vmatprep.subr.bf16.mxu0 %v4361
    %5123 = vmatpush2.bf16.msra.mxu0 %v4360
    %5124 = vmatprep.mubr.bf16.mxu0 %v3090
    %5125 = vmatmul.mubr.bf16.gmra.mxu0 %v3056
    %v5126 = vpop.f32.mrf.mxu0
    %v5127 = vadd.f32 %v5004, %v5126
    %v5128 = vpop.f32.mrf.mxu0
    %v5129 = vadd.f32 %v5006, %v5128
    %v5130 = vpop.f32.mrf.mxu0
    %v5131 = vadd.f32 %v5008, %v5130
    %v5132 = vpop.f32.mrf.mxu0
    %v5133 = vadd.f32 %v5010, %v5132
    %5134 = vmatprep.mubr.bf16.mxu0 %v3094
    %5135 = vmatmul.mubr.bf16.gmra.mxu0 %v3058
    %v5136 = vpop.f32.mrf.mxu0
    %v5137 = vadd.f32 %v5014, %v5136
    %v5138 = vpop.f32.mrf.mxu0
    %v5139 = vadd.f32 %v5016, %v5138
    %v5140 = vpop.f32.mrf.mxu0
    %v5141 = vadd.f32 %v5018, %v5140
    %v5142 = vpop.f32.mrf.mxu0
    %v5143 = vadd.f32 %v5020, %v5142
    %5144 = vmatprep.mubr.bf16.mxu0 %v3098
    %5145 = vmatmul.mubr.bf16.gmra.mxu0 %v3060
    %v5146 = vpop.f32.mrf.mxu0
    %v5147 = vadd.f32 %v5024, %v5146
    %v5148 = vpop.f32.mrf.mxu0
    %v5149 = vadd.f32 %v5026, %v5148
    %v5150 = vpop.f32.mrf.mxu0
    %v5151 = vadd.f32 %v5028, %v5150
    %v5152 = vpop.f32.mrf.mxu0
    %v5153 = vadd.f32 %v5030, %v5152
    %5154 = vmatprep.mubr.bf16.mxu0 %v3102
    %5155 = vmatmul.mubr.bf16.gmra.mxu0 %v3062
    %v5156 = vpop.f32.mrf.mxu0
    %v5157 = vadd.f32 %v5034, %v5156
    %v5158 = vpop.f32.mrf.mxu0
    %v5159 = vadd.f32 %v5036, %v5158
    %v5160 = vpop.f32.mrf.mxu0
    %v5161 = vadd.f32 %v5038, %v5160
    %v5162 = vpop.f32.mrf.mxu0
    %v5163 = vadd.f32 %v5040, %v5162
    %5164 = vmatprep.mubr.bf16.mxu0 %v3106
    %5165 = vmatmul.mubr.bf16.gmra.mxu0 %v3064
    %v5166 = vpop.f32.mrf.mxu0
    %v5167 = vadd.f32 %v5044, %v5166
    %v5168 = vpop.f32.mrf.mxu0
    %v5169 = vadd.f32 %v5046, %v5168
    %v5170 = vpop.f32.mrf.mxu0
    %v5171 = vadd.f32 %v5048, %v5170
    %v5172 = vpop.f32.mrf.mxu0
    %v5173 = vadd.f32 %v5050, %v5172
    %5174 = vmatprep.mubr.bf16.mxu0 %v3110
    %5175 = vmatmul.mubr.bf16.gmra.mxu0 %v3066
    %v5176 = vpop.f32.mrf.mxu0
    %v5177 = vadd.f32 %v5054, %v5176
    %v5178 = vpop.f32.mrf.mxu0
    %v5179 = vadd.f32 %v5056, %v5178
    %v5180 = vpop.f32.mrf.mxu0
    %v5181 = vadd.f32 %v5058, %v5180
    %v5182 = vpop.f32.mrf.mxu0
    %v5183 = vadd.f32 %v5060, %v5182
    %5184 = vmatprep.mubr.bf16.mxu0 %v3114
    %5185 = vmatmul.mubr.bf16.gmra.mxu0 %v3068
    %v5186 = vpop.f32.mrf.mxu0
    %v5187 = vadd.f32 %v5064, %v5186
    %v5188 = vpop.f32.mrf.mxu0
    %v5189 = vadd.f32 %v5066, %v5188
    %v5190 = vpop.f32.mrf.mxu0
    %v5191 = vadd.f32 %v5068, %v5190
    %v5192 = vpop.f32.mrf.mxu0
    %v5193 = vadd.f32 %v5070, %v5192
    %5194 = vmatprep.mubr.bf16.mxu0 %v3347
    %5195 = vmatmul.mubr.bf16.gmra.mxu0 %v3334
    %v5196 = vpop.f32.mrf.mxu0
    %v5197 = vadd.f32 %v5074, %v5196
    %v5198 = vpop.f32.mrf.mxu0
    %v5199 = vadd.f32 %v5076, %v5198
    %v5200 = vpop.f32.mrf.mxu0
    %v5201 = vadd.f32 %v5078, %v5200
    %v5202 = vpop.f32.mrf.mxu0
    %v5203 = vadd.f32 %v5080, %v5202
    %5204 = vmatprep.mubr.bf16.mxu0 %v3356
    %5205 = vmatmul.mubr.bf16.gmra.mxu0 %v3336
    %v5206 = vpop.f32.mrf.mxu0
    %v5207 = vadd.f32 %v5084, %v5206
    %v5208 = vpop.f32.mrf.mxu0
    %v5209 = vadd.f32 %v5086, %v5208
    %v5210 = vpop.f32.mrf.mxu0
    %v5211 = vadd.f32 %v5088, %v5210
    %v5212 = vpop.f32.mrf.mxu0
    %v5213 = vadd.f32 %v5090, %v5212
    %5214 = vdwg.mxu0
    %5215 = vmatprep.subr.bf16.mxu0 %v4391
    %5216 = vmatpush1.bf16.msra.mxu0 %v4390
    %5217 = vmatprep.subr.bf16.mxu0 %v4389
    %5218 = vmatpush1.bf16.msra.mxu0 %v4388
    %5219 = vmatprep.subr.bf16.mxu0 %v4387
    %5220 = vmatpush1.bf16.msra.mxu0 %v4386
    %5221 = vmatprep.subr.bf16.mxu0 %v4385
    %5222 = vmatpush1.bf16.msra.mxu0 %v4384
    %5223 = vmatprep.subr.bf16.mxu0 %v4383
    %5224 = vmatpush1.bf16.msra.mxu0 %v4382
    %5225 = vmatprep.subr.bf16.mxu0 %v4381
    %5226 = vmatpush1.bf16.msra.mxu0 %v4380
    %5227 = vmatprep.subr.bf16.mxu0 %v4379
    %5228 = vmatpush1.bf16.msra.mxu0 %v4378
    %5229 = vmatprep.subr.bf16.mxu0 %v4377
    %5230 = vmatpush1.bf16.msra.mxu0 %v4376
    %5231 = vmatprep.subr.bf16.mxu0 %v4407
    %5232 = vmatpush2.bf16.msra.mxu0 %v4406
    %5233 = vmatprep.subr.bf16.mxu0 %v4405
    %5234 = vmatpush2.bf16.msra.mxu0 %v4404
    %5235 = vmatprep.subr.bf16.mxu0 %v4403
    %5236 = vmatpush2.bf16.msra.mxu0 %v4402
    %5237 = vmatprep.subr.bf16.mxu0 %v4401
    %5238 = vmatpush2.bf16.msra.mxu0 %v4400
    %5239 = vmatprep.subr.bf16.mxu0 %v4399
    %5240 = vmatpush2.bf16.msra.mxu0 %v4398
    %5241 = vmatprep.subr.bf16.mxu0 %v4397
    %5242 = vmatpush2.bf16.msra.mxu0 %v4396
    %5243 = vmatprep.subr.bf16.mxu0 %v4395
    %5244 = vmatpush2.bf16.msra.mxu0 %v4394
    %5245 = vmatprep.subr.bf16.mxu0 %v4393
    %5246 = vmatpush2.bf16.msra.mxu0 %v4392
    %5247 = vmatprep.mubr.bf16.mxu0 %v3394
    %5248 = vmatmul.mubr.bf16.gmra.mxu0 %v3361
    %v5249 = vpop.f32.mrf.mxu0
    %v5250 = vadd.f32 %v5127, %v5249
    %v5251 = vpop.f32.mrf.mxu0
    %v5252 = vadd.f32 %v5129, %v5251
    %v5253 = vpop.f32.mrf.mxu0
    %v5254 = vadd.f32 %v5131, %v5253
    %v5255 = vpop.f32.mrf.mxu0
    %v5256 = vadd.f32 %v5133, %v5255
    %5257 = vmatprep.mubr.bf16.mxu0 %v3398
    %5258 = vmatmul.mubr.bf16.gmra.mxu0 %v3363
    %v5259 = vpop.f32.mrf.mxu0
    %v5260 = vadd.f32 %v5137, %v5259
    %v5261 = vpop.f32.mrf.mxu0
    %v5262 = vadd.f32 %v5139, %v5261
    %v5263 = vpop.f32.mrf.mxu0
    %v5264 = vadd.f32 %v5141, %v5263
    %v5265 = vpop.f32.mrf.mxu0
    %v5266 = vadd.f32 %v5143, %v5265
    %5267 = vmatprep.mubr.bf16.mxu0 %v3402
    %5268 = vmatmul.mubr.bf16.gmra.mxu0 %v3365
    %v5269 = vpop.f32.mrf.mxu0
    %v5270 = vadd.f32 %v5147, %v5269
    %v5271 = vpop.f32.mrf.mxu0
    %v5272 = vadd.f32 %v5149, %v5271
    %v5273 = vpop.f32.mrf.mxu0
    %v5274 = vadd.f32 %v5151, %v5273
    %v5275 = vpop.f32.mrf.mxu0
    %v5276 = vadd.f32 %v5153, %v5275
    %5277 = vmatprep.mubr.bf16.mxu0 %v3406
    %5278 = vmatmul.mubr.bf16.gmra.mxu0 %v3367
    %v5279 = vpop.f32.mrf.mxu0
    %v5280 = vadd.f32 %v5157, %v5279
    %v5281 = vpop.f32.mrf.mxu0
    %v5282 = vadd.f32 %v5159, %v5281
    %v5283 = vpop.f32.mrf.mxu0
    %v5284 = vadd.f32 %v5161, %v5283
    %v5285 = vpop.f32.mrf.mxu0
    %v5286 = vadd.f32 %v5163, %v5285
    %5287 = vmatprep.mubr.bf16.mxu0 %v3410
    %5288 = vmatmul.mubr.bf16.gmra.mxu0 %v3369
    %v5289 = vpop.f32.mrf.mxu0
    %v5290 = vadd.f32 %v5167, %v5289
    %v5291 = vpop.f32.mrf.mxu0
    %v5292 = vadd.f32 %v5169, %v5291
    %v5293 = vpop.f32.mrf.mxu0
    %v5294 = vadd.f32 %v5171, %v5293
    %v5295 = vpop.f32.mrf.mxu0
    %v5296 = vadd.f32 %v5173, %v5295
    %5297 = vmatprep.mubr.bf16.mxu0 %v3414
    %5298 = vmatmul.mubr.bf16.gmra.mxu0 %v3371
    %v5299 = vpop.f32.mrf.mxu0
    %v5300 = vadd.f32 %v5177, %v5299
    %v5301 = vpop.f32.mrf.mxu0
    %v5302 = vadd.f32 %v5179, %v5301
    %v5303 = vpop.f32.mrf.mxu0
    %v5304 = vadd.f32 %v5181, %v5303
    %v5305 = vpop.f32.mrf.mxu0
    %v5306 = vadd.f32 %v5183, %v5305
    %5307 = vmatprep.mubr.bf16.mxu0 %v3418
    %5308 = vmatmul.mubr.bf16.gmra.mxu0 %v3373
    %v5309 = vpop.f32.mrf.mxu0
    %v5310 = vadd.f32 %v5187, %v5309
    %v5311 = vpop.f32.mrf.mxu0
    %v5312 = vadd.f32 %v5189, %v5311
    %v5313 = vpop.f32.mrf.mxu0
    %v5314 = vadd.f32 %v5191, %v5313
    %v5315 = vpop.f32.mrf.mxu0
    %v5316 = vadd.f32 %v5193, %v5315
    %5317 = vmatprep.mubr.bf16.mxu0 %v3422
    %5318 = vmatmul.mubr.bf16.gmra.mxu0 %v3375
    %v5319 = vpop.f32.mrf.mxu0
    %v5320 = vadd.f32 %v5197, %v5319
    %v5321 = vpop.f32.mrf.mxu0
    %v5322 = vadd.f32 %v5199, %v5321
    %v5323 = vpop.f32.mrf.mxu0
    %v5324 = vadd.f32 %v5201, %v5323
    %v5325 = vpop.f32.mrf.mxu0
    %v5326 = vadd.f32 %v5203, %v5325
    %5327 = vmatprep.mubr.bf16.mxu0 %v3426
    %5328 = vmatmul.mubr.bf16.gmra.mxu0 %v3377
    %v5329 = vpop.f32.mrf.mxu0
    %v5330 = vadd.f32 %v5207, %v5329
    %v5331 = vpop.f32.mrf.mxu0
    %v5332 = vadd.f32 %v5209, %v5331
    %v5333 = vpop.f32.mrf.mxu0
    %v5334 = vadd.f32 %v5211, %v5333
    %v5335 = vpop.f32.mrf.mxu0
    %v5336 = vadd.f32 %v5213, %v5335
    %5337 = vdwg.mxu0
    %v5338 = vmax.f32 %v5250, 0.0
    %v5339 = vmax.f32 %v5252, 0.0
    %v5340 = vmax.f32 %v5254, 0.0
    %v5341 = vmax.f32 %v5256, 0.0
    %v5342 = vmax.f32 %v5260, 0.0
    %v5343 = vmax.f32 %v5262, 0.0
    %v5344 = vmax.f32 %v5264, 0.0
    %v5345 = vmax.f32 %v5266, 0.0
    %v5346 = vmax.f32 %v5270, 0.0
    %v5347 = vmax.f32 %v5272, 0.0
    %v5348 = vmax.f32 %v5274, 0.0
    %v5349 = vmax.f32 %v5276, 0.0
    %v5350 = vmax.f32 %v5280, 0.0
    %v5351 = vmax.f32 %v5282, 0.0
    %v5352 = vmax.f32 %v5284, 0.0
    %v5353 = vmax.f32 %v5286, 0.0
    %v5354 = vmax.f32 %v5290, 0.0
    %v5355 = vmax.f32 %v5292, 0.0
    %v5356 = vmax.f32 %v5294, 0.0
    %v5357 = vmax.f32 %v5296, 0.0
    %v5358 = vmax.f32 %v5300, 0.0
    %v5359 = vmax.f32 %v5302, 0.0
    %v5360 = vmax.f32 %v5304, 0.0
    %v5361 = vmax.f32 %v5306, 0.0
    %v5362 = vmax.f32 %v5310, 0.0
    %v5363 = vmax.f32 %v5312, 0.0
    %v5364 = vmax.f32 %v5314, 0.0
    %v5365 = vmax.f32 %v5316, 0.0
    %v5366 = vmax.f32 %v5320, 0.0
    %v5367 = vmax.f32 %v5322, 0.0
    %v5368 = vmax.f32 %v5324, 0.0
    %v5369 = vmax.f32 %v5326, 0.0
    %v5370 = vmax.f32 %v5330, 0.0
    %v5371 = vmax.f32 %v5332, 0.0
    %v5372 = vmax.f32 %v5334, 0.0
    %v5373 = vmax.f32 %v5336, 0.0
    %v5374 = vlaneseq
    %v5375 = vshrl.u32 %v5374, 7
    %v5376 = vlaneseq
    %v5377 = vand.u32 %v5376, 127
    %v5378 = vadd.s32 %v5377, 128
    %v5379 = vmul.u32 %v5375, 72
    %vm5380 = vcmp.eq.s32.totalorder %v5377, %v5379
    %vm5381 = vcmp.eq.s32.totalorder %v5378, %v5379
    %vm5382 = vcmp.lt.s32.totalorder %v5375, 2
    %vm5383 = vmand %vm5380, %vm5382
    %vm5384 = vmand %vm5381, %vm5382
    %v5385 = vsel %vm5383, 1, 0
    %v5386 = vsel %vm5384, 1, 0
    %v5387 = vcvt.s32.f32 %v5385
    %v5388 = vcvt.s32.f32 %v5386
    %v5390 = vsel %vm102, %v5388, 0
    %5392 = vmatprep.subr.mxu0 %v5369
    %5393 = vmatpush1.msra.mxu0 %v5368
    %5394 = vmatprep.subr.mxu0 %v5367
    %5395 = vmatpush1.msra.mxu0 %v5366
    %5396 = vmatprep.subr.mxu0 %v5365
    %5397 = vmatpush1.msra.mxu0 %v5364
    %5398 = vmatprep.subr.mxu0 %v5363
    %5399 = vmatpush1.msra.mxu0 %v5362
    %5400 = vmatprep.subr.mxu0 %v5361
    %5401 = vmatpush1.msra.mxu0 %v5360
    %5402 = vmatprep.subr.mxu0 %v5359
    %5403 = vmatpush1.msra.mxu0 %v5358
    %5404 = vmatprep.subr.mxu0 %v5357
    %5405 = vmatpush1.msra.mxu0 %v5356
    %5406 = vmatprep.subr.mxu0 %v5355
    %5407 = vmatpush1.msra.mxu0 %v5354
    %5408 = vmatprep.subr.mxu0 %v5353
    %5409 = vmatpush1.msra.mxu0 %v5352
    %5410 = vmatprep.subr.mxu0 %v5351
    %5411 = vmatpush1.msra.mxu0 %v5350
    %5412 = vmatprep.subr.mxu0 %v5349
    %5413 = vmatpush1.msra.mxu0 %v5348
    %5414 = vmatprep.subr.mxu0 %v5347
    %5415 = vmatpush1.msra.mxu0 %v5346
    %5416 = vmatprep.subr.mxu0 %v5345
    %5417 = vmatpush1.msra.mxu0 %v5344
    %5418 = vmatprep.subr.mxu0 %v5343
    %5419 = vmatpush1.msra.mxu0 %v5342
    %5420 = vmatprep.subr.mxu0 %v5341
    %5421 = vmatpush1.msra.mxu0 %v5340
    %5422 = vmatprep.subr.mxu0 %v5339
    %5423 = vmatpush1.msra.mxu0 %v5338
    %5424 = vmatprep.subr.mxu0 0.0
    %5425 = vmatpush2.msra.mxu0 0.0
    %5426 = vmatprep.subr.mxu0 0.0
    %5427 = vmatpush2.msra.mxu0 0.0
    %5428 = vmatprep.subr.mxu0 0.0
    %5429 = vmatpush2.msra.mxu0 0.0
    %5430 = vmatprep.subr.mxu0 0.0
    %5431 = vmatpush2.msra.mxu0 0.0
    %5432 = vmatprep.subr.mxu0 0.0
    %5433 = vmatpush2.msra.mxu0 0.0
    %5434 = vmatprep.subr.mxu0 0.0
    %5435 = vmatpush2.msra.mxu0 0.0
    %5436 = vmatprep.subr.mxu0 0.0
    %5437 = vmatpush2.msra.mxu0 0.0
    %5438 = vmatprep.subr.mxu0 0.0
    %5439 = vmatpush2.msra.mxu0 0.0
    %5440 = vmatprep.subr.mxu0 0.0
    %5441 = vmatpush2.msra.mxu0 0.0
    %5442 = vmatprep.subr.mxu0 0.0
    %5443 = vmatpush2.msra.mxu0 0.0
    %5444 = vmatprep.subr.mxu0 0.0
    %5445 = vmatpush2.msra.mxu0 0.0
    %5446 = vmatprep.subr.mxu0 0.0
    %5447 = vmatpush2.msra.mxu0 0.0
    %5448 = vmatprep.subr.mxu0 0.0
    %5449 = vmatpush2.msra.mxu0 0.0
    %5450 = vmatprep.subr.mxu0 0.0
    %5451 = vmatpush2.msra.mxu0 0.0
    %5452 = vmatprep.subr.mxu0 %v5373
    %5453 = vmatpush2.msra.mxu0 %v5372
    %5454 = vmatprep.subr.mxu0 %v5371
    %5455 = vmatpush2.msra.mxu0 %v5370
    %5456 = vmatprep.mubr.f32.mxu0 %v5390
    %5457 = vmatmul.mubr.f32.gmra.mxu0 %v5387
    %v5458 = vpop.f32.mrf.mxu0
    %v5459 = vadd.f32 0.0, %v5458
    %v5460 = vpop.f32.mrf.mxu0
    %v5461 = vadd.f32 0.0, %v5460
    %5462 = vdwg.mxu0
    %v5463 = vpack.c.bf16 %v5459, %v5459
    %v5464 = vpack.c.bf16 %v5461, %v5461
    %v5465 = vld [vmem:[%s9] sm:$0xf]
    %v5466 = vld [vmem:[%s9 + $0x4] sm:$0xf]
    %v5467 = vld [vmem:[%s9 + $0x8] sm:$0xf]
    %v5468 = vld [vmem:[%s9 + $0xc] sm:$0xf]
    %v5469 = vld [vmem:[%s9 + $0x10] sm:$0xf]
    %v5470 = vld [vmem:[%s9 + $0x14] sm:$0xf]
    %v5471 = vld [vmem:[%s9 + $0x18] sm:$0xf]
    %v5472 = vld [vmem:[%s9 + $0x1c] sm:$0xf]
    %v5473 = vld [vmem:[%s9 + $0x20] sm:$0xf]
    %v5474 = vld [vmem:[%s9 + $0x24] sm:$0xf]
    %v5475 = vld [vmem:[%s9 + $0x28] sm:$0xf]
    %v5476 = vld [vmem:[%s9 + $0x2c] sm:$0xf]
    %v5477 = vld [vmem:[%s9 + $0x30] sm:$0xf]
    %v5478 = vld [vmem:[%s9 + $0x34] sm:$0xf]
    %v5479 = vld [vmem:[%s9 + $0x38] sm:$0xf]
    %v5480 = vld [vmem:[%s9 + $0x3c] sm:$0xf]
    %v5481 = vld [vmem:[%s9 + $0x40] sm:$0xf]
    %v5482 = vld [vmem:[%s9 + $0x44] sm:$0xf]
    %v5483 = vld [vmem:[%s9 + $0x48] sm:$0xf]
    %v5484 = vld [vmem:[%s9 + $0x4c] sm:$0xf]
    %v5485 = vld [vmem:[%s9 + $0x50] sm:$0xf]
    %v5486 = vld [vmem:[%s9 + $0x54] sm:$0xf]
    %v5487 = vld [vmem:[%s9 + $0x58] sm:$0xf]
    %v5488 = vld [vmem:[%s9 + $0x5c] sm:$0xf]
    %v5489 = vld [vmem:[%s9 + $0x60] sm:$0xf]
    %v5490 = vld [vmem:[%s9 + $0x64] sm:$0xf]
    %v5491 = vld [vmem:[%s9 + $0x68] sm:$0xf]
    %v5492 = vld [vmem:[%s9 + $0x6c] sm:$0xf]
    %v5493 = vld [vmem:[%s9 + $0x70] sm:$0xf]
    %v5494 = vld [vmem:[%s9 + $0x74] sm:$0xf]
    %v5495 = vld [vmem:[%s9 + $0x78] sm:$0xf]
    %v5496 = vld [vmem:[%s9 + $0x7c] sm:$0xf]
    %v5497 = vld [vmem:[%s10] sm:$0x1]
    %v5499 = vlaneseq
    %v5500 = vshrl.u32 %v5499, 7
    %v5501 = vsub.s32 0, %v5500
    %v5502 = vrot.slane %v5497, %v5501
    %v5536 = vunpack.c.l.b16 %v5465
    %v5537 = vunpack.c.l.b16 %v5466
    %v5538 = vunpack.c.l.b16 %v5467
    %v5539 = vunpack.c.l.b16 %v5468
    %v5540 = vunpack.c.l.b16 %v5469
    %v5541 = vunpack.c.l.b16 %v5470
    %v5542 = vunpack.c.l.b16 %v5471
    %v5543 = vunpack.c.l.b16 %v5472
    %v5544 = vunpack.c.l.b16 %v5473
    %v5545 = vunpack.c.l.b16 %v5474
    %v5546 = vunpack.c.l.b16 %v5475
    %v5547 = vunpack.c.l.b16 %v5476
    %v5548 = vunpack.c.l.b16 %v5477
    %v5549 = vunpack.c.l.b16 %v5478
    %v5550 = vunpack.c.l.b16 %v5479
    %v5551 = vunpack.c.l.b16 %v5480
    %v5552 = vunpack.c.l.b16 %v5481
    %v5553 = vunpack.c.l.b16 %v5482
    %v5554 = vunpack.c.l.b16 %v5483
    %v5555 = vunpack.c.l.b16 %v5484
    %v5556 = vunpack.c.l.b16 %v5485
    %v5557 = vunpack.c.l.b16 %v5486
    %v5558 = vunpack.c.l.b16 %v5487
    %v5559 = vunpack.c.l.b16 %v5488
    %v5560 = vunpack.c.l.b16 %v5489
    %v5561 = vunpack.c.l.b16 %v5490
    %v5562 = vunpack.c.l.b16 %v5491
    %v5563 = vunpack.c.l.b16 %v5492
    %v5564 = vunpack.c.l.b16 %v5493
    %v5565 = vunpack.c.l.b16 %v5494
    %v5566 = vunpack.c.l.b16 %v5495
    %v5567 = vunpack.c.l.b16 %v5496
    %v5568 = vpack.c.b16 %v5537, %v5536
    %v5569 = vpack.c.b16 %v5539, %v5538
    %v5570 = vpack.c.b16 %v5541, %v5540
    %v5571 = vpack.c.b16 %v5543, %v5542
    %v5572 = vpack.c.b16 %v5545, %v5544
    %v5573 = vpack.c.b16 %v5547, %v5546
    %v5574 = vpack.c.b16 %v5549, %v5548
    %v5575 = vpack.c.b16 %v5551, %v5550
    %v5576 = vpack.c.b16 %v5553, %v5552
    %v5577 = vpack.c.b16 %v5555, %v5554
    %v5578 = vpack.c.b16 %v5557, %v5556
    %v5579 = vpack.c.b16 %v5559, %v5558
    %v5580 = vpack.c.b16 %v5561, %v5560
    %v5581 = vpack.c.b16 %v5563, %v5562
    %v5582 = vpack.c.b16 %v5565, %v5564
    %v5583 = vpack.c.b16 %v5567, %v5566
    %5600 = vmatprep.subr.bf16.mxu0 0
    %5601 = vmatpush1.bf16.msra.mxu0 %v5575
    %5602 = vmatprep.subr.bf16.mxu0 0
    %5603 = vmatpush1.bf16.msra.mxu0 %v5574
    %5604 = vmatprep.subr.bf16.mxu0 0
    %5605 = vmatpush1.bf16.msra.mxu0 %v5573
    %5606 = vmatprep.subr.bf16.mxu0 0
    %5607 = vmatpush1.bf16.msra.mxu0 %v5572
    %5608 = vmatprep.subr.bf16.mxu0 0
    %5609 = vmatpush1.bf16.msra.mxu0 %v5571
    %5610 = vmatprep.subr.bf16.mxu0 0
    %5611 = vmatpush1.bf16.msra.mxu0 %v5570
    %5612 = vmatprep.subr.bf16.mxu0 0
    %5613 = vmatpush1.bf16.msra.mxu0 %v5569
    %5614 = vmatprep.subr.bf16.mxu0 0
    %5615 = vmatpush1.bf16.msra.mxu0 %v5568
    %5616 = vmatprep.subr.bf16.mxu0 0
    %5617 = vmatpush2.bf16.msra.mxu0 %v5583
    %5618 = vmatprep.subr.bf16.mxu0 0
    %5619 = vmatpush2.bf16.msra.mxu0 %v5582
    %5620 = vmatprep.subr.bf16.mxu0 0
    %5621 = vmatpush2.bf16.msra.mxu0 %v5581
    %5622 = vmatprep.subr.bf16.mxu0 0
    %5623 = vmatpush2.bf16.msra.mxu0 %v5580
    %5624 = vmatprep.subr.bf16.mxu0 0
    %5625 = vmatpush2.bf16.msra.mxu0 %v5579
    %5626 = vmatprep.subr.bf16.mxu0 0
    %5627 = vmatpush2.bf16.msra.mxu0 %v5578
    %5628 = vmatprep.subr.bf16.mxu0 0
    %5629 = vmatpush2.bf16.msra.mxu0 %v5577
    %5630 = vmatprep.subr.bf16.mxu0 0
    %5631 = vmatpush2.bf16.msra.mxu0 %v5576
    %5632 = vmatprep.mubr.bf16.mxu0 %v5464
    %5633 = vmatmul.mubr.bf16.gmra.mxu0 %v5463
    %v5634 = vpop.f32.mrf.mxu0
    %v5635 = vadd.f32 %v5502, %v5634
    %v5636 = vpop.f32.mrf.mxu0
    %v5637 = vpop.f32.mrf.mxu0
    %v5638 = vpop.f32.mrf.mxu0
    %5639 = vdwg.mxu0
    %5640 = vst [vmem:[%s11] sm:$0xff] %v5635
    // Predicated region
    $region54: #{dqn_apply.1} parent=1 // pred_check
      _
    $region55: #{dqn_apply.1} parent=1 // pred_check_branch
      %5642 = sbr.rel (0) target = $region57
    $region56: #{dqn_apply.1} parent=1 // pred_region
      _
    $region57: #{dqn_apply.1} parent=1 // pred_fallthru
      _
    // Predicated region
    $region58: #{dqn_apply.1} parent=1 // pred_check
      _
    $region59: #{dqn_apply.1} parent=1 // pred_check_branch
      %5644 = sbr.rel (0) target = $region61
    $region60: #{dqn_apply.1} parent=1 // pred_region
      _
    $region61: #{dqn_apply.1} parent=1 // pred_fallthru
      _
    %5645 = vsyncpa [#allocation3], 1
    %5646 = vsyncpa [#allocation5], 1

</llo_original>
